<compile_context>
chip_gen: v7x
topology: tpu7x:2x2x1
jax: 0.10.0
libtpu: 0.0.40
codegen_flags: <defaults>
</compile_context>

<pallas_src>
import functools
import math

import jax
import jax.numpy as jnp
from jax import lax
from jax.experimental import pallas as pl
from jax.experimental.pallas import tpu as pltpu


def _round_up(x, m):
    return ((x + m - 1) // m) * m


# ----------------------- fused bidirectional LSTM recurrence -----------------------
def _bilstm_rec_kernel(gx_ref, whh_ref, y_ref, h_sc, c_sc, *, h_pad, t_chunk, unroll):
    """Recurrence for one (direction, time-chunk) grid cell.

    Grid = (2, num_chunks): axis 0 = direction ("parallel"), axis 1 = time chunks
    ("arbitrary", sequential; h/c carried in VMEM scratch, reset at chunk 0).

    gx_ref : (t_chunk, B_pad, 4*H_pad) bf16  hoisted x @ W_ih^T + (b_ih + b_hh)
    whh_ref: (H_pad, 4*H_pad)          bf16  recurrent weights (pre-transposed, padded)
    y_ref  : (t_chunk, B_pad, H_pad)   bf16  hidden states, written in natural time order
    """
    d = pl.program_id(0)          # 0 = forward, 1 = backward
    c = pl.program_id(1)          # time-chunk index within this direction
    HP = h_pad

    @pl.when(c == 0)
    def _():
        h_sc[...] = jnp.zeros_like(h_sc)
        c_sc[...] = jnp.zeros_like(c_sc)

    def step(row, carry):
        h_prev, c_prev = carry
        # gates = hoisted projection (+bias) + h_prev @ W_hh, f32 accumulation.
        gates = gx_ref[row].astype(jnp.float32) + jnp.dot(
            h_prev.astype(jnp.bfloat16), whh_ref[...],
            preferred_element_type=jnp.float32)                  # (B_pad, 4*HP)
        # Gate order is (i, f, o, g), each padded to a full 128-lane tile:
        # one sigmoid over 3*HP lanes, one tanh over HP lanes; all slices tile-aligned.
        sig = jax.nn.sigmoid(gates[:, :3 * HP])
        g = jnp.tanh(gates[:, 3 * HP:])
        i = sig[:, 0 * HP:1 * HP]
        f = sig[:, 1 * HP:2 * HP]
        o = sig[:, 2 * HP:3 * HP]
        c_new = f * c_prev + i * g
        h_new = o * jnp.tanh(c_new)
        y_ref[row] = h_new.astype(y_ref.dtype)
        return h_new, c_new

    def run(reverse):
        carry = (h_sc[...], c_sc[...])
        if t_chunk <= 32:
            # Fully static unroll: every gx load / y store has a compile-time row index.
            for j in range(t_chunk):
                row = (t_chunk - 1 - j) if reverse else j
                carry = step(row, carry)
        else:
            # Large chunks: partial unroll keeps LLO visibility without vreg blowup.
            def body(j, carry):
                row = (t_chunk - 1 - j) if reverse else j
                return step(row, carry)
            carry = lax.fori_loop(0, t_chunk, body, carry, unroll=unroll)
        h_sc[...] = carry[0]
        c_sc[...] = carry[1]

    # Direction-specialized bodies: removes the runtime-d row arithmetic from the
    # serial dependency chain (only the BlockSpec index_map depends on d).
    @pl.when(d == 0)
    def _():
        run(False)

    @pl.when(d == 1)
    def _():
        run(True)


def bilstm_layer(gx, w_hh_t, *, h_pad, t_chunk, unroll):
    """One bidirectional LSTM layer (both directions fused in one pallas_call).

    gx     : (2, T_pad, B_pad, 4*H_pad) bf16  hoisted input projection (dir 0 = fwd),
             zero-padded at the end of time (zero rows provably keep h = c = 0).
    w_hh_t : (2, H_pad, 4*H_pad) bf16         recurrent weights (pre-transposed, padded).
    returns: (2, T_pad, B_pad, H_pad) bf16    hidden states in natural time order.
    """
    _, T_pad, B_pad, _ = gx.shape
    n_chunks = T_pad // t_chunk

    def io_map(d, c):
        # forward: chunk c; backward: mirrored chunk n-1-c (it also walks rows reversed).
        return (d, c + d * (n_chunks - 1 - 2 * c), 0, 0)

    # Per-TensorCore VMEM budget, computed (not hardcoded): double-buffered gx/y blocks
    # + resident weights (x2 for pipelining) + carries, with headroom; capped well under
    # the 64 MiB physical VMEM of a v7x TensorCore.
    gx_blk = t_chunk * B_pad * 4 * h_pad * 2
    y_blk = t_chunk * B_pad * h_pad * 2
    whh_b = h_pad * 4 * h_pad * 2
    scratch = 2 * B_pad * h_pad * 4
    footprint = 2 * (gx_blk + y_blk) + 2 * whh_b + scratch
    vmem_limit = int(min(max(2 * footprint + (4 << 20), 16 << 20), 48 << 20))

    kernel = functools.partial(_bilstm_rec_kernel, h_pad=h_pad, t_chunk=t_chunk,
                               unroll=unroll)
    return pl.pallas_call(
        kernel,
        out_shape=jax.ShapeDtypeStruct((2, T_pad, B_pad, h_pad), jnp.bfloat16),
        grid_spec=pltpu.PrefetchScalarGridSpec(
            num_scalar_prefetch=0,
            grid=(2, n_chunks),
            in_specs=[
                pl.BlockSpec((None, t_chunk, B_pad, 4 * h_pad), io_map),
                pl.BlockSpec((None, h_pad, 4 * h_pad), lambda d, c: (d, 0, 0)),
            ],
            out_specs=pl.BlockSpec((None, t_chunk, B_pad, h_pad), io_map),
            scratch_shapes=[
                pltpu.VMEM((B_pad, h_pad), jnp.float32),   # h carry
                pltpu.VMEM((B_pad, h_pad), jnp.float32),   # c carry
            ],
        ),
        compiler_params=pltpu.CompilerParams(
            dimension_semantics=("parallel", "arbitrary"),
            vmem_limit_bytes=vmem_limit,
        ),
    )(gx, w_hh_t)


# --------------------------------- LayerNorm kernel ---------------------------------
def _layer_norm_kernel(x_ref, g_ref, b_ref, o_ref, *, feat, eps):
    """LayerNorm over the first `feat` lanes of a lane-dense (row_tile, F_pad) block."""
    x = x_ref[...].astype(jnp.float32)
    inv_d = 1.0 / feat
    mean = jnp.sum(x, axis=-1, keepdims=True) * inv_d        # pad lanes are exact zeros
    d = x - mean
    if feat != x.shape[-1]:
        mask = lax.broadcasted_iota(jnp.int32, x.shape, 1) < feat
        d = jnp.where(mask, d, 0.0)
    var = jnp.sum(d * d, axis=-1, keepdims=True) * inv_d
    inv = lax.rsqrt(var + eps)
    o_ref[...] = (d * inv * g_ref[...] + b_ref[...]).astype(o_ref.dtype)


def layer_norm_rows(x_rows, gamma_pad, beta_pad, *, feat, eps=1e-5):
    """x_rows: (rows, F_pad) bf16, lane-dense; LN over the first `feat` features."""
    rows, f_pad = x_rows.shape
    row_tile = 256 if rows >= 256 else _round_up(rows, 8)
    rows_pad = pl.cdiv(rows, row_tile) * row_tile
    if rows_pad != rows:
        x_rows = jnp.pad(x_rows, ((0, rows_pad - rows), (0, 0)))
    kernel = functools.partial(_layer_norm_kernel, feat=feat, eps=eps)
    out = pl.pallas_call(
        kernel,
        out_shape=jax.ShapeDtypeStruct((rows_pad, f_pad), jnp.float32),
        grid_spec=pltpu.PrefetchScalarGridSpec(
            num_scalar_prefetch=0,
            grid=(rows_pad // row_tile,),
            in_specs=[
                pl.BlockSpec((row_tile, f_pad), lambda i: (i, 0)),
                pl.BlockSpec((1, f_pad), lambda i: (0, 0)),
                pl.BlockSpec((1, f_pad), lambda i: (0, 0)),
            ],
            out_specs=pl.BlockSpec((row_tile, f_pad), lambda i: (i, 0)),
        ),
        compiler_params=pltpu.CompilerParams(dimension_semantics=("parallel",)),
    )(x_rows, gamma_pad, beta_pad)
    return out[:rows]


# --------------------------------- Model (wrapper) ---------------------------------
def _pack_gate_cols(w_t, H, h_pad):
    """(K, 4H) gate-column order (i,f,g,o) -> (K, 4*h_pad) order (i,f,o,g), each gate
    lane-padded to h_pad so gate slices in the kernel are tile-aligned."""
    out = jnp.zeros((w_t.shape[0], 4 * h_pad), w_t.dtype)
    i_, f_, g_, o_ = (w_t[:, 0:H], w_t[:, H:2 * H], w_t[:, 2 * H:3 * H], w_t[:, 3 * H:4 * H])
    out = out.at[:, 0 * h_pad:0 * h_pad + H].set(i_)
    out = out.at[:, 1 * h_pad:1 * h_pad + H].set(f_)
    out = out.at[:, 2 * h_pad:2 * h_pad + H].set(o_)
    out = out.at[:, 3 * h_pad:3 * h_pad + H].set(g_)
    return out


def init_params(key, vocabsize, embed_dim, lstm_hidden_dim, lstm_num_layers):
    H = lstm_hidden_dim // 2
    h_pad = _round_up(H, 128)
    f_pad = _round_up(2 * H, 128)

    key, k_emb = jax.random.split(key)
    emb = jax.random.normal(k_emb, (vocabsize, embed_dim), jnp.float32)
    emb = emb.at[0].set(0.0)  # padding_idx=0

    bound = 1.0 / math.sqrt(H)
    layers = []
    for layer in range(lstm_num_layers):
        in_dim = embed_dim if layer == 0 else 2 * H
        w_ih_t, w_hh_t, bias = [], [], []
        for _ in range(2):  # forward, reverse
            key, k1, k2, k3, k4 = jax.random.split(key, 5)
            w_ih = jax.random.uniform(k1, (4 * H, in_dim), jnp.float32, -bound, bound)
            w_hh = jax.random.uniform(k2, (4 * H, H), jnp.float32, -bound, bound)
            b_ih = jax.random.uniform(k3, (4 * H,), jnp.float32, -bound, bound)
            b_hh = jax.random.uniform(k4, (4 * H,), jnp.float32, -bound, bound)

            wih_t = _pack_gate_cols(jnp.transpose(w_ih), H, h_pad)     # (in_dim, 4*h_pad)
            if layer > 0:
                # Rows map to the padded, lane-dense concat [fwd h_pad | bwd h_pad] of
                # the previous layer's outputs (their pad lanes are exact zeros).
                full = jnp.zeros((2 * h_pad, 4 * h_pad), jnp.float32)
                full = full.at[0:H].set(wih_t[0:H])
                full = full.at[h_pad:h_pad + H].set(wih_t[H:2 * H])
                wih_t = full
            whh_t = jnp.zeros((h_pad, 4 * h_pad), jnp.float32)
            whh_t = whh_t.at[0:H].set(_pack_gate_cols(jnp.transpose(w_hh), H, h_pad))
            b = _pack_gate_cols((b_ih + b_hh)[None, :], H, h_pad)[0]   # (4*h_pad,)

            w_ih_t.append(wih_t)
            w_hh_t.append(whh_t)
            bias.append(b)
        layers.append(dict(
            w_ih_t=jnp.stack(w_ih_t).astype(jnp.bfloat16),   # (2, K_in, 4*h_pad) bf16
            w_hh_t=jnp.stack(w_hh_t).astype(jnp.bfloat16),   # (2, h_pad, 4*h_pad) bf16
            bias=jnp.stack(bias),                            # (2, 4*h_pad) f32
        ))

    gamma = jnp.zeros((1, f_pad), jnp.float32).at[0, :2 * H].set(1.0)
    beta = jnp.zeros((1, f_pad), jnp.float32)
    return dict(embedding=emb, layers=layers, ln_gamma=gamma, ln_beta=beta)


def bilstm_forward(params, token_ids, *, hidden, t_chunk=128, unroll=8):
    """token_ids: (B, T) int32 -> (B, T, 2*hidden) f32."""
    B, T = token_ids.shape
    H = hidden
    h_pad = params["layers"][0]["w_hh_t"].shape[1]
    B_pad = _round_up(B, 8)                      # fill f32 sublanes in the recurrence

    # Chunk the time axis; shrink until the double-buffered bf16 block footprint fits
    # comfortably on every generation (binding constraint: v7x's 64 MiB per-TC VMEM).
    tc = max(1, min(t_chunk, T))
    while tc > 8 and 2 * tc * B_pad * 5 * h_pad * 2 > (24 << 20):
        tc //= 2
    T_pad = pl.cdiv(T, tc) * tc

    # Gather embeddings directly in (T, B, E) order; pad batch to B_pad.
    x = jnp.take(params["embedding"], jnp.transpose(token_ids), axis=0)   # (T, B, E)
    if B_pad != B:
        x = jnp.pad(x, ((0, 0), (0, B_pad - B), (0, 0)))
    x2 = x.reshape(T * B_pad, -1).astype(jnp.bfloat16)                    # (T*B_pad, E)

    y = None
    for li, layer in enumerate(params["layers"]):
        w_ih_t = layer["w_ih_t"]      # (2, K_in, 4*h_pad) bf16
        bias = layer["bias"]          # (2, 4*h_pad) f32
        if li == 0:
            inp = x2
        else:
            # Previous layer output stays stacked as (2, T_pad, B_pad, h_pad) bf16;
            # concat the direction halves along lanes for one big contiguous MXU matmul.
            inp = jnp.concatenate(
                [y[0, :T].reshape(T * B_pad, h_pad),
                 y[1, :T].reshape(T * B_pad, h_pad)], axis=-1)            # (M, 2*h_pad)
        gx_dirs = []
        for d in range(2):
            g = jnp.dot(inp, w_ih_t[d], preferred_element_type=jnp.float32)
            g = (g + bias[d]).astype(jnp.bfloat16)
            gx_dirs.append(g.reshape(T, B_pad, 4 * h_pad))
        gx = jnp.stack(gx_dirs)                                           # (2,T,B_pad,4*h_pad)
        if T_pad != T:
            # NOTE: time padding MUST happen after the bias fold, so pad rows are exact
            # zeros; with zero gates the backward direction provably keeps h = c = 0
            # through the pad region (f*c + i*tanh(0) = 0, o*tanh(0) = 0).
            gx = jnp.pad(gx, ((0, 0), (0, T_pad - T), (0, 0), (0, 0)))
        y = bilstm_layer(gx, layer["w_hh_t"], h_pad=h_pad, t_chunk=tc, unroll=unroll)
        # TODO(synk): nn.LSTM inter-layer dropout (p=0.1) is training-only; omitted (eval).

    # Single relayout in XLA: merge direction halves + (T,B)->(B,T) BEFORE LayerNorm,
    # presenting LN with a lane-dense (rows, 2H padded to 128) slab.
    y_real = y[:, :T, :B, :H]                                             # (2, T, B, H)
    merged = jnp.transpose(y_real, (2, 1, 0, 3)).reshape(B * T, 2 * H)    # bf16
    f_pad = params["ln_gamma"].shape[-1]
    if f_pad != 2 * H:
        merged = jnp.pad(merged, ((0, 0), (0, f_pad - 2 * H)))
    ln = layer_norm_rows(merged, params["ln_gamma"], params["ln_beta"], feat=2 * H)
    return ln[:, :2 * H].reshape(B, T, 2 * H)


if __name__ == "__main__":
    # Small shapes consistent with the module's forward.
    batch, seq = 2, 8
    vocabsize, embed_dim = 50, 32
    lstm_hidden_dim, lstm_num_layers = 32, 2

    key = jax.random.PRNGKey(0)
    k_tok, k_par = jax.random.split(key)
    token_ids = jax.random.randint(k_tok, (batch, seq), 0, vocabsize, dtype=jnp.int32)
    params = init_params(k_par, vocabsize, embed_dim, lstm_hidden_dim, lstm_num_layers)

    fwd = jax.jit(functools.partial(bilstm_forward, hidden=lstm_hidden_dim // 2))
    out = fwd(params, token_ids)
    jax.block_until_ready(out)
    assert out.shape == (batch, seq, lstm_hidden_dim)
    assert out.dtype == jnp.float32
    print("KERNEL_OK")
</pallas_src>

<mosaic_0001>
module attributes {stable_mosaic.version = 11 : i64} {
  func.func @_bilstm_rec_kernel(%arg0: i32, %arg1: i32, %arg2: memref<1x8x8x512xbf16, #tpu.memory_space<vmem>>, %arg3: memref<1x128x512xbf16, #tpu.memory_space<vmem>>, %arg4: memref<1x8x8x128xbf16, #tpu.memory_space<vmem>>, %arg5: memref<8x128xf32, #tpu.memory_space<vmem>>, %arg6: memref<8x128xf32, #tpu.memory_space<vmem>>) attributes {dimension_semantics = [#tpu.dimension_semantics<parallel>, #tpu.dimension_semantics<arbitrary>], iteration_bounds = array<i64: 2, 1>, scalar_prefetch = 0 : i64, scratch_operands = 2 : i64, tpu.core_type = #tpu.core_type<tc>, window_params = [{transform_indices = @transform_0, window_bounds = array<i64: 1, 8, 8, 512>}, {transform_indices = @transform_1, window_bounds = array<i64: 1, 128, 512>}, {transform_indices = @transform_2, window_bounds = array<i64: 1, 8, 8, 128>}]} {
    %c0_i32 = arith.constant 0 : i32
    %0 = arith.cmpi eq, %arg1, %c0_i32 : i32
    %1 = arith.extui %0 : i1 to i32
    %c0_i32_0 = arith.constant 0 : i32
    %2 = arith.cmpi ne, %1, %c0_i32_0 : i32
    scf.if %2 {
      %cst = arith.constant 0.000000e+00 : f32
      %9 = vector.broadcast %cst : f32 to vector<8x128xf32>
      %c0 = arith.constant 0 : index
      %c0_4 = arith.constant 0 : index
      %10 = vector.load %arg5[%c0, %c0_4] : memref<8x128xf32, #tpu.memory_space<vmem>>, vector<8x128xf32>
      tpu.vector_store %arg5[%c0, %c0_4], %9 {strides = array<i32>} : memref<8x128xf32, #tpu.memory_space<vmem>>, vector<8x128xf32>,
      %cst_5 = arith.constant 0.000000e+00 : f32
      %11 = vector.broadcast %cst_5 : f32 to vector<8x128xf32>
      %c0_6 = arith.constant 0 : index
      %c0_7 = arith.constant 0 : index
      %12 = vector.load %arg6[%c0_6, %c0_7] : memref<8x128xf32, #tpu.memory_space<vmem>>, vector<8x128xf32>
      tpu.vector_store %arg6[%c0_6, %c0_7], %11 {strides = array<i32>} : memref<8x128xf32, #tpu.memory_space<vmem>>, vector<8x128xf32>,
    } else {
    }
    %c0_i32_1 = arith.constant 0 : i32
    %3 = arith.cmpi eq, %arg0, %c0_i32_1 : i32
    %4 = arith.extui %3 : i1 to i32
    %c0_i32_2 = arith.constant 0 : i32
    %5 = arith.cmpi ne, %4, %c0_i32_2 : i32
    scf.if %5 {
      %c0 = arith.constant 0 : index
      %c0_4 = arith.constant 0 : index
      %9 = vector.load %arg5[%c0, %c0_4] : memref<8x128xf32, #tpu.memory_space<vmem>>, vector<8x128xf32>
      %c0_5 = arith.constant 0 : index
      %c0_6 = arith.constant 0 : index
      %10 = vector.load %arg6[%c0_5, %c0_6] : memref<8x128xf32, #tpu.memory_space<vmem>>, vector<8x128xf32>
      %c0_7 = arith.constant 0 : index
      %c0_8 = arith.constant 0 : index
      %c0_9 = arith.constant 0 : index
      %c0_10 = arith.constant 0 : index
      %11 = vector.load %arg2[%c0_7, %c0_8, %c0_9, %c0_10] : memref<1x8x8x512xbf16, #tpu.memory_space<vmem>>, vector<1x1x8x512xbf16>
      %12 = vector.shape_cast %11 : vector<1x1x8x512xbf16> to vector<8x512xbf16>
      %13 = arith.extf %12 : vector<8x512xbf16> to vector<8x512xf32>
      %14 = arith.truncf %9 : vector<8x128xf32> to vector<8x128xbf16>
      %c0_11 = arith.constant 0 : index
      %c0_12 = arith.constant 0 : index
      %c0_13 = arith.constant 0 : index
      %15 = vector.load %arg3[%c0_11, %c0_12, %c0_13] : memref<1x128x512xbf16, #tpu.memory_space<vmem>>, vector<1x128x512xbf16>
      %16 = vector.shape_cast %15 : vector<1x128x512xbf16> to vector<128x512xbf16>
      %cst = arith.constant dense<0.000000e+00> : vector<8x512xf32>
      %17 = tpu.matmul %14, %16, %cst {dimension_numbers = #tpu.dot_dimension_numbers<[1], [0], [0], [1], [0, 0, 1, 1], [], []>} : vector<8x128xbf16>, vector<128x512xbf16>, vector<8x512xf32> -> vector<8x512xf32>
      %18 = arith.addf %13, %17 : vector<8x512xf32>
      %19 = vector.extract_strided_slice %18 {offsets = [0, 0], sizes = [8, 384], strides = [1, 1]} : vector<8x512xf32> to vector<8x384xf32>
      %20 = arith.negf %19 : vector<8x384xf32>
      %21 = math.exp %20 : vector<8x384xf32>
      %cst_14 = arith.constant 1.000000e+00 : f32
      %22 = vector.broadcast %cst_14 : f32 to vector<8x384xf32>
      %23 = arith.addf %22, %21 : vector<8x384xf32>
      %24 = arith.divf %22, %23 : vector<8x384xf32>
      %25 = vector.extract_strided_slice %18 {offsets = [0, 384], sizes = [8, 128], strides = [1, 1]} : vector<8x512xf32> to vector<8x128xf32>
      %26 = math.tanh %25 : vector<8x128xf32>
      %27 = vector.extract_strided_slice %24 {offsets = [0, 0], sizes = [8, 128], strides = [1, 1]} : vector<8x384xf32> to vector<8x128xf32>
      %28 = vector.extract_strided_slice %24 {offsets = [0, 128], sizes = [8, 128], strides = [1, 1]} : vector<8x384xf32> to vector<8x128xf32>
      %29 = vector.extract_strided_slice %24 {offsets = [0, 256], sizes = [8, 128], strides = [1, 1]} : vector<8x384xf32> to vector<8x128xf32>
      %30 = arith.mulf %28, %10 : vector<8x128xf32>
      %31 = arith.mulf %27, %26 : vector<8x128xf32>
      %32 = arith.addf %30, %31 : vector<8x128xf32>
      %33 = math.tanh %32 : vector<8x128xf32>
      %34 = arith.mulf %29, %33 : vector<8x128xf32>
      %35 = arith.truncf %34 : vector<8x128xf32> to vector<8x128xbf16>
      %c0_15 = arith.constant 0 : index
      %c0_16 = arith.constant 0 : index
      %c0_17 = arith.constant 0 : index
      %c0_18 = arith.constant 0 : index
      %36 = vector.load %arg4[%c0_15, %c0_16, %c0_17, %c0_18] : memref<1x8x8x128xbf16, #tpu.memory_space<vmem>>, vector<1x1x8x128xbf16>
      %37 = vector.shape_cast %36 : vector<1x1x8x128xbf16> to vector<8x128xbf16>
      %38 = vector.shape_cast %35 : vector<8x128xbf16> to vector<1x1x8x128xbf16>
      tpu.vector_store %arg4[%c0_15, %c0_16, %c0_17, %c0_18], %38 {strides = array<i32>} : memref<1x8x8x128xbf16, #tpu.memory_space<vmem>>, vector<1x1x8x128xbf16>,
      %c0_19 = arith.constant 0 : index
      %c1 = arith.constant 1 : index
      %c0_20 = arith.constant 0 : index
      %c0_21 = arith.constant 0 : index
      %39 = vector.load %arg2[%c0_19, %c1, %c0_20, %c0_21] : memref<1x8x8x512xbf16, #tpu.memory_space<vmem>>, vector<1x1x8x512xbf16>
      %40 = vector.shape_cast %39 : vector<1x1x8x512xbf16> to vector<8x512xbf16>
      %41 = arith.extf %40 : vector<8x512xbf16> to vector<8x512xf32>
      %42 = arith.truncf %34 : vector<8x128xf32> to vector<8x128xbf16>
      %c0_22 = arith.constant 0 : index
      %c0_23 = arith.constant 0 : index
      %c0_24 = arith.constant 0 : index
      %43 = vector.load %arg3[%c0_22, %c0_23, %c0_24] : memref<1x128x512xbf16, #tpu.memory_space<vmem>>, vector<1x128x512xbf16>
      %44 = vector.shape_cast %43 : vector<1x128x512xbf16> to vector<128x512xbf16>
      %cst_25 = arith.constant dense<0.000000e+00> : vector<8x512xf32>
      %45 = tpu.matmul %42, %44, %cst_25 {dimension_numbers = #tpu.dot_dimension_numbers<[1], [0], [0], [1], [0, 0, 1, 1], [], []>} : vector<8x128xbf16>, vector<128x512xbf16>, vector<8x512xf32> -> vector<8x512xf32>
      %46 = arith.addf %41, %45 : vector<8x512xf32>
      %47 = vector.extract_strided_slice %46 {offsets = [0, 0], sizes = [8, 384], strides = [1, 1]} : vector<8x512xf32> to vector<8x384xf32>
      %48 = arith.negf %47 : vector<8x384xf32>
      %49 = math.exp %48 : vector<8x384xf32>
      %cst_26 = arith.constant 1.000000e+00 : f32
      %50 = vector.broadcast %cst_26 : f32 to vector<8x384xf32>
      %51 = arith.addf %50, %49 : vector<8x384xf32>
      %52 = arith.divf %50, %51 : vector<8x384xf32>
      %53 = vector.extract_strided_slice %46 {offsets = [0, 384], sizes = [8, 128], strides = [1, 1]} : vector<8x512xf32> to vector<8x128xf32>
      %54 = math.tanh %53 : vector<8x128xf32>
      %55 = vector.extract_strided_slice %52 {offsets = [0, 0], sizes = [8, 128], strides = [1, 1]} : vector<8x384xf32> to vector<8x128xf32>
      %56 = vector.extract_strided_slice %52 {offsets = [0, 128], sizes = [8, 128], strides = [1, 1]} : vector<8x384xf32> to vector<8x128xf32>
      %57 = vector.extract_strided_slice %52 {offsets = [0, 256], sizes = [8, 128], strides = [1, 1]} : vector<8x384xf32> to vector<8x128xf32>
      %58 = arith.mulf %56, %32 : vector<8x128xf32>
      %59 = arith.mulf %55, %54 : vector<8x128xf32>
      %60 = arith.addf %58, %59 : vector<8x128xf32>
      %61 = math.tanh %60 : vector<8x128xf32>
      %62 = arith.mulf %57, %61 : vector<8x128xf32>
      %63 = arith.truncf %62 : vector<8x128xf32> to vector<8x128xbf16>
      %c0_27 = arith.constant 0 : index
      %c1_28 = arith.constant 1 : index
      %c0_29 = arith.constant 0 : index
      %c0_30 = arith.constant 0 : index
      %64 = vector.load %arg4[%c0_27, %c1_28, %c0_29, %c0_30] : memref<1x8x8x128xbf16, #tpu.memory_space<vmem>>, vector<1x1x8x128xbf16>
      %65 = vector.shape_cast %64 : vector<1x1x8x128xbf16> to vector<8x128xbf16>
      %66 = vector.shape_cast %63 : vector<8x128xbf16> to vector<1x1x8x128xbf16>
      tpu.vector_store %arg4[%c0_27, %c1_28, %c0_29, %c0_30], %66 {strides = array<i32>} : memref<1x8x8x128xbf16, #tpu.memory_space<vmem>>, vector<1x1x8x128xbf16>,
      %c0_31 = arith.constant 0 : index
      %c2 = arith.constant 2 : index
      %c0_32 = arith.constant 0 : index
      %c0_33 = arith.constant 0 : index
      %67 = vector.load %arg2[%c0_31, %c2, %c0_32, %c0_33] : memref<1x8x8x512xbf16, #tpu.memory_space<vmem>>, vector<1x1x8x512xbf16>
      %68 = vector.shape_cast %67 : vector<1x1x8x512xbf16> to vector<8x512xbf16>
      %69 = arith.extf %68 : vector<8x512xbf16> to vector<8x512xf32>
      %70 = arith.truncf %62 : vector<8x128xf32> to vector<8x128xbf16>
      %c0_34 = arith.constant 0 : index
      %c0_35 = arith.constant 0 : index
      %c0_36 = arith.constant 0 : index
      %71 = vector.load %arg3[%c0_34, %c0_35, %c0_36] : memref<1x128x512xbf16, #tpu.memory_space<vmem>>, vector<1x128x512xbf16>
      %72 = vector.shape_cast %71 : vector<1x128x512xbf16> to vector<128x512xbf16>
      %cst_37 = arith.constant dense<0.000000e+00> : vector<8x512xf32>
      %73 = tpu.matmul %70, %72, %cst_37 {dimension_numbers = #tpu.dot_dimension_numbers<[1], [0], [0], [1], [0, 0, 1, 1], [], []>} : vector<8x128xbf16>, vector<128x512xbf16>, vector<8x512xf32> -> vector<8x512xf32>
      %74 = arith.addf %69, %73 : vector<8x512xf32>
      %75 = vector.extract_strided_slice %74 {offsets = [0, 0], sizes = [8, 384], strides = [1, 1]} : vector<8x512xf32> to vector<8x384xf32>
      %76 = arith.negf %75 : vector<8x384xf32>
      %77 = math.exp %76 : vector<8x384xf32>
      %cst_38 = arith.constant 1.000000e+00 : f32
      %78 = vector.broadcast %cst_38 : f32 to vector<8x384xf32>
      %79 = arith.addf %78, %77 : vector<8x384xf32>
      %80 = arith.divf %78, %79 : vector<8x384xf32>
      %81 = vector.extract_strided_slice %74 {offsets = [0, 384], sizes = [8, 128], strides = [1, 1]} : vector<8x512xf32> to vector<8x128xf32>
      %82 = math.tanh %81 : vector<8x128xf32>
      %83 = vector.extract_strided_slice %80 {offsets = [0, 0], sizes = [8, 128], strides = [1, 1]} : vector<8x384xf32> to vector<8x128xf32>
      %84 = vector.extract_strided_slice %80 {offsets = [0, 128], sizes = [8, 128], strides = [1, 1]} : vector<8x384xf32> to vector<8x128xf32>
      %85 = vector.extract_strided_slice %80 {offsets = [0, 256], sizes = [8, 128], strides = [1, 1]} : vector<8x384xf32> to vector<8x128xf32>
      %86 = arith.mulf %84, %60 : vector<8x128xf32>
      %87 = arith.mulf %83, %82 : vector<8x128xf32>
      %88 = arith.addf %86, %87 : vector<8x128xf32>
      %89 = math.tanh %88 : vector<8x128xf32>
      %90 = arith.mulf %85, %89 : vector<8x128xf32>
      %91 = arith.truncf %90 : vector<8x128xf32> to vector<8x128xbf16>
      %c0_39 = arith.constant 0 : index
      %c2_40 = arith.constant 2 : index
      %c0_41 = arith.constant 0 : index
      %c0_42 = arith.constant 0 : index
      %92 = vector.load %arg4[%c0_39, %c2_40, %c0_41, %c0_42] : memref<1x8x8x128xbf16, #tpu.memory_space<vmem>>, vector<1x1x8x128xbf16>
      %93 = vector.shape_cast %92 : vector<1x1x8x128xbf16> to vector<8x128xbf16>
      %94 = vector.shape_cast %91 : vector<8x128xbf16> to vector<1x1x8x128xbf16>
      tpu.vector_store %arg4[%c0_39, %c2_40, %c0_41, %c0_42], %94 {strides = array<i32>} : memref<1x8x8x128xbf16, #tpu.memory_space<vmem>>, vector<1x1x8x128xbf16>,
      %c0_43 = arith.constant 0 : index
      %c3 = arith.constant 3 : index
      %c0_44 = arith.constant 0 : index
      %c0_45 = arith.constant 0 : index
      %95 = vector.load %arg2[%c0_43, %c3, %c0_44, %c0_45] : memref<1x8x8x512xbf16, #tpu.memory_space<vmem>>, vector<1x1x8x512xbf16>
      %96 = vector.shape_cast %95 : vector<1x1x8x512xbf16> to vector<8x512xbf16>
      %97 = arith.extf %96 : vector<8x512xbf16> to vector<8x512xf32>
      %98 = arith.truncf %90 : vector<8x128xf32> to vector<8x128xbf16>
      %c0_46 = arith.constant 0 : index
      %c0_47 = arith.constant 0 : index
      %c0_48 = arith.constant 0 : index
      %99 = vector.load %arg3[%c0_46, %c0_47, %c0_48] : memref<1x128x512xbf16, #tpu.memory_space<vmem>>, vector<1x128x512xbf16>
      %100 = vector.shape_cast %99 : vector<1x128x512xbf16> to vector<128x512xbf16>
      %cst_49 = arith.constant dense<0.000000e+00> : vector<8x512xf32>
      %101 = tpu.matmul %98, %100, %cst_49 {dimension_numbers = #tpu.dot_dimension_numbers<[1], [0], [0], [1], [0, 0, 1, 1], [], []>} : vector<8x128xbf16>, vector<128x512xbf16>, vector<8x512xf32> -> vector<8x512xf32>
      %102 = arith.addf %97, %101 : vector<8x512xf32>
      %103 = vector.extract_strided_slice %102 {offsets = [0, 0], sizes = [8, 384], strides = [1, 1]} : vector<8x512xf32> to vector<8x384xf32>
      %104 = arith.negf %103 : vector<8x384xf32>
      %105 = math.exp %104 : vector<8x384xf32>
      %cst_50 = arith.constant 1.000000e+00 : f32
      %106 = vector.broadcast %cst_50 : f32 to vector<8x384xf32>
      %107 = arith.addf %106, %105 : vector<8x384xf32>
      %108 = arith.divf %106, %107 : vector<8x384xf32>
      %109 = vector.extract_strided_slice %102 {offsets = [0, 384], sizes = [8, 128], strides = [1, 1]} : vector<8x512xf32> to vector<8x128xf32>
      %110 = math.tanh %109 : vector<8x128xf32>
      %111 = vector.extract_strided_slice %108 {offsets = [0, 0], sizes = [8, 128], strides = [1, 1]} : vector<8x384xf32> to vector<8x128xf32>
      %112 = vector.extract_strided_slice %108 {offsets = [0, 128], sizes = [8, 128], strides = [1, 1]} : vector<8x384xf32> to vector<8x128xf32>
      %113 = vector.extract_strided_slice %108 {offsets = [0, 256], sizes = [8, 128], strides = [1, 1]} : vector<8x384xf32> to vector<8x128xf32>
      %114 = arith.mulf %112, %88 : vector<8x128xf32>
      %115 = arith.mulf %111, %110 : vector<8x128xf32>
      %116 = arith.addf %114, %115 : vector<8x128xf32>
      %117 = math.tanh %116 : vector<8x128xf32>
      %118 = arith.mulf %113, %117 : vector<8x128xf32>
      %119 = arith.truncf %118 : vector<8x128xf32> to vector<8x128xbf16>
      %c0_51 = arith.constant 0 : index
      %c3_52 = arith.constant 3 : index
      %c0_53 = arith.constant 0 : index
      %c0_54 = arith.constant 0 : index
      %120 = vector.load %arg4[%c0_51, %c3_52, %c0_53, %c0_54] : memref<1x8x8x128xbf16, #tpu.memory_space<vmem>>, vector<1x1x8x128xbf16>
      %121 = vector.shape_cast %120 : vector<1x1x8x128xbf16> to vector<8x128xbf16>
      %122 = vector.shape_cast %119 : vector<8x128xbf16> to vector<1x1x8x128xbf16>
      tpu.vector_store %arg4[%c0_51, %c3_52, %c0_53, %c0_54], %122 {strides = array<i32>} : memref<1x8x8x128xbf16, #tpu.memory_space<vmem>>, vector<1x1x8x128xbf16>,
      %c0_55 = arith.constant 0 : index
      %c4 = arith.constant 4 : index
      %c0_56 = arith.constant 0 : index
      %c0_57 = arith.constant 0 : index
      %123 = vector.load %arg2[%c0_55, %c4, %c0_56, %c0_57] : memref<1x8x8x512xbf16, #tpu.memory_space<vmem>>, vector<1x1x8x512xbf16>
      %124 = vector.shape_cast %123 : vector<1x1x8x512xbf16> to vector<8x512xbf16>
      %125 = arith.extf %124 : vector<8x512xbf16> to vector<8x512xf32>
      %126 = arith.truncf %118 : vector<8x128xf32> to vector<8x128xbf16>
      %c0_58 = arith.constant 0 : index
      %c0_59 = arith.constant 0 : index
      %c0_60 = arith.constant 0 : index
      %127 = vector.load %arg3[%c0_58, %c0_59, %c0_60] : memref<1x128x512xbf16, #tpu.memory_space<vmem>>, vector<1x128x512xbf16>
      %128 = vector.shape_cast %127 : vector<1x128x512xbf16> to vector<128x512xbf16>
      %cst_61 = arith.constant dense<0.000000e+00> : vector<8x512xf32>
      %129 = tpu.matmul %126, %128, %cst_61 {dimension_numbers = #tpu.dot_dimension_numbers<[1], [0], [0], [1], [0, 0, 1, 1], [], []>} : vector<8x128xbf16>, vector<128x512xbf16>, vector<8x512xf32> -> vector<8x512xf32>
      %130 = arith.addf %125, %129 : vector<8x512xf32>
      %131 = vector.extract_strided_slice %130 {offsets = [0, 0], sizes = [8, 384], strides = [1, 1]} : vector<8x512xf32> to vector<8x384xf32>
      %132 = arith.negf %131 : vector<8x384xf32>
      %133 = math.exp %132 : vector<8x384xf32>
      %cst_62 = arith.constant 1.000000e+00 : f32
      %134 = vector.broadcast %cst_62 : f32 to vector<8x384xf32>
      %135 = arith.addf %134, %133 : vector<8x384xf32>
      %136 = arith.divf %134, %135 : vector<8x384xf32>
      %137 = vector.extract_strided_slice %130 {offsets = [0, 384], sizes = [8, 128], strides = [1, 1]} : vector<8x512xf32> to vector<8x128xf32>
      %138 = math.tanh %137 : vector<8x128xf32>
      %139 = vector.extract_strided_slice %136 {offsets = [0, 0], sizes = [8, 128], strides = [1, 1]} : vector<8x384xf32> to vector<8x128xf32>
      %140 = vector.extract_strided_slice %136 {offsets = [0, 128], sizes = [8, 128], strides = [1, 1]} : vector<8x384xf32> to vector<8x128xf32>
      %141 = vector.extract_strided_slice %136 {offsets = [0, 256], sizes = [8, 128], strides = [1, 1]} : vector<8x384xf32> to vector<8x128xf32>
      %142 = arith.mulf %140, %116 : vector<8x128xf32>
      %143 = arith.mulf %139, %138 : vector<8x128xf32>
      %144 = arith.addf %142, %143 : vector<8x128xf32>
      %145 = math.tanh %144 : vector<8x128xf32>
      %146 = arith.mulf %141, %145 : vector<8x128xf32>
      %147 = arith.truncf %146 : vector<8x128xf32> to vector<8x128xbf16>
      %c0_63 = arith.constant 0 : index
      %c4_64 = arith.constant 4 : index
      %c0_65 = arith.constant 0 : index
      %c0_66 = arith.constant 0 : index
      %148 = vector.load %arg4[%c0_63, %c4_64, %c0_65, %c0_66] : memref<1x8x8x128xbf16, #tpu.memory_space<vmem>>, vector<1x1x8x128xbf16>
      %149 = vector.shape_cast %148 : vector<1x1x8x128xbf16> to vector<8x128xbf16>
      %150 = vector.shape_cast %147 : vector<8x128xbf16> to vector<1x1x8x128xbf16>
      tpu.vector_store %arg4[%c0_63, %c4_64, %c0_65, %c0_66], %150 {strides = array<i32>} : memref<1x8x8x128xbf16, #tpu.memory_space<vmem>>, vector<1x1x8x128xbf16>,
      %c0_67 = arith.constant 0 : index
      %c5 = arith.constant 5 : index
      %c0_68 = arith.constant 0 : index
      %c0_69 = arith.constant 0 : index
      %151 = vector.load %arg2[%c0_67, %c5, %c0_68, %c0_69] : memref<1x8x8x512xbf16, #tpu.memory_space<vmem>>, vector<1x1x8x512xbf16>
      %152 = vector.shape_cast %151 : vector<1x1x8x512xbf16> to vector<8x512xbf16>
      %153 = arith.extf %152 : vector<8x512xbf16> to vector<8x512xf32>
      %154 = arith.truncf %146 : vector<8x128xf32> to vector<8x128xbf16>
      %c0_70 = arith.constant 0 : index
      %c0_71 = arith.constant 0 : index
      %c0_72 = arith.constant 0 : index
      %155 = vector.load %arg3[%c0_70, %c0_71, %c0_72] : memref<1x128x512xbf16, #tpu.memory_space<vmem>>, vector<1x128x512xbf16>
      %156 = vector.shape_cast %155 : vector<1x128x512xbf16> to vector<128x512xbf16>
      %cst_73 = arith.constant dense<0.000000e+00> : vector<8x512xf32>
      %157 = tpu.matmul %154, %156, %cst_73 {dimension_numbers = #tpu.dot_dimension_numbers<[1], [0], [0], [1], [0, 0, 1, 1], [], []>} : vector<8x128xbf16>, vector<128x512xbf16>, vector<8x512xf32> -> vector<8x512xf32>
      %158 = arith.addf %153, %157 : vector<8x512xf32>
      %159 = vector.extract_strided_slice %158 {offsets = [0, 0], sizes = [8, 384], strides = [1, 1]} : vector<8x512xf32> to vector<8x384xf32>
      %160 = arith.negf %159 : vector<8x384xf32>
      %161 = math.exp %160 : vector<8x384xf32>
      %cst_74 = arith.constant 1.000000e+00 : f32
      %162 = vector.broadcast %cst_74 : f32 to vector<8x384xf32>
      %163 = arith.addf %162, %161 : vector<8x384xf32>
      %164 = arith.divf %162, %163 : vector<8x384xf32>
      %165 = vector.extract_strided_slice %158 {offsets = [0, 384], sizes = [8, 128], strides = [1, 1]} : vector<8x512xf32> to vector<8x128xf32>
      %166 = math.tanh %165 : vector<8x128xf32>
      %167 = vector.extract_strided_slice %164 {offsets = [0, 0], sizes = [8, 128], strides = [1, 1]} : vector<8x384xf32> to vector<8x128xf32>
      %168 = vector.extract_strided_slice %164 {offsets = [0, 128], sizes = [8, 128], strides = [1, 1]} : vector<8x384xf32> to vector<8x128xf32>
      %169 = vector.extract_strided_slice %164 {offsets = [0, 256], sizes = [8, 128], strides = [1, 1]} : vector<8x384xf32> to vector<8x128xf32>
      %170 = arith.mulf %168, %144 : vector<8x128xf32>
      %171 = arith.mulf %167, %166 : vector<8x128xf32>
      %172 = arith.addf %170, %171 : vector<8x128xf32>
      %173 = math.tanh %172 : vector<8x128xf32>
      %174 = arith.mulf %169, %173 : vector<8x128xf32>
      %175 = arith.truncf %174 : vector<8x128xf32> to vector<8x128xbf16>
      %c0_75 = arith.constant 0 : index
      %c5_76 = arith.constant 5 : index
      %c0_77 = arith.constant 0 : index
      %c0_78 = arith.constant 0 : index
      %176 = vector.load %arg4[%c0_75, %c5_76, %c0_77, %c0_78] : memref<1x8x8x128xbf16, #tpu.memory_space<vmem>>, vector<1x1x8x128xbf16>
      %177 = vector.shape_cast %176 : vector<1x1x8x128xbf16> to vector<8x128xbf16>
      %178 = vector.shape_cast %175 : vector<8x128xbf16> to vector<1x1x8x128xbf16>
      tpu.vector_store %arg4[%c0_75, %c5_76, %c0_77, %c0_78], %178 {strides = array<i32>} : memref<1x8x8x128xbf16, #tpu.memory_space<vmem>>, vector<1x1x8x128xbf16>,
      %c0_79 = arith.constant 0 : index
      %c6 = arith.constant 6 : index
      %c0_80 = arith.constant 0 : index
      %c0_81 = arith.constant 0 : index
      %179 = vector.load %arg2[%c0_79, %c6, %c0_80, %c0_81] : memref<1x8x8x512xbf16, #tpu.memory_space<vmem>>, vector<1x1x8x512xbf16>
      %180 = vector.shape_cast %179 : vector<1x1x8x512xbf16> to vector<8x512xbf16>
      %181 = arith.extf %180 : vector<8x512xbf16> to vector<8x512xf32>
      %182 = arith.truncf %174 : vector<8x128xf32> to vector<8x128xbf16>
      %c0_82 = arith.constant 0 : index
      %c0_83 = arith.constant 0 : index
      %c0_84 = arith.constant 0 : index
      %183 = vector.load %arg3[%c0_82, %c0_83, %c0_84] : memref<1x128x512xbf16, #tpu.memory_space<vmem>>, vector<1x128x512xbf16>
      %184 = vector.shape_cast %183 : vector<1x128x512xbf16> to vector<128x512xbf16>
      %cst_85 = arith.constant dense<0.000000e+00> : vector<8x512xf32>
      %185 = tpu.matmul %182, %184, %cst_85 {dimension_numbers = #tpu.dot_dimension_numbers<[1], [0], [0], [1], [0, 0, 1, 1], [], []>} : vector<8x128xbf16>, vector<128x512xbf16>, vector<8x512xf32> -> vector<8x512xf32>
      %186 = arith.addf %181, %185 : vector<8x512xf32>
      %187 = vector.extract_strided_slice %186 {offsets = [0, 0], sizes = [8, 384], strides = [1, 1]} : vector<8x512xf32> to vector<8x384xf32>
      %188 = arith.negf %187 : vector<8x384xf32>
      %189 = math.exp %188 : vector<8x384xf32>
      %cst_86 = arith.constant 1.000000e+00 : f32
      %190 = vector.broadcast %cst_86 : f32 to vector<8x384xf32>
      %191 = arith.addf %190, %189 : vector<8x384xf32>
      %192 = arith.divf %190, %191 : vector<8x384xf32>
      %193 = vector.extract_strided_slice %186 {offsets = [0, 384], sizes = [8, 128], strides = [1, 1]} : vector<8x512xf32> to vector<8x128xf32>
      %194 = math.tanh %193 : vector<8x128xf32>
      %195 = vector.extract_strided_slice %192 {offsets = [0, 0], sizes = [8, 128], strides = [1, 1]} : vector<8x384xf32> to vector<8x128xf32>
      %196 = vector.extract_strided_slice %192 {offsets = [0, 128], sizes = [8, 128], strides = [1, 1]} : vector<8x384xf32> to vector<8x128xf32>
      %197 = vector.extract_strided_slice %192 {offsets = [0, 256], sizes = [8, 128], strides = [1, 1]} : vector<8x384xf32> to vector<8x128xf32>
      %198 = arith.mulf %196, %172 : vector<8x128xf32>
      %199 = arith.mulf %195, %194 : vector<8x128xf32>
      %200 = arith.addf %198, %199 : vector<8x128xf32>
      %201 = math.tanh %200 : vector<8x128xf32>
      %202 = arith.mulf %197, %201 : vector<8x128xf32>
      %203 = arith.truncf %202 : vector<8x128xf32> to vector<8x128xbf16>
      %c0_87 = arith.constant 0 : index
      %c6_88 = arith.constant 6 : index
      %c0_89 = arith.constant 0 : index
      %c0_90 = arith.constant 0 : index
      %204 = vector.load %arg4[%c0_87, %c6_88, %c0_89, %c0_90] : memref<1x8x8x128xbf16, #tpu.memory_space<vmem>>, vector<1x1x8x128xbf16>
      %205 = vector.shape_cast %204 : vector<1x1x8x128xbf16> to vector<8x128xbf16>
      %206 = vector.shape_cast %203 : vector<8x128xbf16> to vector<1x1x8x128xbf16>
      tpu.vector_store %arg4[%c0_87, %c6_88, %c0_89, %c0_90], %206 {strides = array<i32>} : memref<1x8x8x128xbf16, #tpu.memory_space<vmem>>, vector<1x1x8x128xbf16>,
      %c0_91 = arith.constant 0 : index
      %c7 = arith.constant 7 : index
      %c0_92 = arith.constant 0 : index
      %c0_93 = arith.constant 0 : index
      %207 = vector.load %arg2[%c0_91, %c7, %c0_92, %c0_93] : memref<1x8x8x512xbf16, #tpu.memory_space<vmem>>, vector<1x1x8x512xbf16>
      %208 = vector.shape_cast %207 : vector<1x1x8x512xbf16> to vector<8x512xbf16>
      %209 = arith.extf %208 : vector<8x512xbf16> to vector<8x512xf32>
      %210 = arith.truncf %202 : vector<8x128xf32> to vector<8x128xbf16>
      %c0_94 = arith.constant 0 : index
      %c0_95 = arith.constant 0 : index
      %c0_96 = arith.constant 0 : index
      %211 = vector.load %arg3[%c0_94, %c0_95, %c0_96] : memref<1x128x512xbf16, #tpu.memory_space<vmem>>, vector<1x128x512xbf16>
      %212 = vector.shape_cast %211 : vector<1x128x512xbf16> to vector<128x512xbf16>
      %cst_97 = arith.constant dense<0.000000e+00> : vector<8x512xf32>
      %213 = tpu.matmul %210, %212, %cst_97 {dimension_numbers = #tpu.dot_dimension_numbers<[1], [0], [0], [1], [0, 0, 1, 1], [], []>} : vector<8x128xbf16>, vector<128x512xbf16>, vector<8x512xf32> -> vector<8x512xf32>
      %214 = arith.addf %209, %213 : vector<8x512xf32>
      %215 = vector.extract_strided_slice %214 {offsets = [0, 0], sizes = [8, 384], strides = [1, 1]} : vector<8x512xf32> to vector<8x384xf32>
      %216 = arith.negf %215 : vector<8x384xf32>
      %217 = math.exp %216 : vector<8x384xf32>
      %cst_98 = arith.constant 1.000000e+00 : f32
      %218 = vector.broadcast %cst_98 : f32 to vector<8x384xf32>
      %219 = arith.addf %218, %217 : vector<8x384xf32>
      %220 = arith.divf %218, %219 : vector<8x384xf32>
      %221 = vector.extract_strided_slice %214 {offsets = [0, 384], sizes = [8, 128], strides = [1, 1]} : vector<8x512xf32> to vector<8x128xf32>
      %222 = math.tanh %221 : vector<8x128xf32>
      %223 = vector.extract_strided_slice %220 {offsets = [0, 0], sizes = [8, 128], strides = [1, 1]} : vector<8x384xf32> to vector<8x128xf32>
      %224 = vector.extract_strided_slice %220 {offsets = [0, 128], sizes = [8, 128], strides = [1, 1]} : vector<8x384xf32> to vector<8x128xf32>
      %225 = vector.extract_strided_slice %220 {offsets = [0, 256], sizes = [8, 128], strides = [1, 1]} : vector<8x384xf32> to vector<8x128xf32>
      %226 = arith.mulf %224, %200 : vector<8x128xf32>
      %227 = arith.mulf %223, %222 : vector<8x128xf32>
      %228 = arith.addf %226, %227 : vector<8x128xf32>
      %229 = math.tanh %228 : vector<8x128xf32>
      %230 = arith.mulf %225, %229 : vector<8x128xf32>
      %231 = arith.truncf %230 : vector<8x128xf32> to vector<8x128xbf16>
      %c0_99 = arith.constant 0 : index
      %c7_100 = arith.constant 7 : index
      %c0_101 = arith.constant 0 : index
      %c0_102 = arith.constant 0 : index
      %232 = vector.load %arg4[%c0_99, %c7_100, %c0_101, %c0_102] : memref<1x8x8x128xbf16, #tpu.memory_space<vmem>>, vector<1x1x8x128xbf16>
      %233 = vector.shape_cast %232 : vector<1x1x8x128xbf16> to vector<8x128xbf16>
      %234 = vector.shape_cast %231 : vector<8x128xbf16> to vector<1x1x8x128xbf16>
      tpu.vector_store %arg4[%c0_99, %c7_100, %c0_101, %c0_102], %234 {strides = array<i32>} : memref<1x8x8x128xbf16, #tpu.memory_space<vmem>>, vector<1x1x8x128xbf16>,
      %c0_103 = arith.constant 0 : index
      %c0_104 = arith.constant 0 : index
      %235 = vector.load %arg5[%c0_103, %c0_104] : memref<8x128xf32, #tpu.memory_space<vmem>>, vector<8x128xf32>
      tpu.vector_store %arg5[%c0_103, %c0_104], %230 {strides = array<i32>} : memref<8x128xf32, #tpu.memory_space<vmem>>, vector<8x128xf32>,
      %c0_105 = arith.constant 0 : index
      %c0_106 = arith.constant 0 : index
      %236 = vector.load %arg6[%c0_105, %c0_106] : memref<8x128xf32, #tpu.memory_space<vmem>>, vector<8x128xf32>
      tpu.vector_store %arg6[%c0_105, %c0_106], %228 {strides = array<i32>} : memref<8x128xf32, #tpu.memory_space<vmem>>, vector<8x128xf32>,
    } else {
    }
    %c1_i32 = arith.constant 1 : i32
    %6 = arith.cmpi eq, %arg0, %c1_i32 : i32
    %7 = arith.extui %6 : i1 to i32
    %c0_i32_3 = arith.constant 0 : i32
    %8 = arith.cmpi ne, %7, %c0_i32_3 : i32
    scf.if %8 {
      %c0 = arith.constant 0 : index
      %c0_4 = arith.constant 0 : index
      %9 = vector.load %arg5[%c0, %c0_4] : memref<8x128xf32, #tpu.memory_space<vmem>>, vector<8x128xf32>
      %c0_5 = arith.constant 0 : index
      %c0_6 = arith.constant 0 : index
      %10 = vector.load %arg6[%c0_5, %c0_6] : memref<8x128xf32, #tpu.memory_space<vmem>>, vector<8x128xf32>
      %c0_7 = arith.constant 0 : index
      %c7 = arith.constant 7 : index
      %c0_8 = arith.constant 0 : index
      %c0_9 = arith.constant 0 : index
      %11 = vector.load %arg2[%c0_7, %c7, %c0_8, %c0_9] : memref<1x8x8x512xbf16, #tpu.memory_space<vmem>>, vector<1x1x8x512xbf16>
      %12 = vector.shape_cast %11 : vector<1x1x8x512xbf16> to vector<8x512xbf16>
      %13 = arith.extf %12 : vector<8x512xbf16> to vector<8x512xf32>
      %14 = arith.truncf %9 : vector<8x128xf32> to vector<8x128xbf16>
      %c0_10 = arith.constant 0 : index
      %c0_11 = arith.constant 0 : index
      %c0_12 = arith.constant 0 : index
      %15 = vector.load %arg3[%c0_10, %c0_11, %c0_12] : memref<1x128x512xbf16, #tpu.memory_space<vmem>>, vector<1x128x512xbf16>
      %16 = vector.shape_cast %15 : vector<1x128x512xbf16> to vector<128x512xbf16>
      %cst = arith.constant dense<0.000000e+00> : vector<8x512xf32>
      %17 = tpu.matmul %14, %16, %cst {dimension_numbers = #tpu.dot_dimension_numbers<[1], [0], [0], [1], [0, 0, 1, 1], [], []>} : vector<8x128xbf16>, vector<128x512xbf16>, vector<8x512xf32> -> vector<8x512xf32>
      %18 = arith.addf %13, %17 : vector<8x512xf32>
      %19 = vector.extract_strided_slice %18 {offsets = [0, 0], sizes = [8, 384], strides = [1, 1]} : vector<8x512xf32> to vector<8x384xf32>
      %20 = arith.negf %19 : vector<8x384xf32>
      %21 = math.exp %20 : vector<8x384xf32>
      %cst_13 = arith.constant 1.000000e+00 : f32
      %22 = vector.broadcast %cst_13 : f32 to vector<8x384xf32>
      %23 = arith.addf %22, %21 : vector<8x384xf32>
      %24 = arith.divf %22, %23 : vector<8x384xf32>
      %25 = vector.extract_strided_slice %18 {offsets = [0, 384], sizes = [8, 128], strides = [1, 1]} : vector<8x512xf32> to vector<8x128xf32>
      %26 = math.tanh %25 : vector<8x128xf32>
      %27 = vector.extract_strided_slice %24 {offsets = [0, 0], sizes = [8, 128], strides = [1, 1]} : vector<8x384xf32> to vector<8x128xf32>
      %28 = vector.extract_strided_slice %24 {offsets = [0, 128], sizes = [8, 128], strides = [1, 1]} : vector<8x384xf32> to vector<8x128xf32>
      %29 = vector.extract_strided_slice %24 {offsets = [0, 256], sizes = [8, 128], strides = [1, 1]} : vector<8x384xf32> to vector<8x128xf32>
      %30 = arith.mulf %28, %10 : vector<8x128xf32>
      %31 = arith.mulf %27, %26 : vector<8x128xf32>
      %32 = arith.addf %30, %31 : vector<8x128xf32>
      %33 = math.tanh %32 : vector<8x128xf32>
      %34 = arith.mulf %29, %33 : vector<8x128xf32>
      %35 = arith.truncf %34 : vector<8x128xf32> to vector<8x128xbf16>
      %c0_14 = arith.constant 0 : index
      %c7_15 = arith.constant 7 : index
      %c0_16 = arith.constant 0 : index
      %c0_17 = arith.constant 0 : index
      %36 = vector.load %arg4[%c0_14, %c7_15, %c0_16, %c0_17] : memref<1x8x8x128xbf16, #tpu.memory_space<vmem>>, vector<1x1x8x128xbf16>
      %37 = vector.shape_cast %36 : vector<1x1x8x128xbf16> to vector<8x128xbf16>
      %38 = vector.shape_cast %35 : vector<8x128xbf16> to vector<1x1x8x128xbf16>
      tpu.vector_store %arg4[%c0_14, %c7_15, %c0_16, %c0_17], %38 {strides = array<i32>} : memref<1x8x8x128xbf16, #tpu.memory_space<vmem>>, vector<1x1x8x128xbf16>,
      %c0_18 = arith.constant 0 : index
      %c6 = arith.constant 6 : index
      %c0_19 = arith.constant 0 : index
      %c0_20 = arith.constant 0 : index
      %39 = vector.load %arg2[%c0_18, %c6, %c0_19, %c0_20] : memref<1x8x8x512xbf16, #tpu.memory_space<vmem>>, vector<1x1x8x512xbf16>
      %40 = vector.shape_cast %39 : vector<1x1x8x512xbf16> to vector<8x512xbf16>
      %41 = arith.extf %40 : vector<8x512xbf16> to vector<8x512xf32>
      %42 = arith.truncf %34 : vector<8x128xf32> to vector<8x128xbf16>
      %c0_21 = arith.constant 0 : index
      %c0_22 = arith.constant 0 : index
      %c0_23 = arith.constant 0 : index
      %43 = vector.load %arg3[%c0_21, %c0_22, %c0_23] : memref<1x128x512xbf16, #tpu.memory_space<vmem>>, vector<1x128x512xbf16>
      %44 = vector.shape_cast %43 : vector<1x128x512xbf16> to vector<128x512xbf16>
      %cst_24 = arith.constant dense<0.000000e+00> : vector<8x512xf32>
      %45 = tpu.matmul %42, %44, %cst_24 {dimension_numbers = #tpu.dot_dimension_numbers<[1], [0], [0], [1], [0, 0, 1, 1], [], []>} : vector<8x128xbf16>, vector<128x512xbf16>, vector<8x512xf32> -> vector<8x512xf32>
      %46 = arith.addf %41, %45 : vector<8x512xf32>
      %47 = vector.extract_strided_slice %46 {offsets = [0, 0], sizes = [8, 384], strides = [1, 1]} : vector<8x512xf32> to vector<8x384xf32>
      %48 = arith.negf %47 : vector<8x384xf32>
      %49 = math.exp %48 : vector<8x384xf32>
      %cst_25 = arith.constant 1.000000e+00 : f32
      %50 = vector.broadcast %cst_25 : f32 to vector<8x384xf32>
      %51 = arith.addf %50, %49 : vector<8x384xf32>
      %52 = arith.divf %50, %51 : vector<8x384xf32>
      %53 = vector.extract_strided_slice %46 {offsets = [0, 384], sizes = [8, 128], strides = [1, 1]} : vector<8x512xf32> to vector<8x128xf32>
      %54 = math.tanh %53 : vector<8x128xf32>
      %55 = vector.extract_strided_slice %52 {offsets = [0, 0], sizes = [8, 128], strides = [1, 1]} : vector<8x384xf32> to vector<8x128xf32>
      %56 = vector.extract_strided_slice %52 {offsets = [0, 128], sizes = [8, 128], strides = [1, 1]} : vector<8x384xf32> to vector<8x128xf32>
      %57 = vector.extract_strided_slice %52 {offsets = [0, 256], sizes = [8, 128], strides = [1, 1]} : vector<8x384xf32> to vector<8x128xf32>
      %58 = arith.mulf %56, %32 : vector<8x128xf32>
      %59 = arith.mulf %55, %54 : vector<8x128xf32>
      %60 = arith.addf %58, %59 : vector<8x128xf32>
      %61 = math.tanh %60 : vector<8x128xf32>
      %62 = arith.mulf %57, %61 : vector<8x128xf32>
      %63 = arith.truncf %62 : vector<8x128xf32> to vector<8x128xbf16>
      %c0_26 = arith.constant 0 : index
      %c6_27 = arith.constant 6 : index
      %c0_28 = arith.constant 0 : index
      %c0_29 = arith.constant 0 : index
      %64 = vector.load %arg4[%c0_26, %c6_27, %c0_28, %c0_29] : memref<1x8x8x128xbf16, #tpu.memory_space<vmem>>, vector<1x1x8x128xbf16>
      %65 = vector.shape_cast %64 : vector<1x1x8x128xbf16> to vector<8x128xbf16>
      %66 = vector.shape_cast %63 : vector<8x128xbf16> to vector<1x1x8x128xbf16>
      tpu.vector_store %arg4[%c0_26, %c6_27, %c0_28, %c0_29], %66 {strides = array<i32>} : memref<1x8x8x128xbf16, #tpu.memory_space<vmem>>, vector<1x1x8x128xbf16>,
      %c0_30 = arith.constant 0 : index
      %c5 = arith.constant 5 : index
      %c0_31 = arith.constant 0 : index
      %c0_32 = arith.constant 0 : index
      %67 = vector.load %arg2[%c0_30, %c5, %c0_31, %c0_32] : memref<1x8x8x512xbf16, #tpu.memory_space<vmem>>, vector<1x1x8x512xbf16>
      %68 = vector.shape_cast %67 : vector<1x1x8x512xbf16> to vector<8x512xbf16>
      %69 = arith.extf %68 : vector<8x512xbf16> to vector<8x512xf32>
      %70 = arith.truncf %62 : vector<8x128xf32> to vector<8x128xbf16>
      %c0_33 = arith.constant 0 : index
      %c0_34 = arith.constant 0 : index
      %c0_35 = arith.constant 0 : index
      %71 = vector.load %arg3[%c0_33, %c0_34, %c0_35] : memref<1x128x512xbf16, #tpu.memory_space<vmem>>, vector<1x128x512xbf16>
      %72 = vector.shape_cast %71 : vector<1x128x512xbf16> to vector<128x512xbf16>
      %cst_36 = arith.constant dense<0.000000e+00> : vector<8x512xf32>
      %73 = tpu.matmul %70, %72, %cst_36 {dimension_numbers = #tpu.dot_dimension_numbers<[1], [0], [0], [1], [0, 0, 1, 1], [], []>} : vector<8x128xbf16>, vector<128x512xbf16>, vector<8x512xf32> -> vector<8x512xf32>
      %74 = arith.addf %69, %73 : vector<8x512xf32>
      %75 = vector.extract_strided_slice %74 {offsets = [0, 0], sizes = [8, 384], strides = [1, 1]} : vector<8x512xf32> to vector<8x384xf32>
      %76 = arith.negf %75 : vector<8x384xf32>
      %77 = math.exp %76 : vector<8x384xf32>
      %cst_37 = arith.constant 1.000000e+00 : f32
      %78 = vector.broadcast %cst_37 : f32 to vector<8x384xf32>
      %79 = arith.addf %78, %77 : vector<8x384xf32>
      %80 = arith.divf %78, %79 : vector<8x384xf32>
      %81 = vector.extract_strided_slice %74 {offsets = [0, 384], sizes = [8, 128], strides = [1, 1]} : vector<8x512xf32> to vector<8x128xf32>
      %82 = math.tanh %81 : vector<8x128xf32>
      %83 = vector.extract_strided_slice %80 {offsets = [0, 0], sizes = [8, 128], strides = [1, 1]} : vector<8x384xf32> to vector<8x128xf32>
      %84 = vector.extract_strided_slice %80 {offsets = [0, 128], sizes = [8, 128], strides = [1, 1]} : vector<8x384xf32> to vector<8x128xf32>
      %85 = vector.extract_strided_slice %80 {offsets = [0, 256], sizes = [8, 128], strides = [1, 1]} : vector<8x384xf32> to vector<8x128xf32>
      %86 = arith.mulf %84, %60 : vector<8x128xf32>
      %87 = arith.mulf %83, %82 : vector<8x128xf32>
      %88 = arith.addf %86, %87 : vector<8x128xf32>
      %89 = math.tanh %88 : vector<8x128xf32>
      %90 = arith.mulf %85, %89 : vector<8x128xf32>
      %91 = arith.truncf %90 : vector<8x128xf32> to vector<8x128xbf16>
      %c0_38 = arith.constant 0 : index
      %c5_39 = arith.constant 5 : index
      %c0_40 = arith.constant 0 : index
      %c0_41 = arith.constant 0 : index
      %92 = vector.load %arg4[%c0_38, %c5_39, %c0_40, %c0_41] : memref<1x8x8x128xbf16, #tpu.memory_space<vmem>>, vector<1x1x8x128xbf16>
      %93 = vector.shape_cast %92 : vector<1x1x8x128xbf16> to vector<8x128xbf16>
      %94 = vector.shape_cast %91 : vector<8x128xbf16> to vector<1x1x8x128xbf16>
      tpu.vector_store %arg4[%c0_38, %c5_39, %c0_40, %c0_41], %94 {strides = array<i32>} : memref<1x8x8x128xbf16, #tpu.memory_space<vmem>>, vector<1x1x8x128xbf16>,
      %c0_42 = arith.constant 0 : index
      %c4 = arith.constant 4 : index
      %c0_43 = arith.constant 0 : index
      %c0_44 = arith.constant 0 : index
      %95 = vector.load %arg2[%c0_42, %c4, %c0_43, %c0_44] : memref<1x8x8x512xbf16, #tpu.memory_space<vmem>>, vector<1x1x8x512xbf16>
      %96 = vector.shape_cast %95 : vector<1x1x8x512xbf16> to vector<8x512xbf16>
      %97 = arith.extf %96 : vector<8x512xbf16> to vector<8x512xf32>
      %98 = arith.truncf %90 : vector<8x128xf32> to vector<8x128xbf16>
      %c0_45 = arith.constant 0 : index
      %c0_46 = arith.constant 0 : index
      %c0_47 = arith.constant 0 : index
      %99 = vector.load %arg3[%c0_45, %c0_46, %c0_47] : memref<1x128x512xbf16, #tpu.memory_space<vmem>>, vector<1x128x512xbf16>
      %100 = vector.shape_cast %99 : vector<1x128x512xbf16> to vector<128x512xbf16>
      %cst_48 = arith.constant dense<0.000000e+00> : vector<8x512xf32>
      %101 = tpu.matmul %98, %100, %cst_48 {dimension_numbers = #tpu.dot_dimension_numbers<[1], [0], [0], [1], [0, 0, 1, 1], [], []>} : vector<8x128xbf16>, vector<128x512xbf16>, vector<8x512xf32> -> vector<8x512xf32>
      %102 = arith.addf %97, %101 : vector<8x512xf32>
      %103 = vector.extract_strided_slice %102 {offsets = [0, 0], sizes = [8, 384], strides = [1, 1]} : vector<8x512xf32> to vector<8x384xf32>
      %104 = arith.negf %103 : vector<8x384xf32>
      %105 = math.exp %104 : vector<8x384xf32>
      %cst_49 = arith.constant 1.000000e+00 : f32
      %106 = vector.broadcast %cst_49 : f32 to vector<8x384xf32>
      %107 = arith.addf %106, %105 : vector<8x384xf32>
      %108 = arith.divf %106, %107 : vector<8x384xf32>
      %109 = vector.extract_strided_slice %102 {offsets = [0, 384], sizes = [8, 128], strides = [1, 1]} : vector<8x512xf32> to vector<8x128xf32>
      %110 = math.tanh %109 : vector<8x128xf32>
      %111 = vector.extract_strided_slice %108 {offsets = [0, 0], sizes = [8, 128], strides = [1, 1]} : vector<8x384xf32> to vector<8x128xf32>
      %112 = vector.extract_strided_slice %108 {offsets = [0, 128], sizes = [8, 128], strides = [1, 1]} : vector<8x384xf32> to vector<8x128xf32>
      %113 = vector.extract_strided_slice %108 {offsets = [0, 256], sizes = [8, 128], strides = [1, 1]} : vector<8x384xf32> to vector<8x128xf32>
      %114 = arith.mulf %112, %88 : vector<8x128xf32>
      %115 = arith.mulf %111, %110 : vector<8x128xf32>
      %116 = arith.addf %114, %115 : vector<8x128xf32>
      %117 = math.tanh %116 : vector<8x128xf32>
      %118 = arith.mulf %113, %117 : vector<8x128xf32>
      %119 = arith.truncf %118 : vector<8x128xf32> to vector<8x128xbf16>
      %c0_50 = arith.constant 0 : index
      %c4_51 = arith.constant 4 : index
      %c0_52 = arith.constant 0 : index
      %c0_53 = arith.constant 0 : index
      %120 = vector.load %arg4[%c0_50, %c4_51, %c0_52, %c0_53] : memref<1x8x8x128xbf16, #tpu.memory_space<vmem>>, vector<1x1x8x128xbf16>
      %121 = vector.shape_cast %120 : vector<1x1x8x128xbf16> to vector<8x128xbf16>
      %122 = vector.shape_cast %119 : vector<8x128xbf16> to vector<1x1x8x128xbf16>
      tpu.vector_store %arg4[%c0_50, %c4_51, %c0_52, %c0_53], %122 {strides = array<i32>} : memref<1x8x8x128xbf16, #tpu.memory_space<vmem>>, vector<1x1x8x128xbf16>,
      %c0_54 = arith.constant 0 : index
      %c3 = arith.constant 3 : index
      %c0_55 = arith.constant 0 : index
      %c0_56 = arith.constant 0 : index
      %123 = vector.load %arg2[%c0_54, %c3, %c0_55, %c0_56] : memref<1x8x8x512xbf16, #tpu.memory_space<vmem>>, vector<1x1x8x512xbf16>
      %124 = vector.shape_cast %123 : vector<1x1x8x512xbf16> to vector<8x512xbf16>
      %125 = arith.extf %124 : vector<8x512xbf16> to vector<8x512xf32>
      %126 = arith.truncf %118 : vector<8x128xf32> to vector<8x128xbf16>
      %c0_57 = arith.constant 0 : index
      %c0_58 = arith.constant 0 : index
      %c0_59 = arith.constant 0 : index
      %127 = vector.load %arg3[%c0_57, %c0_58, %c0_59] : memref<1x128x512xbf16, #tpu.memory_space<vmem>>, vector<1x128x512xbf16>
      %128 = vector.shape_cast %127 : vector<1x128x512xbf16> to vector<128x512xbf16>
      %cst_60 = arith.constant dense<0.000000e+00> : vector<8x512xf32>
      %129 = tpu.matmul %126, %128, %cst_60 {dimension_numbers = #tpu.dot_dimension_numbers<[1], [0], [0], [1], [0, 0, 1, 1], [], []>} : vector<8x128xbf16>, vector<128x512xbf16>, vector<8x512xf32> -> vector<8x512xf32>
      %130 = arith.addf %125, %129 : vector<8x512xf32>
      %131 = vector.extract_strided_slice %130 {offsets = [0, 0], sizes = [8, 384], strides = [1, 1]} : vector<8x512xf32> to vector<8x384xf32>
      %132 = arith.negf %131 : vector<8x384xf32>
      %133 = math.exp %132 : vector<8x384xf32>
      %cst_61 = arith.constant 1.000000e+00 : f32
      %134 = vector.broadcast %cst_61 : f32 to vector<8x384xf32>
      %135 = arith.addf %134, %133 : vector<8x384xf32>
      %136 = arith.divf %134, %135 : vector<8x384xf32>
      %137 = vector.extract_strided_slice %130 {offsets = [0, 384], sizes = [8, 128], strides = [1, 1]} : vector<8x512xf32> to vector<8x128xf32>
      %138 = math.tanh %137 : vector<8x128xf32>
      %139 = vector.extract_strided_slice %136 {offsets = [0, 0], sizes = [8, 128], strides = [1, 1]} : vector<8x384xf32> to vector<8x128xf32>
      %140 = vector.extract_strided_slice %136 {offsets = [0, 128], sizes = [8, 128], strides = [1, 1]} : vector<8x384xf32> to vector<8x128xf32>
      %141 = vector.extract_strided_slice %136 {offsets = [0, 256], sizes = [8, 128], strides = [1, 1]} : vector<8x384xf32> to vector<8x128xf32>
      %142 = arith.mulf %140, %116 : vector<8x128xf32>
      %143 = arith.mulf %139, %138 : vector<8x128xf32>
      %144 = arith.addf %142, %143 : vector<8x128xf32>
      %145 = math.tanh %144 : vector<8x128xf32>
      %146 = arith.mulf %141, %145 : vector<8x128xf32>
      %147 = arith.truncf %146 : vector<8x128xf32> to vector<8x128xbf16>
      %c0_62 = arith.constant 0 : index
      %c3_63 = arith.constant 3 : index
      %c0_64 = arith.constant 0 : index
      %c0_65 = arith.constant 0 : index
      %148 = vector.load %arg4[%c0_62, %c3_63, %c0_64, %c0_65] : memref<1x8x8x128xbf16, #tpu.memory_space<vmem>>, vector<1x1x8x128xbf16>
      %149 = vector.shape_cast %148 : vector<1x1x8x128xbf16> to vector<8x128xbf16>
      %150 = vector.shape_cast %147 : vector<8x128xbf16> to vector<1x1x8x128xbf16>
      tpu.vector_store %arg4[%c0_62, %c3_63, %c0_64, %c0_65], %150 {strides = array<i32>} : memref<1x8x8x128xbf16, #tpu.memory_space<vmem>>, vector<1x1x8x128xbf16>,
      %c0_66 = arith.constant 0 : index
      %c2 = arith.constant 2 : index
      %c0_67 = arith.constant 0 : index
      %c0_68 = arith.constant 0 : index
      %151 = vector.load %arg2[%c0_66, %c2, %c0_67, %c0_68] : memref<1x8x8x512xbf16, #tpu.memory_space<vmem>>, vector<1x1x8x512xbf16>
      %152 = vector.shape_cast %151 : vector<1x1x8x512xbf16> to vector<8x512xbf16>
      %153 = arith.extf %152 : vector<8x512xbf16> to vector<8x512xf32>
      %154 = arith.truncf %146 : vector<8x128xf32> to vector<8x128xbf16>
      %c0_69 = arith.constant 0 : index
      %c0_70 = arith.constant 0 : index
      %c0_71 = arith.constant 0 : index
      %155 = vector.load %arg3[%c0_69, %c0_70, %c0_71] : memref<1x128x512xbf16, #tpu.memory_space<vmem>>, vector<1x128x512xbf16>
      %156 = vector.shape_cast %155 : vector<1x128x512xbf16> to vector<128x512xbf16>
      %cst_72 = arith.constant dense<0.000000e+00> : vector<8x512xf32>
      %157 = tpu.matmul %154, %156, %cst_72 {dimension_numbers = #tpu.dot_dimension_numbers<[1], [0], [0], [1], [0, 0, 1, 1], [], []>} : vector<8x128xbf16>, vector<128x512xbf16>, vector<8x512xf32> -> vector<8x512xf32>
      %158 = arith.addf %153, %157 : vector<8x512xf32>
      %159 = vector.extract_strided_slice %158 {offsets = [0, 0], sizes = [8, 384], strides = [1, 1]} : vector<8x512xf32> to vector<8x384xf32>
      %160 = arith.negf %159 : vector<8x384xf32>
      %161 = math.exp %160 : vector<8x384xf32>
      %cst_73 = arith.constant 1.000000e+00 : f32
      %162 = vector.broadcast %cst_73 : f32 to vector<8x384xf32>
      %163 = arith.addf %162, %161 : vector<8x384xf32>
      %164 = arith.divf %162, %163 : vector<8x384xf32>
      %165 = vector.extract_strided_slice %158 {offsets = [0, 384], sizes = [8, 128], strides = [1, 1]} : vector<8x512xf32> to vector<8x128xf32>
      %166 = math.tanh %165 : vector<8x128xf32>
      %167 = vector.extract_strided_slice %164 {offsets = [0, 0], sizes = [8, 128], strides = [1, 1]} : vector<8x384xf32> to vector<8x128xf32>
      %168 = vector.extract_strided_slice %164 {offsets = [0, 128], sizes = [8, 128], strides = [1, 1]} : vector<8x384xf32> to vector<8x128xf32>
      %169 = vector.extract_strided_slice %164 {offsets = [0, 256], sizes = [8, 128], strides = [1, 1]} : vector<8x384xf32> to vector<8x128xf32>
      %170 = arith.mulf %168, %144 : vector<8x128xf32>
      %171 = arith.mulf %167, %166 : vector<8x128xf32>
      %172 = arith.addf %170, %171 : vector<8x128xf32>
      %173 = math.tanh %172 : vector<8x128xf32>
      %174 = arith.mulf %169, %173 : vector<8x128xf32>
      %175 = arith.truncf %174 : vector<8x128xf32> to vector<8x128xbf16>
      %c0_74 = arith.constant 0 : index
      %c2_75 = arith.constant 2 : index
      %c0_76 = arith.constant 0 : index
      %c0_77 = arith.constant 0 : index
      %176 = vector.load %arg4[%c0_74, %c2_75, %c0_76, %c0_77] : memref<1x8x8x128xbf16, #tpu.memory_space<vmem>>, vector<1x1x8x128xbf16>
      %177 = vector.shape_cast %176 : vector<1x1x8x128xbf16> to vector<8x128xbf16>
      %178 = vector.shape_cast %175 : vector<8x128xbf16> to vector<1x1x8x128xbf16>
      tpu.vector_store %arg4[%c0_74, %c2_75, %c0_76, %c0_77], %178 {strides = array<i32>} : memref<1x8x8x128xbf16, #tpu.memory_space<vmem>>, vector<1x1x8x128xbf16>,
      %c0_78 = arith.constant 0 : index
      %c1 = arith.constant 1 : index
      %c0_79 = arith.constant 0 : index
      %c0_80 = arith.constant 0 : index
      %179 = vector.load %arg2[%c0_78, %c1, %c0_79, %c0_80] : memref<1x8x8x512xbf16, #tpu.memory_space<vmem>>, vector<1x1x8x512xbf16>
      %180 = vector.shape_cast %179 : vector<1x1x8x512xbf16> to vector<8x512xbf16>
      %181 = arith.extf %180 : vector<8x512xbf16> to vector<8x512xf32>
      %182 = arith.truncf %174 : vector<8x128xf32> to vector<8x128xbf16>
      %c0_81 = arith.constant 0 : index
      %c0_82 = arith.constant 0 : index
      %c0_83 = arith.constant 0 : index
      %183 = vector.load %arg3[%c0_81, %c0_82, %c0_83] : memref<1x128x512xbf16, #tpu.memory_space<vmem>>, vector<1x128x512xbf16>
      %184 = vector.shape_cast %183 : vector<1x128x512xbf16> to vector<128x512xbf16>
      %cst_84 = arith.constant dense<0.000000e+00> : vector<8x512xf32>
      %185 = tpu.matmul %182, %184, %cst_84 {dimension_numbers = #tpu.dot_dimension_numbers<[1], [0], [0], [1], [0, 0, 1, 1], [], []>} : vector<8x128xbf16>, vector<128x512xbf16>, vector<8x512xf32> -> vector<8x512xf32>
      %186 = arith.addf %181, %185 : vector<8x512xf32>
      %187 = vector.extract_strided_slice %186 {offsets = [0, 0], sizes = [8, 384], strides = [1, 1]} : vector<8x512xf32> to vector<8x384xf32>
      %188 = arith.negf %187 : vector<8x384xf32>
      %189 = math.exp %188 : vector<8x384xf32>
      %cst_85 = arith.constant 1.000000e+00 : f32
      %190 = vector.broadcast %cst_85 : f32 to vector<8x384xf32>
      %191 = arith.addf %190, %189 : vector<8x384xf32>
      %192 = arith.divf %190, %191 : vector<8x384xf32>
      %193 = vector.extract_strided_slice %186 {offsets = [0, 384], sizes = [8, 128], strides = [1, 1]} : vector<8x512xf32> to vector<8x128xf32>
      %194 = math.tanh %193 : vector<8x128xf32>
      %195 = vector.extract_strided_slice %192 {offsets = [0, 0], sizes = [8, 128], strides = [1, 1]} : vector<8x384xf32> to vector<8x128xf32>
      %196 = vector.extract_strided_slice %192 {offsets = [0, 128], sizes = [8, 128], strides = [1, 1]} : vector<8x384xf32> to vector<8x128xf32>
      %197 = vector.extract_strided_slice %192 {offsets = [0, 256], sizes = [8, 128], strides = [1, 1]} : vector<8x384xf32> to vector<8x128xf32>
      %198 = arith.mulf %196, %172 : vector<8x128xf32>
      %199 = arith.mulf %195, %194 : vector<8x128xf32>
      %200 = arith.addf %198, %199 : vector<8x128xf32>
      %201 = math.tanh %200 : vector<8x128xf32>
      %202 = arith.mulf %197, %201 : vector<8x128xf32>
      %203 = arith.truncf %202 : vector<8x128xf32> to vector<8x128xbf16>
      %c0_86 = arith.constant 0 : index
      %c1_87 = arith.constant 1 : index
      %c0_88 = arith.constant 0 : index
      %c0_89 = arith.constant 0 : index
      %204 = vector.load %arg4[%c0_86, %c1_87, %c0_88, %c0_89] : memref<1x8x8x128xbf16, #tpu.memory_space<vmem>>, vector<1x1x8x128xbf16>
      %205 = vector.shape_cast %204 : vector<1x1x8x128xbf16> to vector<8x128xbf16>
      %206 = vector.shape_cast %203 : vector<8x128xbf16> to vector<1x1x8x128xbf16>
      tpu.vector_store %arg4[%c0_86, %c1_87, %c0_88, %c0_89], %206 {strides = array<i32>} : memref<1x8x8x128xbf16, #tpu.memory_space<vmem>>, vector<1x1x8x128xbf16>,
      %c0_90 = arith.constant 0 : index
      %c0_91 = arith.constant 0 : index
      %c0_92 = arith.constant 0 : index
      %c0_93 = arith.constant 0 : index
      %207 = vector.load %arg2[%c0_90, %c0_91, %c0_92, %c0_93] : memref<1x8x8x512xbf16, #tpu.memory_space<vmem>>, vector<1x1x8x512xbf16>
      %208 = vector.shape_cast %207 : vector<1x1x8x512xbf16> to vector<8x512xbf16>
      %209 = arith.extf %208 : vector<8x512xbf16> to vector<8x512xf32>
      %210 = arith.truncf %202 : vector<8x128xf32> to vector<8x128xbf16>
      %c0_94 = arith.constant 0 : index
      %c0_95 = arith.constant 0 : index
      %c0_96 = arith.constant 0 : index
      %211 = vector.load %arg3[%c0_94, %c0_95, %c0_96] : memref<1x128x512xbf16, #tpu.memory_space<vmem>>, vector<1x128x512xbf16>
      %212 = vector.shape_cast %211 : vector<1x128x512xbf16> to vector<128x512xbf16>
      %cst_97 = arith.constant dense<0.000000e+00> : vector<8x512xf32>
      %213 = tpu.matmul %210, %212, %cst_97 {dimension_numbers = #tpu.dot_dimension_numbers<[1], [0], [0], [1], [0, 0, 1, 1], [], []>} : vector<8x128xbf16>, vector<128x512xbf16>, vector<8x512xf32> -> vector<8x512xf32>
      %214 = arith.addf %209, %213 : vector<8x512xf32>
      %215 = vector.extract_strided_slice %214 {offsets = [0, 0], sizes = [8, 384], strides = [1, 1]} : vector<8x512xf32> to vector<8x384xf32>
      %216 = arith.negf %215 : vector<8x384xf32>
      %217 = math.exp %216 : vector<8x384xf32>
      %cst_98 = arith.constant 1.000000e+00 : f32
      %218 = vector.broadcast %cst_98 : f32 to vector<8x384xf32>
      %219 = arith.addf %218, %217 : vector<8x384xf32>
      %220 = arith.divf %218, %219 : vector<8x384xf32>
      %221 = vector.extract_strided_slice %214 {offsets = [0, 384], sizes = [8, 128], strides = [1, 1]} : vector<8x512xf32> to vector<8x128xf32>
      %222 = math.tanh %221 : vector<8x128xf32>
      %223 = vector.extract_strided_slice %220 {offsets = [0, 0], sizes = [8, 128], strides = [1, 1]} : vector<8x384xf32> to vector<8x128xf32>
      %224 = vector.extract_strided_slice %220 {offsets = [0, 128], sizes = [8, 128], strides = [1, 1]} : vector<8x384xf32> to vector<8x128xf32>
      %225 = vector.extract_strided_slice %220 {offsets = [0, 256], sizes = [8, 128], strides = [1, 1]} : vector<8x384xf32> to vector<8x128xf32>
      %226 = arith.mulf %224, %200 : vector<8x128xf32>
      %227 = arith.mulf %223, %222 : vector<8x128xf32>
      %228 = arith.addf %226, %227 : vector<8x128xf32>
      %229 = math.tanh %228 : vector<8x128xf32>
      %230 = arith.mulf %225, %229 : vector<8x128xf32>
      %231 = arith.truncf %230 : vector<8x128xf32> to vector<8x128xbf16>
      %c0_99 = arith.constant 0 : index
      %c0_100 = arith.constant 0 : index
      %c0_101 = arith.constant 0 : index
      %c0_102 = arith.constant 0 : index
      %232 = vector.load %arg4[%c0_99, %c0_100, %c0_101, %c0_102] : memref<1x8x8x128xbf16, #tpu.memory_space<vmem>>, vector<1x1x8x128xbf16>
      %233 = vector.shape_cast %232 : vector<1x1x8x128xbf16> to vector<8x128xbf16>
      %234 = vector.shape_cast %231 : vector<8x128xbf16> to vector<1x1x8x128xbf16>
      tpu.vector_store %arg4[%c0_99, %c0_100, %c0_101, %c0_102], %234 {strides = array<i32>} : memref<1x8x8x128xbf16, #tpu.memory_space<vmem>>, vector<1x1x8x128xbf16>,
      %c0_103 = arith.constant 0 : index
      %c0_104 = arith.constant 0 : index
      %235 = vector.load %arg5[%c0_103, %c0_104] : memref<8x128xf32, #tpu.memory_space<vmem>>, vector<8x128xf32>
      tpu.vector_store %arg5[%c0_103, %c0_104], %230 {strides = array<i32>} : memref<8x128xf32, #tpu.memory_space<vmem>>, vector<8x128xf32>,
      %c0_105 = arith.constant 0 : index
      %c0_106 = arith.constant 0 : index
      %236 = vector.load %arg6[%c0_105, %c0_106] : memref<8x128xf32, #tpu.memory_space<vmem>>, vector<8x128xf32>
      tpu.vector_store %arg6[%c0_105, %c0_106], %228 {strides = array<i32>} : memref<8x128xf32, #tpu.memory_space<vmem>>, vector<8x128xf32>,
    } else {
    }
    return
  }
  func.func @transform_0(%arg0: i32, %arg1: i32) -> (i32, i32, i32, i32) {
    %c2_i32 = arith.constant 2 : i32
    %0 = arith.muli %c2_i32, %arg1 : i32
    %c0_i32 = arith.constant 0 : i32
    %1 = arith.subi %c0_i32, %0 : i32
    %2 = arith.muli %arg0, %1 : i32
    %3 = arith.addi %arg1, %2 : i32
    %c0_i32_0 = arith.constant 0 : i32
    %c0_i32_1 = arith.constant 0 : i32
    %c0_i32_2 = arith.constant 0 : i32
    return %arg0, %3, %c0_i32_0, %c0_i32_1 : i32, i32, i32, i32
  }
  func.func @transform_1(%arg0: i32, %arg1: i32) -> (i32, i32, i32) {
    %c0_i32 = arith.constant 0 : i32
    %c0_i32_0 = arith.constant 0 : i32
    %c0_i32_1 = arith.constant 0 : i32
    return %arg0, %c0_i32, %c0_i32_0 : i32, i32, i32
  }
  func.func @transform_2(%arg0: i32, %arg1: i32) -> (i32, i32, i32, i32) {
    %c2_i32 = arith.constant 2 : i32
    %0 = arith.muli %c2_i32, %arg1 : i32
    %c0_i32 = arith.constant 0 : i32
    %1 = arith.subi %c0_i32, %0 : i32
    %2 = arith.muli %arg0, %1 : i32
    %3 = arith.addi %arg1, %2 : i32
    %c0_i32_0 = arith.constant 0 : i32
    %c0_i32_1 = arith.constant 0 : i32
    %c0_i32_2 = arith.constant 0 : i32
    return %arg0, %3, %c0_i32_0, %c0_i32_1 : i32, i32, i32, i32
  }
}

module attributes {stable_mosaic.version = 11 : i64} {
  func.func @_layer_norm_kernel(%arg0: i32, %arg1: memref<16x128xbf16, #tpu.memory_space<vmem>>, %arg2: memref<1x128xf32, #tpu.memory_space<vmem>>, %arg3: memref<1x128xf32, #tpu.memory_space<vmem>>, %arg4: memref<16x128xf32, #tpu.memory_space<vmem>>) attributes {dimension_semantics = [#tpu.dimension_semantics<parallel>], iteration_bounds = array<i64: 1>, scalar_prefetch = 0 : i64, scratch_operands = 0 : i64, tpu.core_type = #tpu.core_type<tc>, window_params = [{transform_indices = @transform_0, window_bounds = array<i64: 16, 128>}, {pipeline_mode = #tpu.pipeline_mode<synchronous>, transform_indices = @transform_1, window_bounds = array<i64: 1, 128>}, {pipeline_mode = #tpu.pipeline_mode<synchronous>, transform_indices = @transform_2, window_bounds = array<i64: 1, 128>}, {transform_indices = @transform_3, window_bounds = array<i64: 16, 128>}]} {
    %c0 = arith.constant 0 : index
    %c0_0 = arith.constant 0 : index
    %0 = vector.load %arg1[%c0, %c0_0] : memref<16x128xbf16, #tpu.memory_space<vmem>>, vector<16x128xbf16>
    %1 = arith.extf %0 : vector<16x128xbf16> to vector<16x128xf32>
    %cst = arith.constant dense<0.000000e+00> : vector<16xf32>
    %2 = vector.multi_reduction <add>, %1, %cst [1] : vector<16x128xf32> to vector<16xf32>
    %3 = vector.shape_cast %2 : vector<16xf32> to vector<16x1xf32>
    %cst_1 = arith.constant 3.125000e-02 : f32
    %4 = vector.broadcast %cst_1 : f32 to vector<16x1xf32>
    %5 = arith.mulf %3, %4 : vector<16x1xf32>
    %6 = vector.broadcast %5 : vector<16x1xf32> to vector<16x128xf32>
    %7 = arith.subf %1, %6 : vector<16x128xf32>
    %8 = tpu.iota {dimensions = array<i32: 1>} : vector<16x128xi32>
    %c32_i32 = arith.constant 32 : i32
    %9 = vector.broadcast %c32_i32 : i32 to vector<16x128xi32>
    %10 = arith.cmpi slt, %8, %9 : vector<16x128xi32>
    %cst_2 = arith.constant 0.000000e+00 : f32
    %11 = vector.broadcast %cst_2 : f32 to vector<16x128xf32>
    %12 = arith.select %10, %7, %11 : vector<16x128xi1>, vector<16x128xf32>
    %13 = arith.mulf %12, %12 : vector<16x128xf32>
    %cst_3 = arith.constant dense<0.000000e+00> : vector<16xf32>
    %14 = vector.multi_reduction <add>, %13, %cst_3 [1] : vector<16x128xf32> to vector<16xf32>
    %15 = vector.shape_cast %14 : vector<16xf32> to vector<16x1xf32>
    %cst_4 = arith.constant 3.125000e-02 : f32
    %16 = vector.broadcast %cst_4 : f32 to vector<16x1xf32>
    %17 = arith.mulf %15, %16 : vector<16x1xf32>
    %cst_5 = arith.constant 9.99999974E-6 : f32
    %18 = vector.broadcast %cst_5 : f32 to vector<16x1xf32>
    %19 = arith.addf %17, %18 : vector<16x1xf32>
    %20 = math.rsqrt %19 : vector<16x1xf32>
    %21 = vector.broadcast %20 : vector<16x1xf32> to vector<16x128xf32>
    %22 = arith.mulf %12, %21 : vector<16x128xf32>
    %c0_6 = arith.constant 0 : index
    %c0_7 = arith.constant 0 : index
    %23 = vector.load %arg2[%c0_6, %c0_7] : memref<1x128xf32, #tpu.memory_space<vmem>>, vector<1x128xf32>
    %24 = vector.broadcast %23 : vector<1x128xf32> to vector<16x128xf32>
    %25 = arith.mulf %22, %24 : vector<16x128xf32>
    %c0_8 = arith.constant 0 : index
    %c0_9 = arith.constant 0 : index
    %26 = vector.load %arg3[%c0_8, %c0_9] : memref<1x128xf32, #tpu.memory_space<vmem>>, vector<1x128xf32>
    %27 = vector.broadcast %26 : vector<1x128xf32> to vector<16x128xf32>
    %28 = arith.addf %25, %27 : vector<16x128xf32>
    %c0_10 = arith.constant 0 : index
    %c0_11 = arith.constant 0 : index
    %29 = vector.load %arg4[%c0_10, %c0_11] : memref<16x128xf32, #tpu.memory_space<vmem>>, vector<16x128xf32>
    tpu.vector_store %arg4[%c0_10, %c0_11], %28 {strides = array<i32>} : memref<16x128xf32, #tpu.memory_space<vmem>>, vector<16x128xf32>,
    return
  }
  func.func @transform_0(%arg0: i32) -> (i32, i32) {
    %c0_i32 = arith.constant 0 : i32
    %c0_i32_0 = arith.constant 0 : i32
    return %arg0, %c0_i32 : i32, i32
  }
  func.func @transform_1(%arg0: i32) -> (i32, i32) {
    %c0_i32 = arith.constant 0 : i32
    %c0_i32_0 = arith.constant 0 : i32
    %c0_i32_1 = arith.constant 0 : i32
    return %c0_i32, %c0_i32_0 : i32, i32
  }
  func.func @transform_2(%arg0: i32) -> (i32, i32) {
    %c0_i32 = arith.constant 0 : i32
    %c0_i32_0 = arith.constant 0 : i32
    %c0_i32_1 = arith.constant 0 : i32
    return %c0_i32, %c0_i32_0 : i32, i32
  }
  func.func @transform_3(%arg0: i32) -> (i32, i32) {
    %c0_i32 = arith.constant 0 : i32
    %c0_i32_0 = arith.constant 0 : i32
    return %arg0, %c0_i32 : i32, i32
  }
}

</mosaic_0001>

<llo_original>
// kernel: bilstm_forward.5
$region0: #{bilstm_forward.5}
  #allocation0 [shape = 'u32[]', space=smem, size = 0x4, offset = 0x4, fixed_abs, tag = 'smem constant byte address 0x4 - core index']
  #allocation1 [shape = 'u32[144,128]{1,0:T(1,128)}', space=vmem, size = 0x12000, scoped, tag = 'internal scratch']
  %s0 = inlined_call_operand.vmem [shape: bf16[16,128], index: 0, kind: input, shape index: {}]
  %s1 = inlined_call_operand.vmem [shape: f32[1,128], index: 1, kind: input, shape index: {}]
  %s2 = inlined_call_operand.vmem [shape: f32[1,128], index: 2, kind: input, shape index: {}]
  %s3 = inlined_call_operand.vmem [shape: f32[16,128], index: 3, kind: output, shape index: {}]
  %s4 = sld [smem:[#allocation0]]
  $region22: #{bilstm_forward.5} parent=0
    _
  %s6 = ssub.s32 1, %s4
  %s7 = scalar_select 0, %s6, %s4
  // Predicated region
  $region2: #{bilstm_forward.5} parent=0 // pred_check
    _
  $region3: #{bilstm_forward.5} parent=0 // pred_check_branch
    %9 = sbr.rel (0) target = $region5
  $region4: #{bilstm_forward.5} parent=0 // pred_region
    _
  $region5: #{bilstm_forward.5} parent=0 // pred_fallthru
    _
  // Predicated region
  $region6: #{bilstm_forward.5} parent=0 // pred_check
    _
  $region7: #{bilstm_forward.5} parent=0 // pred_check_branch
    %11 = sbr.rel (0) target = $region9
  $region8: #{bilstm_forward.5} parent=0 // pred_region
    _
  $region9: #{bilstm_forward.5} parent=0 // pred_fallthru
    _
  // Predicated region
  $region10: #{bilstm_forward.5} parent=0 // pred_check
    _
  $region11: #{bilstm_forward.5} parent=0 // pred_check_branch
    %13 = sbr.rel (0) target = $region13
  $region12: #{bilstm_forward.5} parent=0 // pred_region
    _
  $region13: #{bilstm_forward.5} parent=0 // pred_fallthru
    _
  %v14 = vld [vmem:[%s0] sm:$0xf]
  %v15 = vld [vmem:[%s0 + $0x4] sm:$0xf]
  %v16 = vunpack.c.l.bf16 %v14
  %v17 = vunpack.c.l.bf16 %v15
  %18 = vadd.xlane.f32.xlu0 %v16
  %v19 = vpop.xlane.xlu0 %18
  %20 = vadd.xlane.f32.xlu0 %v17
  %v21 = vpop.xlane.xlu0 %20
  %v22 = vmul.f32 %v19, 0.03125
  %v23 = vmul.f32 %v21, 0.03125
  %v24 = vsub.f32 %v16, %v22
  %v25 = vsub.f32 %v17, %v23
  %v26 = vlaneseq
  %v27 = vand.u32 %v26, 127
  %vm28 = vcmp.lt.s32.totalorder %v27, 32
  %v29 = vsel %vm28, %v24, 0.0
  %v30 = vsel %vm28, %v25, 0.0
  %v31 = vmul.f32 %v29, %v29
  %v32 = vmul.f32 %v30, %v30
  %33 = vadd.xlane.f32.xlu0 %v31
  %v34 = vpop.xlane.xlu0 %33
  %35 = vadd.xlane.f32.xlu0 %v32
  %v36 = vpop.xlane.xlu0 %35
  %v37 = vmul.f32 %v34, 0.03125
  %v38 = vmul.f32 %v36, 0.03125
  %v39 = vadd.f32 %v37, 1e-05
  %v40 = vadd.f32 %v38, 1e-05
  %v41 = vrsqrt.pop %v39
  %v42 = vrsqrt.pop %v40
  %v43 = vmul.f32 %v29, %v41
  %v44 = vmul.f32 %v30, %v42
  %v45 = vld [vmem:[%s1] sm:$0x1]
  %v47 = vlaneseq
  %v48 = vshrl.u32 %v47, 7
  %v49 = vsub.s32 0, %v48
  %v50 = vrot.slane %v45, %v49
  %v52 = vmul.f32 %v43, %v50
  %v53 = vmul.f32 %v44, %v50
  %v54 = vld [vmem:[%s2] sm:$0x1]
  %v56 = vlaneseq
  %v57 = vshrl.u32 %v56, 7
  %v58 = vsub.s32 0, %v57
  %v59 = vrot.slane %v54, %v58
  %v61 = vadd.f32 %v52, %v59
  %v62 = vadd.f32 %v53, %v59
  %63 = vst [vmem:[%s3] sm:$0xff] %v61
  %64 = vst [vmem:[%s3 + $0x8] sm:$0xff] %v62
  // Predicated region
  $region14: #{bilstm_forward.5} parent=0 // pred_check
    _
  $region15: #{bilstm_forward.5} parent=0 // pred_check_branch
    %66 = sbr.rel (0) target = $region17
  $region16: #{bilstm_forward.5} parent=0 // pred_region
    _
  $region17: #{bilstm_forward.5} parent=0 // pred_fallthru
    _
  // Predicated region
  $region18: #{bilstm_forward.5} parent=0 // pred_check
    _
  $region19: #{bilstm_forward.5} parent=0 // pred_check_branch
    %68 = sbr.rel (0) target = $region21
  $region20: #{bilstm_forward.5} parent=0 // pred_region
    _
  $region21: #{bilstm_forward.5} parent=0 // pred_fallthru
    _

// kernel: bilstm_forward.3
$region0: #{bilstm_forward.3}
  #allocation0 [shape = 'u32[]', space=smem, size = 0x4, offset = 0x4, fixed_abs, tag = 'smem constant byte address 0x4 - core index']
  #allocation1 [shape = 'u32[144,128]{1,0:T(1,128)}', space=vmem, size = 0x12000, scoped, tag = 'internal scratch']
  #allocation2 [shape = 'f32[8,128]{1,0:T(8,128)}', space=vmem, size = 0x1000, scoped, tag = 'scratch operand']
  #allocation3 [shape = 'f32[8,128]{1,0:T(8,128)}', space=vmem, size = 0x1000, scoped, tag = 'scratch operand']
  %s0 = inlined_call_operand.vmem [shape: bf16[2,8,8,512], index: 0, kind: input, shape index: {}]
  %s1 = inlined_call_operand.vmem [shape: bf16[2,128,512], index: 1, kind: input, shape index: {}]
  %s2 = inlined_call_operand.vmem [shape: bf16[2,8,8,128], index: 2, kind: output, shape index: {}]
  %s3 = sld [smem:[#allocation0]]
  $region53: #{bilstm_forward.3} parent=0
    _
  %s5 = ssub.s32 1, %s3
  %s6 = scalar_select 0, %s5, %s3
  loop: start=0, step=1, limit=4
  $region2: #{bilstm_forward.3} parent=0 // loop_pre_header
    _
  $region3: #{bilstm_forward.3} parent=0 // loop_header
    %s8 = sphi 0, %s12
    %p9 = scmp.ge.s32.totalorder %s8, 4
    %s15 = sphi 0, %s27
    %s16 = sphi 0, %s23
    %s17 = sphi 0, %s15
    %s18 = sphi 0, %s16
    %s19 = sphi 0, %s17
    %s20 = sphi 0, %s18
    %s40 = sphi 0, %s42
    %s43 = sphi 0, %s40
    %s44 = sphi 0, %s43
    %s60 = sphi 0, %s44
    %s66 = sphi 0, %s68
    %s69 = sphi 0, %s66
    %s70 = sphi 0, %s69
    %s86 = sphi 0, %s70
    %s102 = sphi 0, %s104
    %s105 = sphi 0, %s102
    %s106 = sphi 0, %s105
    %s122 = sphi 0, %s106
  $region4: #{bilstm_forward.3} parent=0 // loop_header_branch
    %11 = sbr.rel (%p9) target = $region8
  $region5: #{bilstm_forward.3} parent=0 // loop_body
    %s13 = ssub.s32 %s8, 1
    %s14 = ssub.s32 %s8, 2
    %s21 = sadd.s32 1, %s16
    %p22 = scmp.ge.s32.totalorder %s21, 1
    %s23 = scalar_select %p22, 0, %s21
    %s24 = sadd.s32 1, %s15
    %s25 = scalar_select %p22, %s24, %s15
    %p26 = scmp.ge.s32.totalorder %s25, 2
    %s27 = scalar_select %p26, 0, %s25
    %s28 = smul.u32 %s16, 2
    %s29 = ssub.s32 0, %s28
    %s30 = smul.u32 %s15, %s29
    %s31 = sadd.s32 %s16, %s30
    %s32 = smul.u32 %s23, 2
    %s33 = ssub.s32 0, %s32
    %s34 = smul.u32 %s27, %s33
    %s35 = sadd.s32 %s23, %s34
    %s36 = ssub.s32 %s15, %s27
    %s37 = ssub.s32 %s31, %s35
    %s38 = sor.u32 %s36, %s37
    %p39 = scmp.eq.s32.totalorder %s38, 0
    %s41 = sadd.s32 %s40, 1
    %s42 = scalar_select %p39, %s40, %s41
    %p45 = pneg %p39
    %p46 = scmp.eq.s32.totalorder %s8, 1
    %p47 = por %p45, %p46
    %p48 = scmp.ne.s32.totalorder %s40, %s43
    %p49 = scmp.eq.s32.totalorder %s8, 0
    %p50 = por %p48, %p49
    %p51 = scmp.ne.s32.totalorder %s40, %s43
    %p52 = scmp.eq.s32.totalorder %s13, 1
    %p53 = por %p51, %p52
    %p54 = scmp.ne.s32.totalorder %s43, %s44
    %p55 = scmp.eq.s32.totalorder %s13, 0
    %p56 = por %p54, %p55
    %p57 = scmp.ne.s32.totalorder %s43, %s44
    %p58 = scmp.eq.s32.totalorder %s14, 1
    %p59 = por %p57, %p58
    %p61 = scmp.ne.s32.totalorder %s44, %s60
    %p62 = scmp.eq.s32.totalorder %s14, 0
    %p63 = por %p61, %p62
    %s64 = ssub.s32 %s15, %s27
    %p65 = scmp.eq.s32.totalorder %s64, 0
    %s67 = sadd.s32 %s66, 1
    %s68 = scalar_select %p65, %s66, %s67
    %p71 = pneg %p65
    %p72 = scmp.eq.s32.totalorder %s8, 1
    %p73 = por %p71, %p72
    %p74 = scmp.ne.s32.totalorder %s66, %s69
    %p75 = scmp.eq.s32.totalorder %s8, 0
    %p76 = por %p74, %p75
    %p77 = scmp.ne.s32.totalorder %s66, %s69
    %p78 = scmp.eq.s32.totalorder %s13, 1
    %p79 = por %p77, %p78
    %p80 = scmp.ne.s32.totalorder %s69, %s70
    %p81 = scmp.eq.s32.totalorder %s13, 0
    %p82 = por %p80, %p81
    %p83 = scmp.ne.s32.totalorder %s69, %s70
    %p84 = scmp.eq.s32.totalorder %s14, 1
    %p85 = por %p83, %p84
    %p87 = scmp.ne.s32.totalorder %s70, %s86
    %p88 = scmp.eq.s32.totalorder %s14, 0
    %p89 = por %p87, %p88
    %s90 = smul.u32 %s16, 2
    %s91 = ssub.s32 0, %s90
    %s92 = smul.u32 %s15, %s91
    %s93 = sadd.s32 %s16, %s92
    %s94 = smul.u32 %s23, 2
    %s95 = ssub.s32 0, %s94
    %s96 = smul.u32 %s27, %s95
    %s97 = sadd.s32 %s23, %s96
    %s98 = ssub.s32 %s15, %s27
    %s99 = ssub.s32 %s93, %s97
    %s100 = sor.u32 %s98, %s99
    %p101 = scmp.eq.s32.totalorder %s100, 0
    %s103 = sadd.s32 %s102, 1
    %s104 = scalar_select %p101, %s102, %s103
    %p107 = pneg %p101
    %p108 = scmp.eq.s32.totalorder %s8, 1
    %p109 = por %p107, %p108
    %p110 = scmp.ne.s32.totalorder %s102, %s105
    %p111 = scmp.eq.s32.totalorder %s8, 0
    %p112 = por %p110, %p111
    %p113 = scmp.ne.s32.totalorder %s102, %s105
    %p114 = scmp.eq.s32.totalorder %s13, 1
    %p115 = por %p113, %p114
    %p116 = scmp.ne.s32.totalorder %s105, %s106
    %p117 = scmp.eq.s32.totalorder %s13, 0
    %p118 = por %p116, %p117
    %p119 = scmp.ne.s32.totalorder %s105, %s106
    %p120 = scmp.eq.s32.totalorder %s14, 1
    %p121 = por %p119, %p120
    %p123 = scmp.ne.s32.totalorder %s106, %s122
    %p124 = scmp.eq.s32.totalorder %s14, 0
    %p125 = por %p123, %p124
    %p126 = scmp.le.s32.totalorder 1, %s8
    %p127 = scmp.lt.s32.totalorder %s8, 3
    %p128 = pnand %p126, %p127
    %p129 = pneg %p128
    // Predicated region
    $region9: #{bilstm_forward.3} parent=5 // pred_check
      _
    $region10: #{bilstm_forward.3} parent=5 // pred_check_branch
      %131 = sbr.rel (%p128) target = $region12
    $region11: #{bilstm_forward.3} parent=5 // pred_region
      %s132 = ssub.s32 %s8, 1
    $region12: #{bilstm_forward.3} parent=5 // pred_fallthru
      _
    %p133 = scmp.lt.s32.totalorder %s8, 2
    // Predicated region
    $region13: #{bilstm_forward.3} parent=5 // pred_check
      %p134 = pneg %p133
    $region14: #{bilstm_forward.3} parent=5 // pred_check_branch
      %136 = sbr.rel (%p134) target = $region16
    $region15: #{bilstm_forward.3} parent=5 // pred_region
      // Predicated region
      $region17: #{bilstm_forward.3} parent=15 // pred_check
        %p137 = pneg %p50
      $region18: #{bilstm_forward.3} parent=15 // pred_check_branch
        %139 = sbr.rel (%p137) target = $region20
      $region19: #{bilstm_forward.3} parent=15 // pred_region
        %s140 = smul.u32 %s16, 2
        %s141 = ssub.s32 0, %s140
        %s142 = smul.u32 %s15, %s141
        %s143 = sadd.s32 %s16, %s142
        %s144 = smul.u32 8, %s143
        %p145 = scmp.lt.s32.totalorder %s15, 1
        %s146 = scalar_select %p145, %s15, 1
        %p147 = scmp.lt.s32.totalorder %s144, 7
        %s148 = scalar_select %p147, %s144, 7
        %s149 = smul.addr %s148, 4
        %s150 = smul.addr %s146, 32
        %s151 = sadd.s32 %s149, %s150
        %s152 = smul.addr %s151, 4
        %s153 = scalar_lea.vmem %s0, %s152
        %s154 = smul.u32 %s16, 2
        %s155 = ssub.s32 0, %s154
        %s156 = smul.u32 %s15, %s155
        %s157 = sadd.s32 %s16, %s156
        %s158 = smul.u32 8, %s157
      $region20: #{bilstm_forward.3} parent=15 // pred_fallthru
        _
      // Predicated region
      $region21: #{bilstm_forward.3} parent=15 // pred_check
        %p159 = pneg %p76
      $region22: #{bilstm_forward.3} parent=15 // pred_check_branch
        %161 = sbr.rel (%p159) target = $region24
      $region23: #{bilstm_forward.3} parent=15 // pred_region
        %p162 = scmp.lt.s32.totalorder %s15, 1
        %s163 = scalar_select %p162, %s15, 1
        %s164 = smul.addr %s163, 64
        %s165 = smul.addr %s164, 4
        %s166 = scalar_lea.vmem %s1, %s165
      $region24: #{bilstm_forward.3} parent=15 // pred_fallthru
        _
    $region16: #{bilstm_forward.3} parent=5 // pred_fallthru
      _
    %p167 = scmp.le.s32.totalorder 1, %s8
    %p168 = scmp.lt.s32.totalorder %s8, 3
    %p169 = pnand %p167, %p168
    %p170 = pneg %p169
    // Predicated region
    $region25: #{bilstm_forward.3} parent=5 // pred_check
      _
    $region26: #{bilstm_forward.3} parent=5 // pred_check_branch
      %172 = sbr.rel (%p169) target = $region28
    $region27: #{bilstm_forward.3} parent=5 // pred_region
      %s173 = ssub.s32 %s8, 1
      %s174 = smul.u32 %s18, 2
      %s175 = ssub.s32 0, %s174
      %s176 = smul.u32 %s17, %s175
      %s177 = sadd.s32 %s18, %s176
      %s178 = smul.u32 8, %s177
      %p179 = scmp.lt.s32.totalorder %s17, 1
      %s180 = scalar_select %p179, %s17, 1
      %p181 = scmp.lt.s32.totalorder %s178, 7
      %s182 = scalar_select %p181, %s178, 7
      %s183 = smul.addr %s182, 4
      %s184 = smul.addr %s180, 32
      %s185 = sadd.s32 %s183, %s184
      %s186 = smul.addr %s185, 4
      %s187 = scalar_lea.vmem %s0, %s186
      %p188 = pneg %p56
      %p189 = pneg %p53
      %p190 = scmp.lt.s32.totalorder %s17, 1
      %s191 = scalar_select %p190, %s17, 1
      %s192 = smul.addr %s191, 64
      %s193 = smul.addr %s192, 4
      %s194 = scalar_lea.vmem %s1, %s193
      %p195 = pneg %p82
      %p196 = pneg %p79
      %p197 = pneg %p118
      %p198 = pneg %p115
      %s199 = smul.u32 %s18, 2
      %s200 = ssub.s32 0, %s199
      %s201 = smul.u32 %s17, %s200
      %s202 = sadd.s32 %s18, %s201
      %s203 = smul.u32 8, %s202
      %p204 = scmp.lt.s32.totalorder %s17, 1
      %s205 = scalar_select %p204, %s17, 1
      %p206 = scmp.lt.s32.totalorder %s203, 7
      %s207 = scalar_select %p206, %s203, 7
      %s208 = smul.addr %s205, 8
      %s209 = sadd.s32 %s207, %s208
      %s210 = smul.addr %s209, 4
      %s211 = scalar_lea.vmem %s2, %s210
      %s212 = smul.u32 %s18, 2
      %s213 = ssub.s32 0, %s212
      %s214 = smul.u32 %s17, %s213
      %s215 = sadd.s32 %s18, %s214
      %s216 = smul.u32 8, %s215
      %p217 = scmp.lt.s32.totalorder %s17, 1
      %s218 = scalar_select %p217, %s17, 1
      %p219 = scmp.lt.s32.totalorder %s216, 7
      %s220 = scalar_select %p219, %s216, 7
      %s221 = smul.addr %s220, 4
      %s222 = smul.addr %s218, 32
      %s223 = sadd.s32 %s221, %s222
      %s224 = smul.addr %s223, 4
      %s225 = scalar_lea.vmem %s0, %s224
      %s226 = smul.u32 %s18, 2
      %s227 = ssub.s32 0, %s226
      %s228 = smul.u32 %s17, %s227
      %s229 = sadd.s32 %s18, %s228
      %s230 = smul.u32 8, %s229
      %p231 = scmp.lt.s32.totalorder %s17, 1
      %s232 = scalar_select %p231, %s17, 1
      %s233 = smul.addr %s232, 64
      %s234 = smul.addr %s233, 4
      %s235 = scalar_lea.vmem %s1, %s234
      %s236 = smul.u32 %s18, 2
      %s237 = ssub.s32 0, %s236
      %s238 = smul.u32 %s17, %s237
      %s239 = sadd.s32 %s18, %s238
      %s240 = smul.u32 8, %s239
      %p241 = scmp.lt.s32.totalorder %s17, 1
      %s242 = scalar_select %p241, %s17, 1
      %p243 = scmp.lt.s32.totalorder %s240, 7
      %s244 = scalar_select %p243, %s240, 7
      %s245 = smul.addr %s242, 8
      %s246 = sadd.s32 %s244, %s245
      %s247 = smul.addr %s246, 4
      %s248 = scalar_lea.vmem %s2, %s247
      %s249 = smul.u32 %s18, 2
      %s250 = ssub.s32 0, %s249
      %s251 = smul.u32 %s17, %s250
      %s252 = sadd.s32 %s18, %s251
      %s253 = smul.u32 8, %s252
      %p255 = scmp.eq.s32.totalorder %s18, 0
      // Predicated region
      $region29: #{bilstm_forward.3} parent=27 // pred_check
        %p256 = pneg %p255
      $region30: #{bilstm_forward.3} parent=27 // pred_check_branch
        %258 = sbr.rel (%p256) target = $region32
      $region31: #{bilstm_forward.3} parent=27 // pred_region
        %259 = vst [vmem:[#allocation2] sm:$0xff] 0.0
        %260 = vst [vmem:[#allocation3] sm:$0xff] 0.0
      $region32: #{bilstm_forward.3} parent=27 // pred_fallthru
        _
      %p261 = scmp.eq.s32.totalorder %s17, 0
      // Predicated region
      $region33: #{bilstm_forward.3} parent=27 // pred_check
        %p262 = pneg %p261
      $region34: #{bilstm_forward.3} parent=27 // pred_check_branch
        %264 = sbr.rel (%p262) target = $region36
      $region35: #{bilstm_forward.3} parent=27 // pred_region
        %v265 = vld [vmem:[#allocation2] sm:$0xff]
        %v266 = vld [vmem:[#allocation3] sm:$0xff]
        %v267 = vld [vmem:[%s225] sm:$0xff]
        %v268 = vld [vmem:[%s225 + $0x8] sm:$0xff]
        %v269 = vunpack.c.l.bf16 %v267
        %v270 = vunpack.c.h.bf16 %v267
        %v271 = vunpack.c.l.bf16 %v268
        %v272 = vunpack.c.h.bf16 %v268
        %v273 = vpack.c.bf16 %v265, %v265
        %v274 = vld [vmem:[%s235] sm:$0xff]
        %v275 = vld [vmem:[%s235 + $0x8] sm:$0xff]
        %v276 = vld [vmem:[%s235 + $0x10] sm:$0xff]
        %v277 = vld [vmem:[%s235 + $0x18] sm:$0xff]
        %v278 = vld [vmem:[%s235 + $0x20] sm:$0xff]
        %v279 = vld [vmem:[%s235 + $0x28] sm:$0xff]
        %v280 = vld [vmem:[%s235 + $0x30] sm:$0xff]
        %v281 = vld [vmem:[%s235 + $0x38] sm:$0xff]
        %v282 = vld [vmem:[%s235 + $0x40] sm:$0xff]
        %v283 = vld [vmem:[%s235 + $0x48] sm:$0xff]
        %v284 = vld [vmem:[%s235 + $0x50] sm:$0xff]
        %v285 = vld [vmem:[%s235 + $0x58] sm:$0xff]
        %v286 = vld [vmem:[%s235 + $0x60] sm:$0xff]
        %v287 = vld [vmem:[%s235 + $0x68] sm:$0xff]
        %v288 = vld [vmem:[%s235 + $0x70] sm:$0xff]
        %v289 = vld [vmem:[%s235 + $0x78] sm:$0xff]
        %v290 = vld [vmem:[%s235 + $0x80] sm:$0xff]
        %v291 = vld [vmem:[%s235 + $0x88] sm:$0xff]
        %v292 = vld [vmem:[%s235 + $0x90] sm:$0xff]
        %v293 = vld [vmem:[%s235 + $0x98] sm:$0xff]
        %v294 = vld [vmem:[%s235 + $0xa0] sm:$0xff]
        %v295 = vld [vmem:[%s235 + $0xa8] sm:$0xff]
        %v296 = vld [vmem:[%s235 + $0xb0] sm:$0xff]
        %v297 = vld [vmem:[%s235 + $0xb8] sm:$0xff]
        %v298 = vld [vmem:[%s235 + $0xc0] sm:$0xff]
        %v299 = vld [vmem:[%s235 + $0xc8] sm:$0xff]
        %v300 = vld [vmem:[%s235 + $0xd0] sm:$0xff]
        %v301 = vld [vmem:[%s235 + $0xd8] sm:$0xff]
        %v302 = vld [vmem:[%s235 + $0xe0] sm:$0xff]
        %v303 = vld [vmem:[%s235 + $0xe8] sm:$0xff]
        %v304 = vld [vmem:[%s235 + $0xf0] sm:$0xff]
        %v305 = vld [vmem:[%s235 + $0xf8] sm:$0xff]
        %v338 = vunpack.c.l.b16 %v274
        %v339 = vunpack.c.h.b16 %v274
        %v340 = vunpack.c.l.b16 %v275
        %v341 = vunpack.c.h.b16 %v275
        %v342 = vunpack.c.l.b16 %v276
        %v343 = vunpack.c.h.b16 %v276
        %v344 = vunpack.c.l.b16 %v277
        %v345 = vunpack.c.h.b16 %v277
        %v346 = vunpack.c.l.b16 %v278
        %v347 = vunpack.c.h.b16 %v278
        %v348 = vunpack.c.l.b16 %v279
        %v349 = vunpack.c.h.b16 %v279
        %v350 = vunpack.c.l.b16 %v280
        %v351 = vunpack.c.h.b16 %v280
        %v352 = vunpack.c.l.b16 %v281
        %v353 = vunpack.c.h.b16 %v281
        %v354 = vunpack.c.l.b16 %v282
        %v355 = vunpack.c.h.b16 %v282
        %v356 = vunpack.c.l.b16 %v283
        %v357 = vunpack.c.h.b16 %v283
        %v358 = vunpack.c.l.b16 %v284
        %v359 = vunpack.c.h.b16 %v284
        %v360 = vunpack.c.l.b16 %v285
        %v361 = vunpack.c.h.b16 %v285
        %v362 = vunpack.c.l.b16 %v286
        %v363 = vunpack.c.h.b16 %v286
        %v364 = vunpack.c.l.b16 %v287
        %v365 = vunpack.c.h.b16 %v287
        %v366 = vunpack.c.l.b16 %v288
        %v367 = vunpack.c.h.b16 %v288
        %v368 = vunpack.c.l.b16 %v289
        %v369 = vunpack.c.h.b16 %v289
        %v370 = vunpack.c.l.b16 %v290
        %v371 = vunpack.c.h.b16 %v290
        %v372 = vunpack.c.l.b16 %v291
        %v373 = vunpack.c.h.b16 %v291
        %v374 = vunpack.c.l.b16 %v292
        %v375 = vunpack.c.h.b16 %v292
        %v376 = vunpack.c.l.b16 %v293
        %v377 = vunpack.c.h.b16 %v293
        %v378 = vunpack.c.l.b16 %v294
        %v379 = vunpack.c.h.b16 %v294
        %v380 = vunpack.c.l.b16 %v295
        %v381 = vunpack.c.h.b16 %v295
        %v382 = vunpack.c.l.b16 %v296
        %v383 = vunpack.c.h.b16 %v296
        %v384 = vunpack.c.l.b16 %v297
        %v385 = vunpack.c.h.b16 %v297
        %v386 = vunpack.c.l.b16 %v298
        %v387 = vunpack.c.h.b16 %v298
        %v388 = vunpack.c.l.b16 %v299
        %v389 = vunpack.c.h.b16 %v299
        %v390 = vunpack.c.l.b16 %v300
        %v391 = vunpack.c.h.b16 %v300
        %v392 = vunpack.c.l.b16 %v301
        %v393 = vunpack.c.h.b16 %v301
        %v394 = vunpack.c.l.b16 %v302
        %v395 = vunpack.c.h.b16 %v302
        %v396 = vunpack.c.l.b16 %v303
        %v397 = vunpack.c.h.b16 %v303
        %v398 = vunpack.c.l.b16 %v304
        %v399 = vunpack.c.h.b16 %v304
        %v400 = vunpack.c.l.b16 %v305
        %v401 = vunpack.c.h.b16 %v305
        %v402 = vpack.c.b16 %v342, %v338
        %v403 = vpack.c.b16 %v343, %v339
        %v404 = vpack.c.b16 %v344, %v340
        %v405 = vpack.c.b16 %v345, %v341
        %v406 = vpack.c.b16 %v350, %v346
        %v407 = vpack.c.b16 %v351, %v347
        %v408 = vpack.c.b16 %v352, %v348
        %v409 = vpack.c.b16 %v353, %v349
        %v410 = vpack.c.b16 %v358, %v354
        %v411 = vpack.c.b16 %v359, %v355
        %v412 = vpack.c.b16 %v360, %v356
        %v413 = vpack.c.b16 %v361, %v357
        %v414 = vpack.c.b16 %v366, %v362
        %v415 = vpack.c.b16 %v367, %v363
        %v416 = vpack.c.b16 %v368, %v364
        %v417 = vpack.c.b16 %v369, %v365
        %v418 = vpack.c.b16 %v374, %v370
        %v419 = vpack.c.b16 %v375, %v371
        %v420 = vpack.c.b16 %v376, %v372
        %v421 = vpack.c.b16 %v377, %v373
        %v422 = vpack.c.b16 %v382, %v378
        %v423 = vpack.c.b16 %v383, %v379
        %v424 = vpack.c.b16 %v384, %v380
        %v425 = vpack.c.b16 %v385, %v381
        %v426 = vpack.c.b16 %v390, %v386
        %v427 = vpack.c.b16 %v391, %v387
        %v428 = vpack.c.b16 %v392, %v388
        %v429 = vpack.c.b16 %v393, %v389
        %v430 = vpack.c.b16 %v398, %v394
        %v431 = vpack.c.b16 %v399, %v395
        %v432 = vpack.c.b16 %v400, %v396
        %v433 = vpack.c.b16 %v401, %v397
        %466 = vmatprep.subr.bf16.mxu0 %v403
        %467 = vmatpush1.bf16.msra.mxu0 %v402
        %468 = vmatprep.subr.bf16.mxu0 %v407
        %469 = vmatpush1.bf16.msra.mxu0 %v406
        %470 = vmatprep.subr.bf16.mxu0 %v411
        %471 = vmatpush1.bf16.msra.mxu0 %v410
        %472 = vmatprep.subr.bf16.mxu0 %v415
        %473 = vmatpush1.bf16.msra.mxu0 %v414
        %474 = vmatprep.subr.bf16.mxu0 %v419
        %475 = vmatpush1.bf16.msra.mxu0 %v418
        %476 = vmatprep.subr.bf16.mxu0 %v423
        %477 = vmatpush1.bf16.msra.mxu0 %v422
        %478 = vmatprep.subr.bf16.mxu0 %v427
        %479 = vmatpush1.bf16.msra.mxu0 %v426
        %480 = vmatprep.subr.bf16.mxu0 %v431
        %481 = vmatpush1.bf16.msra.mxu0 %v430
        %482 = vmatprep.subr.bf16.mxu0 0
        %483 = vmatpush1.bf16.msra.mxu0 0
        %484 = vmatprep.subr.bf16.mxu0 0
        %485 = vmatpush1.bf16.msra.mxu0 0
        %486 = vmatprep.subr.bf16.mxu0 0
        %487 = vmatpush1.bf16.msra.mxu0 0
        %488 = vmatprep.subr.bf16.mxu0 0
        %489 = vmatpush1.bf16.msra.mxu0 0
        %490 = vmatprep.subr.bf16.mxu0 0
        %491 = vmatpush1.bf16.msra.mxu0 0
        %492 = vmatprep.subr.bf16.mxu0 0
        %493 = vmatpush1.bf16.msra.mxu0 0
        %494 = vmatprep.subr.bf16.mxu0 0
        %495 = vmatpush1.bf16.msra.mxu0 0
        %496 = vmatprep.subr.bf16.mxu0 0
        %497 = vmatpush1.bf16.msra.mxu0 0
        %498 = vmatprep.mubr.bf16.mxu0 0
        %499 = vmatmul.mubr.bf16.gmra.mrb[0].mxu0 %v273
        %v500 = vpop.f32.mrb[0].mxu0
        %v501 = vadd.f32 0.0, %v500
        %v502 = vpop.f32.mrb[0].mxu0
        %v503 = vadd.f32 0.0, %v502
        %v504 = vpop.f32.mrb[0].mxu0
        %v505 = vpop.f32.mrb[0].mxu0
        %506 = vdwg.mxu0
        %507 = vmatprep.subr.bf16.mxu0 %v405
        %508 = vmatpush1.bf16.msra.mxu0 %v404
        %509 = vmatprep.subr.bf16.mxu0 %v409
        %510 = vmatpush1.bf16.msra.mxu0 %v408
        %511 = vmatprep.subr.bf16.mxu0 %v413
        %512 = vmatpush1.bf16.msra.mxu0 %v412
        %513 = vmatprep.subr.bf16.mxu0 %v417
        %514 = vmatpush1.bf16.msra.mxu0 %v416
        %515 = vmatprep.subr.bf16.mxu0 %v421
        %516 = vmatpush1.bf16.msra.mxu0 %v420
        %517 = vmatprep.subr.bf16.mxu0 %v425
        %518 = vmatpush1.bf16.msra.mxu0 %v424
        %519 = vmatprep.subr.bf16.mxu0 %v429
        %520 = vmatpush1.bf16.msra.mxu0 %v428
        %521 = vmatprep.subr.bf16.mxu0 %v433
        %522 = vmatpush1.bf16.msra.mxu0 %v432
        %523 = vmatprep.subr.bf16.mxu0 0
        %524 = vmatpush1.bf16.msra.mxu0 0
        %525 = vmatprep.subr.bf16.mxu0 0
        %526 = vmatpush1.bf16.msra.mxu0 0
        %527 = vmatprep.subr.bf16.mxu0 0
        %528 = vmatpush1.bf16.msra.mxu0 0
        %529 = vmatprep.subr.bf16.mxu0 0
        %530 = vmatpush1.bf16.msra.mxu0 0
        %531 = vmatprep.subr.bf16.mxu0 0
        %532 = vmatpush1.bf16.msra.mxu0 0
        %533 = vmatprep.subr.bf16.mxu0 0
        %534 = vmatpush1.bf16.msra.mxu0 0
        %535 = vmatprep.subr.bf16.mxu0 0
        %536 = vmatpush1.bf16.msra.mxu0 0
        %537 = vmatprep.subr.bf16.mxu0 0
        %538 = vmatpush1.bf16.msra.mxu0 0
        %539 = vmatprep.mubr.bf16.mxu0 0
        %540 = vmatmul.mubr.bf16.gmra.mrb[0].mxu0 %v273
        %v541 = vpop.f32.mrb[0].mxu0
        %v542 = vadd.f32 0.0, %v541
        %v543 = vpop.f32.mrb[0].mxu0
        %v544 = vadd.f32 0.0, %v543
        %v545 = vpop.f32.mrb[0].mxu0
        %v546 = vpop.f32.mrb[0].mxu0
        %547 = vdwg.mxu0
        %v548 = vadd.f32 %v269, %v501
        %v549 = vadd.f32 %v270, %v503
        %v550 = vadd.f32 %v271, %v542
        %v551 = vadd.f32 %v272, %v544
        %v552 = vxor.u32 %v548, 2147483648
        %v553 = vxor.u32 %v549, 2147483648
        %v554 = vxor.u32 %v550, 2147483648
        %v555 = vmul.f32 %v552, 1.442695
        %v556 = vpow.pop %v555
        %v557 = vmul.f32 %v553, 1.442695
        %v558 = vpow.pop %v557
        %v559 = vmul.f32 %v554, 1.442695
        %v560 = vpow.pop %v559
        %v561 = vadd.f32 %v556, 1.0
        %v562 = vadd.f32 %v558, 1.0
        %v563 = vadd.f32 %v560, 1.0
        %v564 = vrcp.pop %v561
        %v565 = vmul.f32 1.0, %v564
        %v566 = vrcp.pop %v562
        %v567 = vmul.f32 1.0, %v566
        %v568 = vrcp.pop %v563
        %v569 = vmul.f32 1.0, %v568
        %v570 = vtanh.pop %v551
        %v571 = vmul.f32 %v567, %v266
        %v572 = vmul.f32 %v565, %v570
        %v573 = vadd.f32 %v571, %v572
        %v574 = vtanh.pop %v573
        %v575 = vmul.f32 %v569, %v574
        %v576 = vpack.c.bf16 %v575, %v575
        %577 = vst [vmem:[%s248] sm:$0xf] %v576
        %s578 = scalar_lea.vmem %s225, 16
        %v579 = vld [vmem:[%s578] sm:$0xff]
        %v580 = vld [vmem:[%s578 + $0x8] sm:$0xff]
        %v581 = vunpack.c.l.bf16 %v579
        %v582 = vunpack.c.h.bf16 %v579
        %v583 = vunpack.c.l.bf16 %v580
        %v584 = vunpack.c.h.bf16 %v580
        %v585 = vld [vmem:[%s235] sm:$0xff]
        %v586 = vld [vmem:[%s235 + $0x8] sm:$0xff]
        %v587 = vld [vmem:[%s235 + $0x10] sm:$0xff]
        %v588 = vld [vmem:[%s235 + $0x18] sm:$0xff]
        %v589 = vld [vmem:[%s235 + $0x20] sm:$0xff]
        %v590 = vld [vmem:[%s235 + $0x28] sm:$0xff]
        %v591 = vld [vmem:[%s235 + $0x30] sm:$0xff]
        %v592 = vld [vmem:[%s235 + $0x38] sm:$0xff]
        %v593 = vld [vmem:[%s235 + $0x40] sm:$0xff]
        %v594 = vld [vmem:[%s235 + $0x48] sm:$0xff]
        %v595 = vld [vmem:[%s235 + $0x50] sm:$0xff]
        %v596 = vld [vmem:[%s235 + $0x58] sm:$0xff]
        %v597 = vld [vmem:[%s235 + $0x60] sm:$0xff]
        %v598 = vld [vmem:[%s235 + $0x68] sm:$0xff]
        %v599 = vld [vmem:[%s235 + $0x70] sm:$0xff]
        %v600 = vld [vmem:[%s235 + $0x78] sm:$0xff]
        %v601 = vld [vmem:[%s235 + $0x80] sm:$0xff]
        %v602 = vld [vmem:[%s235 + $0x88] sm:$0xff]
        %v603 = vld [vmem:[%s235 + $0x90] sm:$0xff]
        %v604 = vld [vmem:[%s235 + $0x98] sm:$0xff]
        %v605 = vld [vmem:[%s235 + $0xa0] sm:$0xff]
        %v606 = vld [vmem:[%s235 + $0xa8] sm:$0xff]
        %v607 = vld [vmem:[%s235 + $0xb0] sm:$0xff]
        %v608 = vld [vmem:[%s235 + $0xb8] sm:$0xff]
        %v609 = vld [vmem:[%s235 + $0xc0] sm:$0xff]
        %v610 = vld [vmem:[%s235 + $0xc8] sm:$0xff]
        %v611 = vld [vmem:[%s235 + $0xd0] sm:$0xff]
        %v612 = vld [vmem:[%s235 + $0xd8] sm:$0xff]
        %v613 = vld [vmem:[%s235 + $0xe0] sm:$0xff]
        %v614 = vld [vmem:[%s235 + $0xe8] sm:$0xff]
        %v615 = vld [vmem:[%s235 + $0xf0] sm:$0xff]
        %v616 = vld [vmem:[%s235 + $0xf8] sm:$0xff]
        %v649 = vunpack.c.l.b16 %v585
        %v650 = vunpack.c.h.b16 %v585
        %v651 = vunpack.c.l.b16 %v586
        %v652 = vunpack.c.h.b16 %v586
        %v653 = vunpack.c.l.b16 %v587
        %v654 = vunpack.c.h.b16 %v587
        %v655 = vunpack.c.l.b16 %v588
        %v656 = vunpack.c.h.b16 %v588
        %v657 = vunpack.c.l.b16 %v589
        %v658 = vunpack.c.h.b16 %v589
        %v659 = vunpack.c.l.b16 %v590
        %v660 = vunpack.c.h.b16 %v590
        %v661 = vunpack.c.l.b16 %v591
        %v662 = vunpack.c.h.b16 %v591
        %v663 = vunpack.c.l.b16 %v592
        %v664 = vunpack.c.h.b16 %v592
        %v665 = vunpack.c.l.b16 %v593
        %v666 = vunpack.c.h.b16 %v593
        %v667 = vunpack.c.l.b16 %v594
        %v668 = vunpack.c.h.b16 %v594
        %v669 = vunpack.c.l.b16 %v595
        %v670 = vunpack.c.h.b16 %v595
        %v671 = vunpack.c.l.b16 %v596
        %v672 = vunpack.c.h.b16 %v596
        %v673 = vunpack.c.l.b16 %v597
        %v674 = vunpack.c.h.b16 %v597
        %v675 = vunpack.c.l.b16 %v598
        %v676 = vunpack.c.h.b16 %v598
        %v677 = vunpack.c.l.b16 %v599
        %v678 = vunpack.c.h.b16 %v599
        %v679 = vunpack.c.l.b16 %v600
        %v680 = vunpack.c.h.b16 %v600
        %v681 = vunpack.c.l.b16 %v601
        %v682 = vunpack.c.h.b16 %v601
        %v683 = vunpack.c.l.b16 %v602
        %v684 = vunpack.c.h.b16 %v602
        %v685 = vunpack.c.l.b16 %v603
        %v686 = vunpack.c.h.b16 %v603
        %v687 = vunpack.c.l.b16 %v604
        %v688 = vunpack.c.h.b16 %v604
        %v689 = vunpack.c.l.b16 %v605
        %v690 = vunpack.c.h.b16 %v605
        %v691 = vunpack.c.l.b16 %v606
        %v692 = vunpack.c.h.b16 %v606
        %v693 = vunpack.c.l.b16 %v607
        %v694 = vunpack.c.h.b16 %v607
        %v695 = vunpack.c.l.b16 %v608
        %v696 = vunpack.c.h.b16 %v608
        %v697 = vunpack.c.l.b16 %v609
        %v698 = vunpack.c.h.b16 %v609
        %v699 = vunpack.c.l.b16 %v610
        %v700 = vunpack.c.h.b16 %v610
        %v701 = vunpack.c.l.b16 %v611
        %v702 = vunpack.c.h.b16 %v611
        %v703 = vunpack.c.l.b16 %v612
        %v704 = vunpack.c.h.b16 %v612
        %v705 = vunpack.c.l.b16 %v613
        %v706 = vunpack.c.h.b16 %v613
        %v707 = vunpack.c.l.b16 %v614
        %v708 = vunpack.c.h.b16 %v614
        %v709 = vunpack.c.l.b16 %v615
        %v710 = vunpack.c.h.b16 %v615
        %v711 = vunpack.c.l.b16 %v616
        %v712 = vunpack.c.h.b16 %v616
        %v713 = vpack.c.b16 %v653, %v649
        %v714 = vpack.c.b16 %v654, %v650
        %v715 = vpack.c.b16 %v655, %v651
        %v716 = vpack.c.b16 %v656, %v652
        %v717 = vpack.c.b16 %v661, %v657
        %v718 = vpack.c.b16 %v662, %v658
        %v719 = vpack.c.b16 %v663, %v659
        %v720 = vpack.c.b16 %v664, %v660
        %v721 = vpack.c.b16 %v669, %v665
        %v722 = vpack.c.b16 %v670, %v666
        %v723 = vpack.c.b16 %v671, %v667
        %v724 = vpack.c.b16 %v672, %v668
        %v725 = vpack.c.b16 %v677, %v673
        %v726 = vpack.c.b16 %v678, %v674
        %v727 = vpack.c.b16 %v679, %v675
        %v728 = vpack.c.b16 %v680, %v676
        %v729 = vpack.c.b16 %v685, %v681
        %v730 = vpack.c.b16 %v686, %v682
        %v731 = vpack.c.b16 %v687, %v683
        %v732 = vpack.c.b16 %v688, %v684
        %v733 = vpack.c.b16 %v693, %v689
        %v734 = vpack.c.b16 %v694, %v690
        %v735 = vpack.c.b16 %v695, %v691
        %v736 = vpack.c.b16 %v696, %v692
        %v737 = vpack.c.b16 %v701, %v697
        %v738 = vpack.c.b16 %v702, %v698
        %v739 = vpack.c.b16 %v703, %v699
        %v740 = vpack.c.b16 %v704, %v700
        %v741 = vpack.c.b16 %v709, %v705
        %v742 = vpack.c.b16 %v710, %v706
        %v743 = vpack.c.b16 %v711, %v707
        %v744 = vpack.c.b16 %v712, %v708
        %777 = vmatprep.subr.bf16.mxu0 %v714
        %778 = vmatpush1.bf16.msra.mxu0 %v713
        %779 = vmatprep.subr.bf16.mxu0 %v718
        %780 = vmatpush1.bf16.msra.mxu0 %v717
        %781 = vmatprep.subr.bf16.mxu0 %v722
        %782 = vmatpush1.bf16.msra.mxu0 %v721
        %783 = vmatprep.subr.bf16.mxu0 %v726
        %784 = vmatpush1.bf16.msra.mxu0 %v725
        %785 = vmatprep.subr.bf16.mxu0 %v730
        %786 = vmatpush1.bf16.msra.mxu0 %v729
        %787 = vmatprep.subr.bf16.mxu0 %v734
        %788 = vmatpush1.bf16.msra.mxu0 %v733
        %789 = vmatprep.subr.bf16.mxu0 %v738
        %790 = vmatpush1.bf16.msra.mxu0 %v737
        %791 = vmatprep.subr.bf16.mxu0 %v742
        %792 = vmatpush1.bf16.msra.mxu0 %v741
        %793 = vmatprep.subr.bf16.mxu0 0
        %794 = vmatpush1.bf16.msra.mxu0 0
        %795 = vmatprep.subr.bf16.mxu0 0
        %796 = vmatpush1.bf16.msra.mxu0 0
        %797 = vmatprep.subr.bf16.mxu0 0
        %798 = vmatpush1.bf16.msra.mxu0 0
        %799 = vmatprep.subr.bf16.mxu0 0
        %800 = vmatpush1.bf16.msra.mxu0 0
        %801 = vmatprep.subr.bf16.mxu0 0
        %802 = vmatpush1.bf16.msra.mxu0 0
        %803 = vmatprep.subr.bf16.mxu0 0
        %804 = vmatpush1.bf16.msra.mxu0 0
        %805 = vmatprep.subr.bf16.mxu0 0
        %806 = vmatpush1.bf16.msra.mxu0 0
        %807 = vmatprep.subr.bf16.mxu0 0
        %808 = vmatpush1.bf16.msra.mxu0 0
        %809 = vmatprep.mubr.bf16.mxu0 0
        %810 = vmatmul.mubr.bf16.gmra.mrb[0].mxu0 %v576
        %v811 = vpop.f32.mrb[0].mxu0
        %v812 = vadd.f32 0.0, %v811
        %v813 = vpop.f32.mrb[0].mxu0
        %v814 = vadd.f32 0.0, %v813
        %v815 = vpop.f32.mrb[0].mxu0
        %v816 = vpop.f32.mrb[0].mxu0
        %817 = vdwg.mxu0
        %818 = vmatprep.subr.bf16.mxu0 %v716
        %819 = vmatpush1.bf16.msra.mxu0 %v715
        %820 = vmatprep.subr.bf16.mxu0 %v720
        %821 = vmatpush1.bf16.msra.mxu0 %v719
        %822 = vmatprep.subr.bf16.mxu0 %v724
        %823 = vmatpush1.bf16.msra.mxu0 %v723
        %824 = vmatprep.subr.bf16.mxu0 %v728
        %825 = vmatpush1.bf16.msra.mxu0 %v727
        %826 = vmatprep.subr.bf16.mxu0 %v732
        %827 = vmatpush1.bf16.msra.mxu0 %v731
        %828 = vmatprep.subr.bf16.mxu0 %v736
        %829 = vmatpush1.bf16.msra.mxu0 %v735
        %830 = vmatprep.subr.bf16.mxu0 %v740
        %831 = vmatpush1.bf16.msra.mxu0 %v739
        %832 = vmatprep.subr.bf16.mxu0 %v744
        %833 = vmatpush1.bf16.msra.mxu0 %v743
        %834 = vmatprep.subr.bf16.mxu0 0
        %835 = vmatpush1.bf16.msra.mxu0 0
        %836 = vmatprep.subr.bf16.mxu0 0
        %837 = vmatpush1.bf16.msra.mxu0 0
        %838 = vmatprep.subr.bf16.mxu0 0
        %839 = vmatpush1.bf16.msra.mxu0 0
        %840 = vmatprep.subr.bf16.mxu0 0
        %841 = vmatpush1.bf16.msra.mxu0 0
        %842 = vmatprep.subr.bf16.mxu0 0
        %843 = vmatpush1.bf16.msra.mxu0 0
        %844 = vmatprep.subr.bf16.mxu0 0
        %845 = vmatpush1.bf16.msra.mxu0 0
        %846 = vmatprep.subr.bf16.mxu0 0
        %847 = vmatpush1.bf16.msra.mxu0 0
        %848 = vmatprep.subr.bf16.mxu0 0
        %849 = vmatpush1.bf16.msra.mxu0 0
        %850 = vmatprep.mubr.bf16.mxu0 0
        %851 = vmatmul.mubr.bf16.gmra.mrb[0].mxu0 %v576
        %v852 = vpop.f32.mrb[0].mxu0
        %v853 = vadd.f32 0.0, %v852
        %v854 = vpop.f32.mrb[0].mxu0
        %v855 = vadd.f32 0.0, %v854
        %v856 = vpop.f32.mrb[0].mxu0
        %v857 = vpop.f32.mrb[0].mxu0
        %858 = vdwg.mxu0
        %v859 = vadd.f32 %v581, %v812
        %v860 = vadd.f32 %v582, %v814
        %v861 = vadd.f32 %v583, %v853
        %v862 = vadd.f32 %v584, %v855
        %v863 = vxor.u32 %v859, 2147483648
        %v864 = vxor.u32 %v860, 2147483648
        %v865 = vxor.u32 %v861, 2147483648
        %v866 = vmul.f32 %v863, 1.442695
        %v867 = vpow.pop %v866
        %v868 = vmul.f32 %v864, 1.442695
        %v869 = vpow.pop %v868
        %v870 = vmul.f32 %v865, 1.442695
        %v871 = vpow.pop %v870
        %v872 = vadd.f32 %v867, 1.0
        %v873 = vadd.f32 %v869, 1.0
        %v874 = vadd.f32 %v871, 1.0
        %v875 = vrcp.pop %v872
        %v876 = vmul.f32 1.0, %v875
        %v877 = vrcp.pop %v873
        %v878 = vmul.f32 1.0, %v877
        %v879 = vrcp.pop %v874
        %v880 = vmul.f32 1.0, %v879
        %v881 = vtanh.pop %v862
        %v882 = vmul.f32 %v878, %v573
        %v883 = vmul.f32 %v876, %v881
        %v884 = vadd.f32 %v882, %v883
        %v885 = vtanh.pop %v884
        %v886 = vmul.f32 %v880, %v885
        %v887 = vpack.c.bf16 %v886, %v886
        %s888 = scalar_lea.vmem %s248, 4
        %889 = vst [vmem:[%s888] sm:$0xf] %v887
        %s890 = scalar_lea.vmem %s225, 32
        %v891 = vld [vmem:[%s890] sm:$0xff]
        %v892 = vld [vmem:[%s890 + $0x8] sm:$0xff]
        %v893 = vunpack.c.l.bf16 %v891
        %v894 = vunpack.c.h.bf16 %v891
        %v895 = vunpack.c.l.bf16 %v892
        %v896 = vunpack.c.h.bf16 %v892
        %v897 = vld [vmem:[%s235] sm:$0xff]
        %v898 = vld [vmem:[%s235 + $0x8] sm:$0xff]
        %v899 = vld [vmem:[%s235 + $0x10] sm:$0xff]
        %v900 = vld [vmem:[%s235 + $0x18] sm:$0xff]
        %v901 = vld [vmem:[%s235 + $0x20] sm:$0xff]
        %v902 = vld [vmem:[%s235 + $0x28] sm:$0xff]
        %v903 = vld [vmem:[%s235 + $0x30] sm:$0xff]
        %v904 = vld [vmem:[%s235 + $0x38] sm:$0xff]
        %v905 = vld [vmem:[%s235 + $0x40] sm:$0xff]
        %v906 = vld [vmem:[%s235 + $0x48] sm:$0xff]
        %v907 = vld [vmem:[%s235 + $0x50] sm:$0xff]
        %v908 = vld [vmem:[%s235 + $0x58] sm:$0xff]
        %v909 = vld [vmem:[%s235 + $0x60] sm:$0xff]
        %v910 = vld [vmem:[%s235 + $0x68] sm:$0xff]
        %v911 = vld [vmem:[%s235 + $0x70] sm:$0xff]
        %v912 = vld [vmem:[%s235 + $0x78] sm:$0xff]
        %v913 = vld [vmem:[%s235 + $0x80] sm:$0xff]
        %v914 = vld [vmem:[%s235 + $0x88] sm:$0xff]
        %v915 = vld [vmem:[%s235 + $0x90] sm:$0xff]
        %v916 = vld [vmem:[%s235 + $0x98] sm:$0xff]
        %v917 = vld [vmem:[%s235 + $0xa0] sm:$0xff]
        %v918 = vld [vmem:[%s235 + $0xa8] sm:$0xff]
        %v919 = vld [vmem:[%s235 + $0xb0] sm:$0xff]
        %v920 = vld [vmem:[%s235 + $0xb8] sm:$0xff]
        %v921 = vld [vmem:[%s235 + $0xc0] sm:$0xff]
        %v922 = vld [vmem:[%s235 + $0xc8] sm:$0xff]
        %v923 = vld [vmem:[%s235 + $0xd0] sm:$0xff]
        %v924 = vld [vmem:[%s235 + $0xd8] sm:$0xff]
        %v925 = vld [vmem:[%s235 + $0xe0] sm:$0xff]
        %v926 = vld [vmem:[%s235 + $0xe8] sm:$0xff]
        %v927 = vld [vmem:[%s235 + $0xf0] sm:$0xff]
        %v928 = vld [vmem:[%s235 + $0xf8] sm:$0xff]
        %v961 = vunpack.c.l.b16 %v897
        %v962 = vunpack.c.h.b16 %v897
        %v963 = vunpack.c.l.b16 %v898
        %v964 = vunpack.c.h.b16 %v898
        %v965 = vunpack.c.l.b16 %v899
        %v966 = vunpack.c.h.b16 %v899
        %v967 = vunpack.c.l.b16 %v900
        %v968 = vunpack.c.h.b16 %v900
        %v969 = vunpack.c.l.b16 %v901
        %v970 = vunpack.c.h.b16 %v901
        %v971 = vunpack.c.l.b16 %v902
        %v972 = vunpack.c.h.b16 %v902
        %v973 = vunpack.c.l.b16 %v903
        %v974 = vunpack.c.h.b16 %v903
        %v975 = vunpack.c.l.b16 %v904
        %v976 = vunpack.c.h.b16 %v904
        %v977 = vunpack.c.l.b16 %v905
        %v978 = vunpack.c.h.b16 %v905
        %v979 = vunpack.c.l.b16 %v906
        %v980 = vunpack.c.h.b16 %v906
        %v981 = vunpack.c.l.b16 %v907
        %v982 = vunpack.c.h.b16 %v907
        %v983 = vunpack.c.l.b16 %v908
        %v984 = vunpack.c.h.b16 %v908
        %v985 = vunpack.c.l.b16 %v909
        %v986 = vunpack.c.h.b16 %v909
        %v987 = vunpack.c.l.b16 %v910
        %v988 = vunpack.c.h.b16 %v910
        %v989 = vunpack.c.l.b16 %v911
        %v990 = vunpack.c.h.b16 %v911
        %v991 = vunpack.c.l.b16 %v912
        %v992 = vunpack.c.h.b16 %v912
        %v993 = vunpack.c.l.b16 %v913
        %v994 = vunpack.c.h.b16 %v913
        %v995 = vunpack.c.l.b16 %v914
        %v996 = vunpack.c.h.b16 %v914
        %v997 = vunpack.c.l.b16 %v915
        %v998 = vunpack.c.h.b16 %v915
        %v999 = vunpack.c.l.b16 %v916
        %v1000 = vunpack.c.h.b16 %v916
        %v1001 = vunpack.c.l.b16 %v917
        %v1002 = vunpack.c.h.b16 %v917
        %v1003 = vunpack.c.l.b16 %v918
        %v1004 = vunpack.c.h.b16 %v918
        %v1005 = vunpack.c.l.b16 %v919
        %v1006 = vunpack.c.h.b16 %v919
        %v1007 = vunpack.c.l.b16 %v920
        %v1008 = vunpack.c.h.b16 %v920
        %v1009 = vunpack.c.l.b16 %v921
        %v1010 = vunpack.c.h.b16 %v921
        %v1011 = vunpack.c.l.b16 %v922
        %v1012 = vunpack.c.h.b16 %v922
        %v1013 = vunpack.c.l.b16 %v923
        %v1014 = vunpack.c.h.b16 %v923
        %v1015 = vunpack.c.l.b16 %v924
        %v1016 = vunpack.c.h.b16 %v924
        %v1017 = vunpack.c.l.b16 %v925
        %v1018 = vunpack.c.h.b16 %v925
        %v1019 = vunpack.c.l.b16 %v926
        %v1020 = vunpack.c.h.b16 %v926
        %v1021 = vunpack.c.l.b16 %v927
        %v1022 = vunpack.c.h.b16 %v927
        %v1023 = vunpack.c.l.b16 %v928
        %v1024 = vunpack.c.h.b16 %v928
        %v1025 = vpack.c.b16 %v965, %v961
        %v1026 = vpack.c.b16 %v966, %v962
        %v1027 = vpack.c.b16 %v967, %v963
        %v1028 = vpack.c.b16 %v968, %v964
        %v1029 = vpack.c.b16 %v973, %v969
        %v1030 = vpack.c.b16 %v974, %v970
        %v1031 = vpack.c.b16 %v975, %v971
        %v1032 = vpack.c.b16 %v976, %v972
        %v1033 = vpack.c.b16 %v981, %v977
        %v1034 = vpack.c.b16 %v982, %v978
        %v1035 = vpack.c.b16 %v983, %v979
        %v1036 = vpack.c.b16 %v984, %v980
        %v1037 = vpack.c.b16 %v989, %v985
        %v1038 = vpack.c.b16 %v990, %v986
        %v1039 = vpack.c.b16 %v991, %v987
        %v1040 = vpack.c.b16 %v992, %v988
        %v1041 = vpack.c.b16 %v997, %v993
        %v1042 = vpack.c.b16 %v998, %v994
        %v1043 = vpack.c.b16 %v999, %v995
        %v1044 = vpack.c.b16 %v1000, %v996
        %v1045 = vpack.c.b16 %v1005, %v1001
        %v1046 = vpack.c.b16 %v1006, %v1002
        %v1047 = vpack.c.b16 %v1007, %v1003
        %v1048 = vpack.c.b16 %v1008, %v1004
        %v1049 = vpack.c.b16 %v1013, %v1009
        %v1050 = vpack.c.b16 %v1014, %v1010
        %v1051 = vpack.c.b16 %v1015, %v1011
        %v1052 = vpack.c.b16 %v1016, %v1012
        %v1053 = vpack.c.b16 %v1021, %v1017
        %v1054 = vpack.c.b16 %v1022, %v1018
        %v1055 = vpack.c.b16 %v1023, %v1019
        %v1056 = vpack.c.b16 %v1024, %v1020
        %1089 = vmatprep.subr.bf16.mxu0 %v1026
        %1090 = vmatpush1.bf16.msra.mxu0 %v1025
        %1091 = vmatprep.subr.bf16.mxu0 %v1030
        %1092 = vmatpush1.bf16.msra.mxu0 %v1029
        %1093 = vmatprep.subr.bf16.mxu0 %v1034
        %1094 = vmatpush1.bf16.msra.mxu0 %v1033
        %1095 = vmatprep.subr.bf16.mxu0 %v1038
        %1096 = vmatpush1.bf16.msra.mxu0 %v1037
        %1097 = vmatprep.subr.bf16.mxu0 %v1042
        %1098 = vmatpush1.bf16.msra.mxu0 %v1041
        %1099 = vmatprep.subr.bf16.mxu0 %v1046
        %1100 = vmatpush1.bf16.msra.mxu0 %v1045
        %1101 = vmatprep.subr.bf16.mxu0 %v1050
        %1102 = vmatpush1.bf16.msra.mxu0 %v1049
        %1103 = vmatprep.subr.bf16.mxu0 %v1054
        %1104 = vmatpush1.bf16.msra.mxu0 %v1053
        %1105 = vmatprep.subr.bf16.mxu0 0
        %1106 = vmatpush1.bf16.msra.mxu0 0
        %1107 = vmatprep.subr.bf16.mxu0 0
        %1108 = vmatpush1.bf16.msra.mxu0 0
        %1109 = vmatprep.subr.bf16.mxu0 0
        %1110 = vmatpush1.bf16.msra.mxu0 0
        %1111 = vmatprep.subr.bf16.mxu0 0
        %1112 = vmatpush1.bf16.msra.mxu0 0
        %1113 = vmatprep.subr.bf16.mxu0 0
        %1114 = vmatpush1.bf16.msra.mxu0 0
        %1115 = vmatprep.subr.bf16.mxu0 0
        %1116 = vmatpush1.bf16.msra.mxu0 0
        %1117 = vmatprep.subr.bf16.mxu0 0
        %1118 = vmatpush1.bf16.msra.mxu0 0
        %1119 = vmatprep.subr.bf16.mxu0 0
        %1120 = vmatpush1.bf16.msra.mxu0 0
        %1121 = vmatprep.mubr.bf16.mxu0 0
        %1122 = vmatmul.mubr.bf16.gmra.mrb[0].mxu0 %v887
        %v1123 = vpop.f32.mrb[0].mxu0
        %v1124 = vadd.f32 0.0, %v1123
        %v1125 = vpop.f32.mrb[0].mxu0
        %v1126 = vadd.f32 0.0, %v1125
        %v1127 = vpop.f32.mrb[0].mxu0
        %v1128 = vpop.f32.mrb[0].mxu0
        %1129 = vdwg.mxu0
        %1130 = vmatprep.subr.bf16.mxu0 %v1028
        %1131 = vmatpush1.bf16.msra.mxu0 %v1027
        %1132 = vmatprep.subr.bf16.mxu0 %v1032
        %1133 = vmatpush1.bf16.msra.mxu0 %v1031
        %1134 = vmatprep.subr.bf16.mxu0 %v1036
        %1135 = vmatpush1.bf16.msra.mxu0 %v1035
        %1136 = vmatprep.subr.bf16.mxu0 %v1040
        %1137 = vmatpush1.bf16.msra.mxu0 %v1039
        %1138 = vmatprep.subr.bf16.mxu0 %v1044
        %1139 = vmatpush1.bf16.msra.mxu0 %v1043
        %1140 = vmatprep.subr.bf16.mxu0 %v1048
        %1141 = vmatpush1.bf16.msra.mxu0 %v1047
        %1142 = vmatprep.subr.bf16.mxu0 %v1052
        %1143 = vmatpush1.bf16.msra.mxu0 %v1051
        %1144 = vmatprep.subr.bf16.mxu0 %v1056
        %1145 = vmatpush1.bf16.msra.mxu0 %v1055
        %1146 = vmatprep.subr.bf16.mxu0 0
        %1147 = vmatpush1.bf16.msra.mxu0 0
        %1148 = vmatprep.subr.bf16.mxu0 0
        %1149 = vmatpush1.bf16.msra.mxu0 0
        %1150 = vmatprep.subr.bf16.mxu0 0
        %1151 = vmatpush1.bf16.msra.mxu0 0
        %1152 = vmatprep.subr.bf16.mxu0 0
        %1153 = vmatpush1.bf16.msra.mxu0 0
        %1154 = vmatprep.subr.bf16.mxu0 0
        %1155 = vmatpush1.bf16.msra.mxu0 0
        %1156 = vmatprep.subr.bf16.mxu0 0
        %1157 = vmatpush1.bf16.msra.mxu0 0
        %1158 = vmatprep.subr.bf16.mxu0 0
        %1159 = vmatpush1.bf16.msra.mxu0 0
        %1160 = vmatprep.subr.bf16.mxu0 0
        %1161 = vmatpush1.bf16.msra.mxu0 0
        %1162 = vmatprep.mubr.bf16.mxu0 0
        %1163 = vmatmul.mubr.bf16.gmra.mrb[0].mxu0 %v887
        %v1164 = vpop.f32.mrb[0].mxu0
        %v1165 = vadd.f32 0.0, %v1164
        %v1166 = vpop.f32.mrb[0].mxu0
        %v1167 = vadd.f32 0.0, %v1166
        %v1168 = vpop.f32.mrb[0].mxu0
        %v1169 = vpop.f32.mrb[0].mxu0
        %1170 = vdwg.mxu0
        %v1171 = vadd.f32 %v893, %v1124
        %v1172 = vadd.f32 %v894, %v1126
        %v1173 = vadd.f32 %v895, %v1165
        %v1174 = vadd.f32 %v896, %v1167
        %v1175 = vxor.u32 %v1171, 2147483648
        %v1176 = vxor.u32 %v1172, 2147483648
        %v1177 = vxor.u32 %v1173, 2147483648
        %v1178 = vmul.f32 %v1175, 1.442695
        %v1179 = vpow.pop %v1178
        %v1180 = vmul.f32 %v1176, 1.442695
        %v1181 = vpow.pop %v1180
        %v1182 = vmul.f32 %v1177, 1.442695
        %v1183 = vpow.pop %v1182
        %v1184 = vadd.f32 %v1179, 1.0
        %v1185 = vadd.f32 %v1181, 1.0
        %v1186 = vadd.f32 %v1183, 1.0
        %v1187 = vrcp.pop %v1184
        %v1188 = vmul.f32 1.0, %v1187
        %v1189 = vrcp.pop %v1185
        %v1190 = vmul.f32 1.0, %v1189
        %v1191 = vrcp.pop %v1186
        %v1192 = vmul.f32 1.0, %v1191
        %v1193 = vtanh.pop %v1174
        %v1194 = vmul.f32 %v1190, %v884
        %v1195 = vmul.f32 %v1188, %v1193
        %v1196 = vadd.f32 %v1194, %v1195
        %v1197 = vtanh.pop %v1196
        %v1198 = vmul.f32 %v1192, %v1197
        %v1199 = vpack.c.bf16 %v1198, %v1198
        %s1200 = scalar_lea.vmem %s248, 8
        %1201 = vst [vmem:[%s1200] sm:$0xf] %v1199
        %s1202 = scalar_lea.vmem %s225, 48
        %v1203 = vld [vmem:[%s1202] sm:$0xff]
        %v1204 = vld [vmem:[%s1202 + $0x8] sm:$0xff]
        %v1205 = vunpack.c.l.bf16 %v1203
        %v1206 = vunpack.c.h.bf16 %v1203
        %v1207 = vunpack.c.l.bf16 %v1204
        %v1208 = vunpack.c.h.bf16 %v1204
        %v1209 = vld [vmem:[%s235] sm:$0xff]
        %v1210 = vld [vmem:[%s235 + $0x8] sm:$0xff]
        %v1211 = vld [vmem:[%s235 + $0x10] sm:$0xff]
        %v1212 = vld [vmem:[%s235 + $0x18] sm:$0xff]
        %v1213 = vld [vmem:[%s235 + $0x20] sm:$0xff]
        %v1214 = vld [vmem:[%s235 + $0x28] sm:$0xff]
        %v1215 = vld [vmem:[%s235 + $0x30] sm:$0xff]
        %v1216 = vld [vmem:[%s235 + $0x38] sm:$0xff]
        %v1217 = vld [vmem:[%s235 + $0x40] sm:$0xff]
        %v1218 = vld [vmem:[%s235 + $0x48] sm:$0xff]
        %v1219 = vld [vmem:[%s235 + $0x50] sm:$0xff]
        %v1220 = vld [vmem:[%s235 + $0x58] sm:$0xff]
        %v1221 = vld [vmem:[%s235 + $0x60] sm:$0xff]
        %v1222 = vld [vmem:[%s235 + $0x68] sm:$0xff]
        %v1223 = vld [vmem:[%s235 + $0x70] sm:$0xff]
        %v1224 = vld [vmem:[%s235 + $0x78] sm:$0xff]
        %v1225 = vld [vmem:[%s235 + $0x80] sm:$0xff]
        %v1226 = vld [vmem:[%s235 + $0x88] sm:$0xff]
        %v1227 = vld [vmem:[%s235 + $0x90] sm:$0xff]
        %v1228 = vld [vmem:[%s235 + $0x98] sm:$0xff]
        %v1229 = vld [vmem:[%s235 + $0xa0] sm:$0xff]
        %v1230 = vld [vmem:[%s235 + $0xa8] sm:$0xff]
        %v1231 = vld [vmem:[%s235 + $0xb0] sm:$0xff]
        %v1232 = vld [vmem:[%s235 + $0xb8] sm:$0xff]
        %v1233 = vld [vmem:[%s235 + $0xc0] sm:$0xff]
        %v1234 = vld [vmem:[%s235 + $0xc8] sm:$0xff]
        %v1235 = vld [vmem:[%s235 + $0xd0] sm:$0xff]
        %v1236 = vld [vmem:[%s235 + $0xd8] sm:$0xff]
        %v1237 = vld [vmem:[%s235 + $0xe0] sm:$0xff]
        %v1238 = vld [vmem:[%s235 + $0xe8] sm:$0xff]
        %v1239 = vld [vmem:[%s235 + $0xf0] sm:$0xff]
        %v1240 = vld [vmem:[%s235 + $0xf8] sm:$0xff]
        %v1273 = vunpack.c.l.b16 %v1209
        %v1274 = vunpack.c.h.b16 %v1209
        %v1275 = vunpack.c.l.b16 %v1210
        %v1276 = vunpack.c.h.b16 %v1210
        %v1277 = vunpack.c.l.b16 %v1211
        %v1278 = vunpack.c.h.b16 %v1211
        %v1279 = vunpack.c.l.b16 %v1212
        %v1280 = vunpack.c.h.b16 %v1212
        %v1281 = vunpack.c.l.b16 %v1213
        %v1282 = vunpack.c.h.b16 %v1213
        %v1283 = vunpack.c.l.b16 %v1214
        %v1284 = vunpack.c.h.b16 %v1214
        %v1285 = vunpack.c.l.b16 %v1215
        %v1286 = vunpack.c.h.b16 %v1215
        %v1287 = vunpack.c.l.b16 %v1216
        %v1288 = vunpack.c.h.b16 %v1216
        %v1289 = vunpack.c.l.b16 %v1217
        %v1290 = vunpack.c.h.b16 %v1217
        %v1291 = vunpack.c.l.b16 %v1218
        %v1292 = vunpack.c.h.b16 %v1218
        %v1293 = vunpack.c.l.b16 %v1219
        %v1294 = vunpack.c.h.b16 %v1219
        %v1295 = vunpack.c.l.b16 %v1220
        %v1296 = vunpack.c.h.b16 %v1220
        %v1297 = vunpack.c.l.b16 %v1221
        %v1298 = vunpack.c.h.b16 %v1221
        %v1299 = vunpack.c.l.b16 %v1222
        %v1300 = vunpack.c.h.b16 %v1222
        %v1301 = vunpack.c.l.b16 %v1223
        %v1302 = vunpack.c.h.b16 %v1223
        %v1303 = vunpack.c.l.b16 %v1224
        %v1304 = vunpack.c.h.b16 %v1224
        %v1305 = vunpack.c.l.b16 %v1225
        %v1306 = vunpack.c.h.b16 %v1225
        %v1307 = vunpack.c.l.b16 %v1226
        %v1308 = vunpack.c.h.b16 %v1226
        %v1309 = vunpack.c.l.b16 %v1227
        %v1310 = vunpack.c.h.b16 %v1227
        %v1311 = vunpack.c.l.b16 %v1228
        %v1312 = vunpack.c.h.b16 %v1228
        %v1313 = vunpack.c.l.b16 %v1229
        %v1314 = vunpack.c.h.b16 %v1229
        %v1315 = vunpack.c.l.b16 %v1230
        %v1316 = vunpack.c.h.b16 %v1230
        %v1317 = vunpack.c.l.b16 %v1231
        %v1318 = vunpack.c.h.b16 %v1231
        %v1319 = vunpack.c.l.b16 %v1232
        %v1320 = vunpack.c.h.b16 %v1232
        %v1321 = vunpack.c.l.b16 %v1233
        %v1322 = vunpack.c.h.b16 %v1233
        %v1323 = vunpack.c.l.b16 %v1234
        %v1324 = vunpack.c.h.b16 %v1234
        %v1325 = vunpack.c.l.b16 %v1235
        %v1326 = vunpack.c.h.b16 %v1235
        %v1327 = vunpack.c.l.b16 %v1236
        %v1328 = vunpack.c.h.b16 %v1236
        %v1329 = vunpack.c.l.b16 %v1237
        %v1330 = vunpack.c.h.b16 %v1237
        %v1331 = vunpack.c.l.b16 %v1238
        %v1332 = vunpack.c.h.b16 %v1238
        %v1333 = vunpack.c.l.b16 %v1239
        %v1334 = vunpack.c.h.b16 %v1239
        %v1335 = vunpack.c.l.b16 %v1240
        %v1336 = vunpack.c.h.b16 %v1240
        %v1337 = vpack.c.b16 %v1277, %v1273
        %v1338 = vpack.c.b16 %v1278, %v1274
        %v1339 = vpack.c.b16 %v1279, %v1275
        %v1340 = vpack.c.b16 %v1280, %v1276
        %v1341 = vpack.c.b16 %v1285, %v1281
        %v1342 = vpack.c.b16 %v1286, %v1282
        %v1343 = vpack.c.b16 %v1287, %v1283
        %v1344 = vpack.c.b16 %v1288, %v1284
        %v1345 = vpack.c.b16 %v1293, %v1289
        %v1346 = vpack.c.b16 %v1294, %v1290
        %v1347 = vpack.c.b16 %v1295, %v1291
        %v1348 = vpack.c.b16 %v1296, %v1292
        %v1349 = vpack.c.b16 %v1301, %v1297
        %v1350 = vpack.c.b16 %v1302, %v1298
        %v1351 = vpack.c.b16 %v1303, %v1299
        %v1352 = vpack.c.b16 %v1304, %v1300
        %v1353 = vpack.c.b16 %v1309, %v1305
        %v1354 = vpack.c.b16 %v1310, %v1306
        %v1355 = vpack.c.b16 %v1311, %v1307
        %v1356 = vpack.c.b16 %v1312, %v1308
        %v1357 = vpack.c.b16 %v1317, %v1313
        %v1358 = vpack.c.b16 %v1318, %v1314
        %v1359 = vpack.c.b16 %v1319, %v1315
        %v1360 = vpack.c.b16 %v1320, %v1316
        %v1361 = vpack.c.b16 %v1325, %v1321
        %v1362 = vpack.c.b16 %v1326, %v1322
        %v1363 = vpack.c.b16 %v1327, %v1323
        %v1364 = vpack.c.b16 %v1328, %v1324
        %v1365 = vpack.c.b16 %v1333, %v1329
        %v1366 = vpack.c.b16 %v1334, %v1330
        %v1367 = vpack.c.b16 %v1335, %v1331
        %v1368 = vpack.c.b16 %v1336, %v1332
        %1401 = vmatprep.subr.bf16.mxu0 %v1338
        %1402 = vmatpush1.bf16.msra.mxu0 %v1337
        %1403 = vmatprep.subr.bf16.mxu0 %v1342
        %1404 = vmatpush1.bf16.msra.mxu0 %v1341
        %1405 = vmatprep.subr.bf16.mxu0 %v1346
        %1406 = vmatpush1.bf16.msra.mxu0 %v1345
        %1407 = vmatprep.subr.bf16.mxu0 %v1350
        %1408 = vmatpush1.bf16.msra.mxu0 %v1349
        %1409 = vmatprep.subr.bf16.mxu0 %v1354
        %1410 = vmatpush1.bf16.msra.mxu0 %v1353
        %1411 = vmatprep.subr.bf16.mxu0 %v1358
        %1412 = vmatpush1.bf16.msra.mxu0 %v1357
        %1413 = vmatprep.subr.bf16.mxu0 %v1362
        %1414 = vmatpush1.bf16.msra.mxu0 %v1361
        %1415 = vmatprep.subr.bf16.mxu0 %v1366
        %1416 = vmatpush1.bf16.msra.mxu0 %v1365
        %1417 = vmatprep.subr.bf16.mxu0 0
        %1418 = vmatpush1.bf16.msra.mxu0 0
        %1419 = vmatprep.subr.bf16.mxu0 0
        %1420 = vmatpush1.bf16.msra.mxu0 0
        %1421 = vmatprep.subr.bf16.mxu0 0
        %1422 = vmatpush1.bf16.msra.mxu0 0
        %1423 = vmatprep.subr.bf16.mxu0 0
        %1424 = vmatpush1.bf16.msra.mxu0 0
        %1425 = vmatprep.subr.bf16.mxu0 0
        %1426 = vmatpush1.bf16.msra.mxu0 0
        %1427 = vmatprep.subr.bf16.mxu0 0
        %1428 = vmatpush1.bf16.msra.mxu0 0
        %1429 = vmatprep.subr.bf16.mxu0 0
        %1430 = vmatpush1.bf16.msra.mxu0 0
        %1431 = vmatprep.subr.bf16.mxu0 0
        %1432 = vmatpush1.bf16.msra.mxu0 0
        %1433 = vmatprep.mubr.bf16.mxu0 0
        %1434 = vmatmul.mubr.bf16.gmra.mrb[0].mxu0 %v1199
        %v1435 = vpop.f32.mrb[0].mxu0
        %v1436 = vadd.f32 0.0, %v1435
        %v1437 = vpop.f32.mrb[0].mxu0
        %v1438 = vadd.f32 0.0, %v1437
        %v1439 = vpop.f32.mrb[0].mxu0
        %v1440 = vpop.f32.mrb[0].mxu0
        %1441 = vdwg.mxu0
        %1442 = vmatprep.subr.bf16.mxu0 %v1340
        %1443 = vmatpush1.bf16.msra.mxu0 %v1339
        %1444 = vmatprep.subr.bf16.mxu0 %v1344
        %1445 = vmatpush1.bf16.msra.mxu0 %v1343
        %1446 = vmatprep.subr.bf16.mxu0 %v1348
        %1447 = vmatpush1.bf16.msra.mxu0 %v1347
        %1448 = vmatprep.subr.bf16.mxu0 %v1352
        %1449 = vmatpush1.bf16.msra.mxu0 %v1351
        %1450 = vmatprep.subr.bf16.mxu0 %v1356
        %1451 = vmatpush1.bf16.msra.mxu0 %v1355
        %1452 = vmatprep.subr.bf16.mxu0 %v1360
        %1453 = vmatpush1.bf16.msra.mxu0 %v1359
        %1454 = vmatprep.subr.bf16.mxu0 %v1364
        %1455 = vmatpush1.bf16.msra.mxu0 %v1363
        %1456 = vmatprep.subr.bf16.mxu0 %v1368
        %1457 = vmatpush1.bf16.msra.mxu0 %v1367
        %1458 = vmatprep.subr.bf16.mxu0 0
        %1459 = vmatpush1.bf16.msra.mxu0 0
        %1460 = vmatprep.subr.bf16.mxu0 0
        %1461 = vmatpush1.bf16.msra.mxu0 0
        %1462 = vmatprep.subr.bf16.mxu0 0
        %1463 = vmatpush1.bf16.msra.mxu0 0
        %1464 = vmatprep.subr.bf16.mxu0 0
        %1465 = vmatpush1.bf16.msra.mxu0 0
        %1466 = vmatprep.subr.bf16.mxu0 0
        %1467 = vmatpush1.bf16.msra.mxu0 0
        %1468 = vmatprep.subr.bf16.mxu0 0
        %1469 = vmatpush1.bf16.msra.mxu0 0
        %1470 = vmatprep.subr.bf16.mxu0 0
        %1471 = vmatpush1.bf16.msra.mxu0 0
        %1472 = vmatprep.subr.bf16.mxu0 0
        %1473 = vmatpush1.bf16.msra.mxu0 0
        %1474 = vmatprep.mubr.bf16.mxu0 0
        %1475 = vmatmul.mubr.bf16.gmra.mrb[0].mxu0 %v1199
        %v1476 = vpop.f32.mrb[0].mxu0
        %v1477 = vadd.f32 0.0, %v1476
        %v1478 = vpop.f32.mrb[0].mxu0
        %v1479 = vadd.f32 0.0, %v1478
        %v1480 = vpop.f32.mrb[0].mxu0
        %v1481 = vpop.f32.mrb[0].mxu0
        %1482 = vdwg.mxu0
        %v1483 = vadd.f32 %v1205, %v1436
        %v1484 = vadd.f32 %v1206, %v1438
        %v1485 = vadd.f32 %v1207, %v1477
        %v1486 = vadd.f32 %v1208, %v1479
        %v1487 = vxor.u32 %v1483, 2147483648
        %v1488 = vxor.u32 %v1484, 2147483648
        %v1489 = vxor.u32 %v1485, 2147483648
        %v1490 = vmul.f32 %v1487, 1.442695
        %v1491 = vpow.pop %v1490
        %v1492 = vmul.f32 %v1488, 1.442695
        %v1493 = vpow.pop %v1492
        %v1494 = vmul.f32 %v1489, 1.442695
        %v1495 = vpow.pop %v1494
        %v1496 = vadd.f32 %v1491, 1.0
        %v1497 = vadd.f32 %v1493, 1.0
        %v1498 = vadd.f32 %v1495, 1.0
        %v1499 = vrcp.pop %v1496
        %v1500 = vmul.f32 1.0, %v1499
        %v1501 = vrcp.pop %v1497
        %v1502 = vmul.f32 1.0, %v1501
        %v1503 = vrcp.pop %v1498
        %v1504 = vmul.f32 1.0, %v1503
        %v1505 = vtanh.pop %v1486
        %v1506 = vmul.f32 %v1502, %v1196
        %v1507 = vmul.f32 %v1500, %v1505
        %v1508 = vadd.f32 %v1506, %v1507
        %v1509 = vtanh.pop %v1508
        %v1510 = vmul.f32 %v1504, %v1509
        %v1511 = vpack.c.bf16 %v1510, %v1510
        %s1512 = scalar_lea.vmem %s248, 12
        %1513 = vst [vmem:[%s1512] sm:$0xf] %v1511
        %s1514 = scalar_lea.vmem %s225, 64
        %v1515 = vld [vmem:[%s1514] sm:$0xff]
        %v1516 = vld [vmem:[%s1514 + $0x8] sm:$0xff]
        %v1517 = vunpack.c.l.bf16 %v1515
        %v1518 = vunpack.c.h.bf16 %v1515
        %v1519 = vunpack.c.l.bf16 %v1516
        %v1520 = vunpack.c.h.bf16 %v1516
        %v1521 = vld [vmem:[%s235] sm:$0xff]
        %v1522 = vld [vmem:[%s235 + $0x8] sm:$0xff]
        %v1523 = vld [vmem:[%s235 + $0x10] sm:$0xff]
        %v1524 = vld [vmem:[%s235 + $0x18] sm:$0xff]
        %v1525 = vld [vmem:[%s235 + $0x20] sm:$0xff]
        %v1526 = vld [vmem:[%s235 + $0x28] sm:$0xff]
        %v1527 = vld [vmem:[%s235 + $0x30] sm:$0xff]
        %v1528 = vld [vmem:[%s235 + $0x38] sm:$0xff]
        %v1529 = vld [vmem:[%s235 + $0x40] sm:$0xff]
        %v1530 = vld [vmem:[%s235 + $0x48] sm:$0xff]
        %v1531 = vld [vmem:[%s235 + $0x50] sm:$0xff]
        %v1532 = vld [vmem:[%s235 + $0x58] sm:$0xff]
        %v1533 = vld [vmem:[%s235 + $0x60] sm:$0xff]
        %v1534 = vld [vmem:[%s235 + $0x68] sm:$0xff]
        %v1535 = vld [vmem:[%s235 + $0x70] sm:$0xff]
        %v1536 = vld [vmem:[%s235 + $0x78] sm:$0xff]
        %v1537 = vld [vmem:[%s235 + $0x80] sm:$0xff]
        %v1538 = vld [vmem:[%s235 + $0x88] sm:$0xff]
        %v1539 = vld [vmem:[%s235 + $0x90] sm:$0xff]
        %v1540 = vld [vmem:[%s235 + $0x98] sm:$0xff]
        %v1541 = vld [vmem:[%s235 + $0xa0] sm:$0xff]
        %v1542 = vld [vmem:[%s235 + $0xa8] sm:$0xff]
        %v1543 = vld [vmem:[%s235 + $0xb0] sm:$0xff]
        %v1544 = vld [vmem:[%s235 + $0xb8] sm:$0xff]
        %v1545 = vld [vmem:[%s235 + $0xc0] sm:$0xff]
        %v1546 = vld [vmem:[%s235 + $0xc8] sm:$0xff]
        %v1547 = vld [vmem:[%s235 + $0xd0] sm:$0xff]
        %v1548 = vld [vmem:[%s235 + $0xd8] sm:$0xff]
        %v1549 = vld [vmem:[%s235 + $0xe0] sm:$0xff]
        %v1550 = vld [vmem:[%s235 + $0xe8] sm:$0xff]
        %v1551 = vld [vmem:[%s235 + $0xf0] sm:$0xff]
        %v1552 = vld [vmem:[%s235 + $0xf8] sm:$0xff]
        %v1585 = vunpack.c.l.b16 %v1521
        %v1586 = vunpack.c.h.b16 %v1521
        %v1587 = vunpack.c.l.b16 %v1522
        %v1588 = vunpack.c.h.b16 %v1522
        %v1589 = vunpack.c.l.b16 %v1523
        %v1590 = vunpack.c.h.b16 %v1523
        %v1591 = vunpack.c.l.b16 %v1524
        %v1592 = vunpack.c.h.b16 %v1524
        %v1593 = vunpack.c.l.b16 %v1525
        %v1594 = vunpack.c.h.b16 %v1525
        %v1595 = vunpack.c.l.b16 %v1526
        %v1596 = vunpack.c.h.b16 %v1526
        %v1597 = vunpack.c.l.b16 %v1527
        %v1598 = vunpack.c.h.b16 %v1527
        %v1599 = vunpack.c.l.b16 %v1528
        %v1600 = vunpack.c.h.b16 %v1528
        %v1601 = vunpack.c.l.b16 %v1529
        %v1602 = vunpack.c.h.b16 %v1529
        %v1603 = vunpack.c.l.b16 %v1530
        %v1604 = vunpack.c.h.b16 %v1530
        %v1605 = vunpack.c.l.b16 %v1531
        %v1606 = vunpack.c.h.b16 %v1531
        %v1607 = vunpack.c.l.b16 %v1532
        %v1608 = vunpack.c.h.b16 %v1532
        %v1609 = vunpack.c.l.b16 %v1533
        %v1610 = vunpack.c.h.b16 %v1533
        %v1611 = vunpack.c.l.b16 %v1534
        %v1612 = vunpack.c.h.b16 %v1534
        %v1613 = vunpack.c.l.b16 %v1535
        %v1614 = vunpack.c.h.b16 %v1535
        %v1615 = vunpack.c.l.b16 %v1536
        %v1616 = vunpack.c.h.b16 %v1536
        %v1617 = vunpack.c.l.b16 %v1537
        %v1618 = vunpack.c.h.b16 %v1537
        %v1619 = vunpack.c.l.b16 %v1538
        %v1620 = vunpack.c.h.b16 %v1538
        %v1621 = vunpack.c.l.b16 %v1539
        %v1622 = vunpack.c.h.b16 %v1539
        %v1623 = vunpack.c.l.b16 %v1540
        %v1624 = vunpack.c.h.b16 %v1540
        %v1625 = vunpack.c.l.b16 %v1541
        %v1626 = vunpack.c.h.b16 %v1541
        %v1627 = vunpack.c.l.b16 %v1542
        %v1628 = vunpack.c.h.b16 %v1542
        %v1629 = vunpack.c.l.b16 %v1543
        %v1630 = vunpack.c.h.b16 %v1543
        %v1631 = vunpack.c.l.b16 %v1544
        %v1632 = vunpack.c.h.b16 %v1544
        %v1633 = vunpack.c.l.b16 %v1545
        %v1634 = vunpack.c.h.b16 %v1545
        %v1635 = vunpack.c.l.b16 %v1546
        %v1636 = vunpack.c.h.b16 %v1546
        %v1637 = vunpack.c.l.b16 %v1547
        %v1638 = vunpack.c.h.b16 %v1547
        %v1639 = vunpack.c.l.b16 %v1548
        %v1640 = vunpack.c.h.b16 %v1548
        %v1641 = vunpack.c.l.b16 %v1549
        %v1642 = vunpack.c.h.b16 %v1549
        %v1643 = vunpack.c.l.b16 %v1550
        %v1644 = vunpack.c.h.b16 %v1550
        %v1645 = vunpack.c.l.b16 %v1551
        %v1646 = vunpack.c.h.b16 %v1551
        %v1647 = vunpack.c.l.b16 %v1552
        %v1648 = vunpack.c.h.b16 %v1552
        %v1649 = vpack.c.b16 %v1589, %v1585
        %v1650 = vpack.c.b16 %v1590, %v1586
        %v1651 = vpack.c.b16 %v1591, %v1587
        %v1652 = vpack.c.b16 %v1592, %v1588
        %v1653 = vpack.c.b16 %v1597, %v1593
        %v1654 = vpack.c.b16 %v1598, %v1594
        %v1655 = vpack.c.b16 %v1599, %v1595
        %v1656 = vpack.c.b16 %v1600, %v1596
        %v1657 = vpack.c.b16 %v1605, %v1601
        %v1658 = vpack.c.b16 %v1606, %v1602
        %v1659 = vpack.c.b16 %v1607, %v1603
        %v1660 = vpack.c.b16 %v1608, %v1604
        %v1661 = vpack.c.b16 %v1613, %v1609
        %v1662 = vpack.c.b16 %v1614, %v1610
        %v1663 = vpack.c.b16 %v1615, %v1611
        %v1664 = vpack.c.b16 %v1616, %v1612
        %v1665 = vpack.c.b16 %v1621, %v1617
        %v1666 = vpack.c.b16 %v1622, %v1618
        %v1667 = vpack.c.b16 %v1623, %v1619
        %v1668 = vpack.c.b16 %v1624, %v1620
        %v1669 = vpack.c.b16 %v1629, %v1625
        %v1670 = vpack.c.b16 %v1630, %v1626
        %v1671 = vpack.c.b16 %v1631, %v1627
        %v1672 = vpack.c.b16 %v1632, %v1628
        %v1673 = vpack.c.b16 %v1637, %v1633
        %v1674 = vpack.c.b16 %v1638, %v1634
        %v1675 = vpack.c.b16 %v1639, %v1635
        %v1676 = vpack.c.b16 %v1640, %v1636
        %v1677 = vpack.c.b16 %v1645, %v1641
        %v1678 = vpack.c.b16 %v1646, %v1642
        %v1679 = vpack.c.b16 %v1647, %v1643
        %v1680 = vpack.c.b16 %v1648, %v1644
        %1713 = vmatprep.subr.bf16.mxu0 %v1650
        %1714 = vmatpush1.bf16.msra.mxu0 %v1649
        %1715 = vmatprep.subr.bf16.mxu0 %v1654
        %1716 = vmatpush1.bf16.msra.mxu0 %v1653
        %1717 = vmatprep.subr.bf16.mxu0 %v1658
        %1718 = vmatpush1.bf16.msra.mxu0 %v1657
        %1719 = vmatprep.subr.bf16.mxu0 %v1662
        %1720 = vmatpush1.bf16.msra.mxu0 %v1661
        %1721 = vmatprep.subr.bf16.mxu0 %v1666
        %1722 = vmatpush1.bf16.msra.mxu0 %v1665
        %1723 = vmatprep.subr.bf16.mxu0 %v1670
        %1724 = vmatpush1.bf16.msra.mxu0 %v1669
        %1725 = vmatprep.subr.bf16.mxu0 %v1674
        %1726 = vmatpush1.bf16.msra.mxu0 %v1673
        %1727 = vmatprep.subr.bf16.mxu0 %v1678
        %1728 = vmatpush1.bf16.msra.mxu0 %v1677
        %1729 = vmatprep.subr.bf16.mxu0 0
        %1730 = vmatpush1.bf16.msra.mxu0 0
        %1731 = vmatprep.subr.bf16.mxu0 0
        %1732 = vmatpush1.bf16.msra.mxu0 0
        %1733 = vmatprep.subr.bf16.mxu0 0
        %1734 = vmatpush1.bf16.msra.mxu0 0
        %1735 = vmatprep.subr.bf16.mxu0 0
        %1736 = vmatpush1.bf16.msra.mxu0 0
        %1737 = vmatprep.subr.bf16.mxu0 0
        %1738 = vmatpush1.bf16.msra.mxu0 0
        %1739 = vmatprep.subr.bf16.mxu0 0
        %1740 = vmatpush1.bf16.msra.mxu0 0
        %1741 = vmatprep.subr.bf16.mxu0 0
        %1742 = vmatpush1.bf16.msra.mxu0 0
        %1743 = vmatprep.subr.bf16.mxu0 0
        %1744 = vmatpush1.bf16.msra.mxu0 0
        %1745 = vmatprep.mubr.bf16.mxu0 0
        %1746 = vmatmul.mubr.bf16.gmra.mrb[0].mxu0 %v1511
        %v1747 = vpop.f32.mrb[0].mxu0
        %v1748 = vadd.f32 0.0, %v1747
        %v1749 = vpop.f32.mrb[0].mxu0
        %v1750 = vadd.f32 0.0, %v1749
        %v1751 = vpop.f32.mrb[0].mxu0
        %v1752 = vpop.f32.mrb[0].mxu0
        %1753 = vdwg.mxu0
        %1754 = vmatprep.subr.bf16.mxu0 %v1652
        %1755 = vmatpush1.bf16.msra.mxu0 %v1651
        %1756 = vmatprep.subr.bf16.mxu0 %v1656
        %1757 = vmatpush1.bf16.msra.mxu0 %v1655
        %1758 = vmatprep.subr.bf16.mxu0 %v1660
        %1759 = vmatpush1.bf16.msra.mxu0 %v1659
        %1760 = vmatprep.subr.bf16.mxu0 %v1664
        %1761 = vmatpush1.bf16.msra.mxu0 %v1663
        %1762 = vmatprep.subr.bf16.mxu0 %v1668
        %1763 = vmatpush1.bf16.msra.mxu0 %v1667
        %1764 = vmatprep.subr.bf16.mxu0 %v1672
        %1765 = vmatpush1.bf16.msra.mxu0 %v1671
        %1766 = vmatprep.subr.bf16.mxu0 %v1676
        %1767 = vmatpush1.bf16.msra.mxu0 %v1675
        %1768 = vmatprep.subr.bf16.mxu0 %v1680
        %1769 = vmatpush1.bf16.msra.mxu0 %v1679
        %1770 = vmatprep.subr.bf16.mxu0 0
        %1771 = vmatpush1.bf16.msra.mxu0 0
        %1772 = vmatprep.subr.bf16.mxu0 0
        %1773 = vmatpush1.bf16.msra.mxu0 0
        %1774 = vmatprep.subr.bf16.mxu0 0
        %1775 = vmatpush1.bf16.msra.mxu0 0
        %1776 = vmatprep.subr.bf16.mxu0 0
        %1777 = vmatpush1.bf16.msra.mxu0 0
        %1778 = vmatprep.subr.bf16.mxu0 0
        %1779 = vmatpush1.bf16.msra.mxu0 0
        %1780 = vmatprep.subr.bf16.mxu0 0
        %1781 = vmatpush1.bf16.msra.mxu0 0
        %1782 = vmatprep.subr.bf16.mxu0 0
        %1783 = vmatpush1.bf16.msra.mxu0 0
        %1784 = vmatprep.subr.bf16.mxu0 0
        %1785 = vmatpush1.bf16.msra.mxu0 0
        %1786 = vmatprep.mubr.bf16.mxu0 0
        %1787 = vmatmul.mubr.bf16.gmra.mrb[0].mxu0 %v1511
        %v1788 = vpop.f32.mrb[0].mxu0
        %v1789 = vadd.f32 0.0, %v1788
        %v1790 = vpop.f32.mrb[0].mxu0
        %v1791 = vadd.f32 0.0, %v1790
        %v1792 = vpop.f32.mrb[0].mxu0
        %v1793 = vpop.f32.mrb[0].mxu0
        %1794 = vdwg.mxu0
        %v1795 = vadd.f32 %v1517, %v1748
        %v1796 = vadd.f32 %v1518, %v1750
        %v1797 = vadd.f32 %v1519, %v1789
        %v1798 = vadd.f32 %v1520, %v1791
        %v1799 = vxor.u32 %v1795, 2147483648
        %v1800 = vxor.u32 %v1796, 2147483648
        %v1801 = vxor.u32 %v1797, 2147483648
        %v1802 = vmul.f32 %v1799, 1.442695
        %v1803 = vpow.pop %v1802
        %v1804 = vmul.f32 %v1800, 1.442695
        %v1805 = vpow.pop %v1804
        %v1806 = vmul.f32 %v1801, 1.442695
        %v1807 = vpow.pop %v1806
        %v1808 = vadd.f32 %v1803, 1.0
        %v1809 = vadd.f32 %v1805, 1.0
        %v1810 = vadd.f32 %v1807, 1.0
        %v1811 = vrcp.pop %v1808
        %v1812 = vmul.f32 1.0, %v1811
        %v1813 = vrcp.pop %v1809
        %v1814 = vmul.f32 1.0, %v1813
        %v1815 = vrcp.pop %v1810
        %v1816 = vmul.f32 1.0, %v1815
        %v1817 = vtanh.pop %v1798
        %v1818 = vmul.f32 %v1814, %v1508
        %v1819 = vmul.f32 %v1812, %v1817
        %v1820 = vadd.f32 %v1818, %v1819
        %v1821 = vtanh.pop %v1820
        %v1822 = vmul.f32 %v1816, %v1821
        %v1823 = vpack.c.bf16 %v1822, %v1822
        %s1824 = scalar_lea.vmem %s248, 16
        %1825 = vst [vmem:[%s1824] sm:$0xf] %v1823
        %s1826 = scalar_lea.vmem %s225, 80
        %v1827 = vld [vmem:[%s1826] sm:$0xff]
        %v1828 = vld [vmem:[%s1826 + $0x8] sm:$0xff]
        %v1829 = vunpack.c.l.bf16 %v1827
        %v1830 = vunpack.c.h.bf16 %v1827
        %v1831 = vunpack.c.l.bf16 %v1828
        %v1832 = vunpack.c.h.bf16 %v1828
        %v1833 = vld [vmem:[%s235] sm:$0xff]
        %v1834 = vld [vmem:[%s235 + $0x8] sm:$0xff]
        %v1835 = vld [vmem:[%s235 + $0x10] sm:$0xff]
        %v1836 = vld [vmem:[%s235 + $0x18] sm:$0xff]
        %v1837 = vld [vmem:[%s235 + $0x20] sm:$0xff]
        %v1838 = vld [vmem:[%s235 + $0x28] sm:$0xff]
        %v1839 = vld [vmem:[%s235 + $0x30] sm:$0xff]
        %v1840 = vld [vmem:[%s235 + $0x38] sm:$0xff]
        %v1841 = vld [vmem:[%s235 + $0x40] sm:$0xff]
        %v1842 = vld [vmem:[%s235 + $0x48] sm:$0xff]
        %v1843 = vld [vmem:[%s235 + $0x50] sm:$0xff]
        %v1844 = vld [vmem:[%s235 + $0x58] sm:$0xff]
        %v1845 = vld [vmem:[%s235 + $0x60] sm:$0xff]
        %v1846 = vld [vmem:[%s235 + $0x68] sm:$0xff]
        %v1847 = vld [vmem:[%s235 + $0x70] sm:$0xff]
        %v1848 = vld [vmem:[%s235 + $0x78] sm:$0xff]
        %v1849 = vld [vmem:[%s235 + $0x80] sm:$0xff]
        %v1850 = vld [vmem:[%s235 + $0x88] sm:$0xff]
        %v1851 = vld [vmem:[%s235 + $0x90] sm:$0xff]
        %v1852 = vld [vmem:[%s235 + $0x98] sm:$0xff]
        %v1853 = vld [vmem:[%s235 + $0xa0] sm:$0xff]
        %v1854 = vld [vmem:[%s235 + $0xa8] sm:$0xff]
        %v1855 = vld [vmem:[%s235 + $0xb0] sm:$0xff]
        %v1856 = vld [vmem:[%s235 + $0xb8] sm:$0xff]
        %v1857 = vld [vmem:[%s235 + $0xc0] sm:$0xff]
        %v1858 = vld [vmem:[%s235 + $0xc8] sm:$0xff]
        %v1859 = vld [vmem:[%s235 + $0xd0] sm:$0xff]
        %v1860 = vld [vmem:[%s235 + $0xd8] sm:$0xff]
        %v1861 = vld [vmem:[%s235 + $0xe0] sm:$0xff]
        %v1862 = vld [vmem:[%s235 + $0xe8] sm:$0xff]
        %v1863 = vld [vmem:[%s235 + $0xf0] sm:$0xff]
        %v1864 = vld [vmem:[%s235 + $0xf8] sm:$0xff]
        %v1897 = vunpack.c.l.b16 %v1833
        %v1898 = vunpack.c.h.b16 %v1833
        %v1899 = vunpack.c.l.b16 %v1834
        %v1900 = vunpack.c.h.b16 %v1834
        %v1901 = vunpack.c.l.b16 %v1835
        %v1902 = vunpack.c.h.b16 %v1835
        %v1903 = vunpack.c.l.b16 %v1836
        %v1904 = vunpack.c.h.b16 %v1836
        %v1905 = vunpack.c.l.b16 %v1837
        %v1906 = vunpack.c.h.b16 %v1837
        %v1907 = vunpack.c.l.b16 %v1838
        %v1908 = vunpack.c.h.b16 %v1838
        %v1909 = vunpack.c.l.b16 %v1839
        %v1910 = vunpack.c.h.b16 %v1839
        %v1911 = vunpack.c.l.b16 %v1840
        %v1912 = vunpack.c.h.b16 %v1840
        %v1913 = vunpack.c.l.b16 %v1841
        %v1914 = vunpack.c.h.b16 %v1841
        %v1915 = vunpack.c.l.b16 %v1842
        %v1916 = vunpack.c.h.b16 %v1842
        %v1917 = vunpack.c.l.b16 %v1843
        %v1918 = vunpack.c.h.b16 %v1843
        %v1919 = vunpack.c.l.b16 %v1844
        %v1920 = vunpack.c.h.b16 %v1844
        %v1921 = vunpack.c.l.b16 %v1845
        %v1922 = vunpack.c.h.b16 %v1845
        %v1923 = vunpack.c.l.b16 %v1846
        %v1924 = vunpack.c.h.b16 %v1846
        %v1925 = vunpack.c.l.b16 %v1847
        %v1926 = vunpack.c.h.b16 %v1847
        %v1927 = vunpack.c.l.b16 %v1848
        %v1928 = vunpack.c.h.b16 %v1848
        %v1929 = vunpack.c.l.b16 %v1849
        %v1930 = vunpack.c.h.b16 %v1849
        %v1931 = vunpack.c.l.b16 %v1850
        %v1932 = vunpack.c.h.b16 %v1850
        %v1933 = vunpack.c.l.b16 %v1851
        %v1934 = vunpack.c.h.b16 %v1851
        %v1935 = vunpack.c.l.b16 %v1852
        %v1936 = vunpack.c.h.b16 %v1852
        %v1937 = vunpack.c.l.b16 %v1853
        %v1938 = vunpack.c.h.b16 %v1853
        %v1939 = vunpack.c.l.b16 %v1854
        %v1940 = vunpack.c.h.b16 %v1854
        %v1941 = vunpack.c.l.b16 %v1855
        %v1942 = vunpack.c.h.b16 %v1855
        %v1943 = vunpack.c.l.b16 %v1856
        %v1944 = vunpack.c.h.b16 %v1856
        %v1945 = vunpack.c.l.b16 %v1857
        %v1946 = vunpack.c.h.b16 %v1857
        %v1947 = vunpack.c.l.b16 %v1858
        %v1948 = vunpack.c.h.b16 %v1858
        %v1949 = vunpack.c.l.b16 %v1859
        %v1950 = vunpack.c.h.b16 %v1859
        %v1951 = vunpack.c.l.b16 %v1860
        %v1952 = vunpack.c.h.b16 %v1860
        %v1953 = vunpack.c.l.b16 %v1861
        %v1954 = vunpack.c.h.b16 %v1861
        %v1955 = vunpack.c.l.b16 %v1862
        %v1956 = vunpack.c.h.b16 %v1862
        %v1957 = vunpack.c.l.b16 %v1863
        %v1958 = vunpack.c.h.b16 %v1863
        %v1959 = vunpack.c.l.b16 %v1864
        %v1960 = vunpack.c.h.b16 %v1864
        %v1961 = vpack.c.b16 %v1901, %v1897
        %v1962 = vpack.c.b16 %v1902, %v1898
        %v1963 = vpack.c.b16 %v1903, %v1899
        %v1964 = vpack.c.b16 %v1904, %v1900
        %v1965 = vpack.c.b16 %v1909, %v1905
        %v1966 = vpack.c.b16 %v1910, %v1906
        %v1967 = vpack.c.b16 %v1911, %v1907
        %v1968 = vpack.c.b16 %v1912, %v1908
        %v1969 = vpack.c.b16 %v1917, %v1913
        %v1970 = vpack.c.b16 %v1918, %v1914
        %v1971 = vpack.c.b16 %v1919, %v1915
        %v1972 = vpack.c.b16 %v1920, %v1916
        %v1973 = vpack.c.b16 %v1925, %v1921
        %v1974 = vpack.c.b16 %v1926, %v1922
        %v1975 = vpack.c.b16 %v1927, %v1923
        %v1976 = vpack.c.b16 %v1928, %v1924
        %v1977 = vpack.c.b16 %v1933, %v1929
        %v1978 = vpack.c.b16 %v1934, %v1930
        %v1979 = vpack.c.b16 %v1935, %v1931
        %v1980 = vpack.c.b16 %v1936, %v1932
        %v1981 = vpack.c.b16 %v1941, %v1937
        %v1982 = vpack.c.b16 %v1942, %v1938
        %v1983 = vpack.c.b16 %v1943, %v1939
        %v1984 = vpack.c.b16 %v1944, %v1940
        %v1985 = vpack.c.b16 %v1949, %v1945
        %v1986 = vpack.c.b16 %v1950, %v1946
        %v1987 = vpack.c.b16 %v1951, %v1947
        %v1988 = vpack.c.b16 %v1952, %v1948
        %v1989 = vpack.c.b16 %v1957, %v1953
        %v1990 = vpack.c.b16 %v1958, %v1954
        %v1991 = vpack.c.b16 %v1959, %v1955
        %v1992 = vpack.c.b16 %v1960, %v1956
        %2025 = vmatprep.subr.bf16.mxu0 %v1962
        %2026 = vmatpush1.bf16.msra.mxu0 %v1961
        %2027 = vmatprep.subr.bf16.mxu0 %v1966
        %2028 = vmatpush1.bf16.msra.mxu0 %v1965
        %2029 = vmatprep.subr.bf16.mxu0 %v1970
        %2030 = vmatpush1.bf16.msra.mxu0 %v1969
        %2031 = vmatprep.subr.bf16.mxu0 %v1974
        %2032 = vmatpush1.bf16.msra.mxu0 %v1973
        %2033 = vmatprep.subr.bf16.mxu0 %v1978
        %2034 = vmatpush1.bf16.msra.mxu0 %v1977
        %2035 = vmatprep.subr.bf16.mxu0 %v1982
        %2036 = vmatpush1.bf16.msra.mxu0 %v1981
        %2037 = vmatprep.subr.bf16.mxu0 %v1986
        %2038 = vmatpush1.bf16.msra.mxu0 %v1985
        %2039 = vmatprep.subr.bf16.mxu0 %v1990
        %2040 = vmatpush1.bf16.msra.mxu0 %v1989
        %2041 = vmatprep.subr.bf16.mxu0 0
        %2042 = vmatpush1.bf16.msra.mxu0 0
        %2043 = vmatprep.subr.bf16.mxu0 0
        %2044 = vmatpush1.bf16.msra.mxu0 0
        %2045 = vmatprep.subr.bf16.mxu0 0
        %2046 = vmatpush1.bf16.msra.mxu0 0
        %2047 = vmatprep.subr.bf16.mxu0 0
        %2048 = vmatpush1.bf16.msra.mxu0 0
        %2049 = vmatprep.subr.bf16.mxu0 0
        %2050 = vmatpush1.bf16.msra.mxu0 0
        %2051 = vmatprep.subr.bf16.mxu0 0
        %2052 = vmatpush1.bf16.msra.mxu0 0
        %2053 = vmatprep.subr.bf16.mxu0 0
        %2054 = vmatpush1.bf16.msra.mxu0 0
        %2055 = vmatprep.subr.bf16.mxu0 0
        %2056 = vmatpush1.bf16.msra.mxu0 0
        %2057 = vmatprep.mubr.bf16.mxu0 0
        %2058 = vmatmul.mubr.bf16.gmra.mrb[0].mxu0 %v1823
        %v2059 = vpop.f32.mrb[0].mxu0
        %v2060 = vadd.f32 0.0, %v2059
        %v2061 = vpop.f32.mrb[0].mxu0
        %v2062 = vadd.f32 0.0, %v2061
        %v2063 = vpop.f32.mrb[0].mxu0
        %v2064 = vpop.f32.mrb[0].mxu0
        %2065 = vdwg.mxu0
        %2066 = vmatprep.subr.bf16.mxu0 %v1964
        %2067 = vmatpush1.bf16.msra.mxu0 %v1963
        %2068 = vmatprep.subr.bf16.mxu0 %v1968
        %2069 = vmatpush1.bf16.msra.mxu0 %v1967
        %2070 = vmatprep.subr.bf16.mxu0 %v1972
        %2071 = vmatpush1.bf16.msra.mxu0 %v1971
        %2072 = vmatprep.subr.bf16.mxu0 %v1976
        %2073 = vmatpush1.bf16.msra.mxu0 %v1975
        %2074 = vmatprep.subr.bf16.mxu0 %v1980
        %2075 = vmatpush1.bf16.msra.mxu0 %v1979
        %2076 = vmatprep.subr.bf16.mxu0 %v1984
        %2077 = vmatpush1.bf16.msra.mxu0 %v1983
        %2078 = vmatprep.subr.bf16.mxu0 %v1988
        %2079 = vmatpush1.bf16.msra.mxu0 %v1987
        %2080 = vmatprep.subr.bf16.mxu0 %v1992
        %2081 = vmatpush1.bf16.msra.mxu0 %v1991
        %2082 = vmatprep.subr.bf16.mxu0 0
        %2083 = vmatpush1.bf16.msra.mxu0 0
        %2084 = vmatprep.subr.bf16.mxu0 0
        %2085 = vmatpush1.bf16.msra.mxu0 0
        %2086 = vmatprep.subr.bf16.mxu0 0
        %2087 = vmatpush1.bf16.msra.mxu0 0
        %2088 = vmatprep.subr.bf16.mxu0 0
        %2089 = vmatpush1.bf16.msra.mxu0 0
        %2090 = vmatprep.subr.bf16.mxu0 0
        %2091 = vmatpush1.bf16.msra.mxu0 0
        %2092 = vmatprep.subr.bf16.mxu0 0
        %2093 = vmatpush1.bf16.msra.mxu0 0
        %2094 = vmatprep.subr.bf16.mxu0 0
        %2095 = vmatpush1.bf16.msra.mxu0 0
        %2096 = vmatprep.subr.bf16.mxu0 0
        %2097 = vmatpush1.bf16.msra.mxu0 0
        %2098 = vmatprep.mubr.bf16.mxu0 0
        %2099 = vmatmul.mubr.bf16.gmra.mrb[0].mxu0 %v1823
        %v2100 = vpop.f32.mrb[0].mxu0
        %v2101 = vadd.f32 0.0, %v2100
        %v2102 = vpop.f32.mrb[0].mxu0
        %v2103 = vadd.f32 0.0, %v2102
        %v2104 = vpop.f32.mrb[0].mxu0
        %v2105 = vpop.f32.mrb[0].mxu0
        %2106 = vdwg.mxu0
        %v2107 = vadd.f32 %v1829, %v2060
        %v2108 = vadd.f32 %v1830, %v2062
        %v2109 = vadd.f32 %v1831, %v2101
        %v2110 = vadd.f32 %v1832, %v2103
        %v2111 = vxor.u32 %v2107, 2147483648
        %v2112 = vxor.u32 %v2108, 2147483648
        %v2113 = vxor.u32 %v2109, 2147483648
        %v2114 = vmul.f32 %v2111, 1.442695
        %v2115 = vpow.pop %v2114
        %v2116 = vmul.f32 %v2112, 1.442695
        %v2117 = vpow.pop %v2116
        %v2118 = vmul.f32 %v2113, 1.442695
        %v2119 = vpow.pop %v2118
        %v2120 = vadd.f32 %v2115, 1.0
        %v2121 = vadd.f32 %v2117, 1.0
        %v2122 = vadd.f32 %v2119, 1.0
        %v2123 = vrcp.pop %v2120
        %v2124 = vmul.f32 1.0, %v2123
        %v2125 = vrcp.pop %v2121
        %v2126 = vmul.f32 1.0, %v2125
        %v2127 = vrcp.pop %v2122
        %v2128 = vmul.f32 1.0, %v2127
        %v2129 = vtanh.pop %v2110
        %v2130 = vmul.f32 %v2126, %v1820
        %v2131 = vmul.f32 %v2124, %v2129
        %v2132 = vadd.f32 %v2130, %v2131
        %v2133 = vtanh.pop %v2132
        %v2134 = vmul.f32 %v2128, %v2133
        %v2135 = vpack.c.bf16 %v2134, %v2134
        %s2136 = scalar_lea.vmem %s248, 20
        %2137 = vst [vmem:[%s2136] sm:$0xf] %v2135
        %s2138 = scalar_lea.vmem %s225, 96
        %v2139 = vld [vmem:[%s2138] sm:$0xff]
        %v2140 = vld [vmem:[%s2138 + $0x8] sm:$0xff]
        %v2141 = vunpack.c.l.bf16 %v2139
        %v2142 = vunpack.c.h.bf16 %v2139
        %v2143 = vunpack.c.l.bf16 %v2140
        %v2144 = vunpack.c.h.bf16 %v2140
        %v2145 = vld [vmem:[%s235] sm:$0xff]
        %v2146 = vld [vmem:[%s235 + $0x8] sm:$0xff]
        %v2147 = vld [vmem:[%s235 + $0x10] sm:$0xff]
        %v2148 = vld [vmem:[%s235 + $0x18] sm:$0xff]
        %v2149 = vld [vmem:[%s235 + $0x20] sm:$0xff]
        %v2150 = vld [vmem:[%s235 + $0x28] sm:$0xff]
        %v2151 = vld [vmem:[%s235 + $0x30] sm:$0xff]
        %v2152 = vld [vmem:[%s235 + $0x38] sm:$0xff]
        %v2153 = vld [vmem:[%s235 + $0x40] sm:$0xff]
        %v2154 = vld [vmem:[%s235 + $0x48] sm:$0xff]
        %v2155 = vld [vmem:[%s235 + $0x50] sm:$0xff]
        %v2156 = vld [vmem:[%s235 + $0x58] sm:$0xff]
        %v2157 = vld [vmem:[%s235 + $0x60] sm:$0xff]
        %v2158 = vld [vmem:[%s235 + $0x68] sm:$0xff]
        %v2159 = vld [vmem:[%s235 + $0x70] sm:$0xff]
        %v2160 = vld [vmem:[%s235 + $0x78] sm:$0xff]
        %v2161 = vld [vmem:[%s235 + $0x80] sm:$0xff]
        %v2162 = vld [vmem:[%s235 + $0x88] sm:$0xff]
        %v2163 = vld [vmem:[%s235 + $0x90] sm:$0xff]
        %v2164 = vld [vmem:[%s235 + $0x98] sm:$0xff]
        %v2165 = vld [vmem:[%s235 + $0xa0] sm:$0xff]
        %v2166 = vld [vmem:[%s235 + $0xa8] sm:$0xff]
        %v2167 = vld [vmem:[%s235 + $0xb0] sm:$0xff]
        %v2168 = vld [vmem:[%s235 + $0xb8] sm:$0xff]
        %v2169 = vld [vmem:[%s235 + $0xc0] sm:$0xff]
        %v2170 = vld [vmem:[%s235 + $0xc8] sm:$0xff]
        %v2171 = vld [vmem:[%s235 + $0xd0] sm:$0xff]
        %v2172 = vld [vmem:[%s235 + $0xd8] sm:$0xff]
        %v2173 = vld [vmem:[%s235 + $0xe0] sm:$0xff]
        %v2174 = vld [vmem:[%s235 + $0xe8] sm:$0xff]
        %v2175 = vld [vmem:[%s235 + $0xf0] sm:$0xff]
        %v2176 = vld [vmem:[%s235 + $0xf8] sm:$0xff]
        %v2209 = vunpack.c.l.b16 %v2145
        %v2210 = vunpack.c.h.b16 %v2145
        %v2211 = vunpack.c.l.b16 %v2146
        %v2212 = vunpack.c.h.b16 %v2146
        %v2213 = vunpack.c.l.b16 %v2147
        %v2214 = vunpack.c.h.b16 %v2147
        %v2215 = vunpack.c.l.b16 %v2148
        %v2216 = vunpack.c.h.b16 %v2148
        %v2217 = vunpack.c.l.b16 %v2149
        %v2218 = vunpack.c.h.b16 %v2149
        %v2219 = vunpack.c.l.b16 %v2150
        %v2220 = vunpack.c.h.b16 %v2150
        %v2221 = vunpack.c.l.b16 %v2151
        %v2222 = vunpack.c.h.b16 %v2151
        %v2223 = vunpack.c.l.b16 %v2152
        %v2224 = vunpack.c.h.b16 %v2152
        %v2225 = vunpack.c.l.b16 %v2153
        %v2226 = vunpack.c.h.b16 %v2153
        %v2227 = vunpack.c.l.b16 %v2154
        %v2228 = vunpack.c.h.b16 %v2154
        %v2229 = vunpack.c.l.b16 %v2155
        %v2230 = vunpack.c.h.b16 %v2155
        %v2231 = vunpack.c.l.b16 %v2156
        %v2232 = vunpack.c.h.b16 %v2156
        %v2233 = vunpack.c.l.b16 %v2157
        %v2234 = vunpack.c.h.b16 %v2157
        %v2235 = vunpack.c.l.b16 %v2158
        %v2236 = vunpack.c.h.b16 %v2158
        %v2237 = vunpack.c.l.b16 %v2159
        %v2238 = vunpack.c.h.b16 %v2159
        %v2239 = vunpack.c.l.b16 %v2160
        %v2240 = vunpack.c.h.b16 %v2160
        %v2241 = vunpack.c.l.b16 %v2161
        %v2242 = vunpack.c.h.b16 %v2161
        %v2243 = vunpack.c.l.b16 %v2162
        %v2244 = vunpack.c.h.b16 %v2162
        %v2245 = vunpack.c.l.b16 %v2163
        %v2246 = vunpack.c.h.b16 %v2163
        %v2247 = vunpack.c.l.b16 %v2164
        %v2248 = vunpack.c.h.b16 %v2164
        %v2249 = vunpack.c.l.b16 %v2165
        %v2250 = vunpack.c.h.b16 %v2165
        %v2251 = vunpack.c.l.b16 %v2166
        %v2252 = vunpack.c.h.b16 %v2166
        %v2253 = vunpack.c.l.b16 %v2167
        %v2254 = vunpack.c.h.b16 %v2167
        %v2255 = vunpack.c.l.b16 %v2168
        %v2256 = vunpack.c.h.b16 %v2168
        %v2257 = vunpack.c.l.b16 %v2169
        %v2258 = vunpack.c.h.b16 %v2169
        %v2259 = vunpack.c.l.b16 %v2170
        %v2260 = vunpack.c.h.b16 %v2170
        %v2261 = vunpack.c.l.b16 %v2171
        %v2262 = vunpack.c.h.b16 %v2171
        %v2263 = vunpack.c.l.b16 %v2172
        %v2264 = vunpack.c.h.b16 %v2172
        %v2265 = vunpack.c.l.b16 %v2173
        %v2266 = vunpack.c.h.b16 %v2173
        %v2267 = vunpack.c.l.b16 %v2174
        %v2268 = vunpack.c.h.b16 %v2174
        %v2269 = vunpack.c.l.b16 %v2175
        %v2270 = vunpack.c.h.b16 %v2175
        %v2271 = vunpack.c.l.b16 %v2176
        %v2272 = vunpack.c.h.b16 %v2176
        %v2273 = vpack.c.b16 %v2213, %v2209
        %v2274 = vpack.c.b16 %v2214, %v2210
        %v2275 = vpack.c.b16 %v2215, %v2211
        %v2276 = vpack.c.b16 %v2216, %v2212
        %v2277 = vpack.c.b16 %v2221, %v2217
        %v2278 = vpack.c.b16 %v2222, %v2218
        %v2279 = vpack.c.b16 %v2223, %v2219
        %v2280 = vpack.c.b16 %v2224, %v2220
        %v2281 = vpack.c.b16 %v2229, %v2225
        %v2282 = vpack.c.b16 %v2230, %v2226
        %v2283 = vpack.c.b16 %v2231, %v2227
        %v2284 = vpack.c.b16 %v2232, %v2228
        %v2285 = vpack.c.b16 %v2237, %v2233
        %v2286 = vpack.c.b16 %v2238, %v2234
        %v2287 = vpack.c.b16 %v2239, %v2235
        %v2288 = vpack.c.b16 %v2240, %v2236
        %v2289 = vpack.c.b16 %v2245, %v2241
        %v2290 = vpack.c.b16 %v2246, %v2242
        %v2291 = vpack.c.b16 %v2247, %v2243
        %v2292 = vpack.c.b16 %v2248, %v2244
        %v2293 = vpack.c.b16 %v2253, %v2249
        %v2294 = vpack.c.b16 %v2254, %v2250
        %v2295 = vpack.c.b16 %v2255, %v2251
        %v2296 = vpack.c.b16 %v2256, %v2252
        %v2297 = vpack.c.b16 %v2261, %v2257
        %v2298 = vpack.c.b16 %v2262, %v2258
        %v2299 = vpack.c.b16 %v2263, %v2259
        %v2300 = vpack.c.b16 %v2264, %v2260
        %v2301 = vpack.c.b16 %v2269, %v2265
        %v2302 = vpack.c.b16 %v2270, %v2266
        %v2303 = vpack.c.b16 %v2271, %v2267
        %v2304 = vpack.c.b16 %v2272, %v2268
        %2337 = vmatprep.subr.bf16.mxu0 %v2274
        %2338 = vmatpush1.bf16.msra.mxu0 %v2273
        %2339 = vmatprep.subr.bf16.mxu0 %v2278
        %2340 = vmatpush1.bf16.msra.mxu0 %v2277
        %2341 = vmatprep.subr.bf16.mxu0 %v2282
        %2342 = vmatpush1.bf16.msra.mxu0 %v2281
        %2343 = vmatprep.subr.bf16.mxu0 %v2286
        %2344 = vmatpush1.bf16.msra.mxu0 %v2285
        %2345 = vmatprep.subr.bf16.mxu0 %v2290
        %2346 = vmatpush1.bf16.msra.mxu0 %v2289
        %2347 = vmatprep.subr.bf16.mxu0 %v2294
        %2348 = vmatpush1.bf16.msra.mxu0 %v2293
        %2349 = vmatprep.subr.bf16.mxu0 %v2298
        %2350 = vmatpush1.bf16.msra.mxu0 %v2297
        %2351 = vmatprep.subr.bf16.mxu0 %v2302
        %2352 = vmatpush1.bf16.msra.mxu0 %v2301
        %2353 = vmatprep.subr.bf16.mxu0 0
        %2354 = vmatpush1.bf16.msra.mxu0 0
        %2355 = vmatprep.subr.bf16.mxu0 0
        %2356 = vmatpush1.bf16.msra.mxu0 0
        %2357 = vmatprep.subr.bf16.mxu0 0
        %2358 = vmatpush1.bf16.msra.mxu0 0
        %2359 = vmatprep.subr.bf16.mxu0 0
        %2360 = vmatpush1.bf16.msra.mxu0 0
        %2361 = vmatprep.subr.bf16.mxu0 0
        %2362 = vmatpush1.bf16.msra.mxu0 0
        %2363 = vmatprep.subr.bf16.mxu0 0
        %2364 = vmatpush1.bf16.msra.mxu0 0
        %2365 = vmatprep.subr.bf16.mxu0 0
        %2366 = vmatpush1.bf16.msra.mxu0 0
        %2367 = vmatprep.subr.bf16.mxu0 0
        %2368 = vmatpush1.bf16.msra.mxu0 0
        %2369 = vmatprep.mubr.bf16.mxu0 0
        %2370 = vmatmul.mubr.bf16.gmra.mrb[0].mxu0 %v2135
        %v2371 = vpop.f32.mrb[0].mxu0
        %v2372 = vadd.f32 0.0, %v2371
        %v2373 = vpop.f32.mrb[0].mxu0
        %v2374 = vadd.f32 0.0, %v2373
        %v2375 = vpop.f32.mrb[0].mxu0
        %v2376 = vpop.f32.mrb[0].mxu0
        %2377 = vdwg.mxu0
        %2378 = vmatprep.subr.bf16.mxu0 %v2276
        %2379 = vmatpush1.bf16.msra.mxu0 %v2275
        %2380 = vmatprep.subr.bf16.mxu0 %v2280
        %2381 = vmatpush1.bf16.msra.mxu0 %v2279
        %2382 = vmatprep.subr.bf16.mxu0 %v2284
        %2383 = vmatpush1.bf16.msra.mxu0 %v2283
        %2384 = vmatprep.subr.bf16.mxu0 %v2288
        %2385 = vmatpush1.bf16.msra.mxu0 %v2287
        %2386 = vmatprep.subr.bf16.mxu0 %v2292
        %2387 = vmatpush1.bf16.msra.mxu0 %v2291
        %2388 = vmatprep.subr.bf16.mxu0 %v2296
        %2389 = vmatpush1.bf16.msra.mxu0 %v2295
        %2390 = vmatprep.subr.bf16.mxu0 %v2300
        %2391 = vmatpush1.bf16.msra.mxu0 %v2299
        %2392 = vmatprep.subr.bf16.mxu0 %v2304
        %2393 = vmatpush1.bf16.msra.mxu0 %v2303
        %2394 = vmatprep.subr.bf16.mxu0 0
        %2395 = vmatpush1.bf16.msra.mxu0 0
        %2396 = vmatprep.subr.bf16.mxu0 0
        %2397 = vmatpush1.bf16.msra.mxu0 0
        %2398 = vmatprep.subr.bf16.mxu0 0
        %2399 = vmatpush1.bf16.msra.mxu0 0
        %2400 = vmatprep.subr.bf16.mxu0 0
        %2401 = vmatpush1.bf16.msra.mxu0 0
        %2402 = vmatprep.subr.bf16.mxu0 0
        %2403 = vmatpush1.bf16.msra.mxu0 0
        %2404 = vmatprep.subr.bf16.mxu0 0
        %2405 = vmatpush1.bf16.msra.mxu0 0
        %2406 = vmatprep.subr.bf16.mxu0 0
        %2407 = vmatpush1.bf16.msra.mxu0 0
        %2408 = vmatprep.subr.bf16.mxu0 0
        %2409 = vmatpush1.bf16.msra.mxu0 0
        %2410 = vmatprep.mubr.bf16.mxu0 0
        %2411 = vmatmul.mubr.bf16.gmra.mrb[0].mxu0 %v2135
        %v2412 = vpop.f32.mrb[0].mxu0
        %v2413 = vadd.f32 0.0, %v2412
        %v2414 = vpop.f32.mrb[0].mxu0
        %v2415 = vadd.f32 0.0, %v2414
        %v2416 = vpop.f32.mrb[0].mxu0
        %v2417 = vpop.f32.mrb[0].mxu0
        %2418 = vdwg.mxu0
        %v2419 = vadd.f32 %v2141, %v2372
        %v2420 = vadd.f32 %v2142, %v2374
        %v2421 = vadd.f32 %v2143, %v2413
        %v2422 = vadd.f32 %v2144, %v2415
        %v2423 = vxor.u32 %v2419, 2147483648
        %v2424 = vxor.u32 %v2420, 2147483648
        %v2425 = vxor.u32 %v2421, 2147483648
        %v2426 = vmul.f32 %v2423, 1.442695
        %v2427 = vpow.pop %v2426
        %v2428 = vmul.f32 %v2424, 1.442695
        %v2429 = vpow.pop %v2428
        %v2430 = vmul.f32 %v2425, 1.442695
        %v2431 = vpow.pop %v2430
        %v2432 = vadd.f32 %v2427, 1.0
        %v2433 = vadd.f32 %v2429, 1.0
        %v2434 = vadd.f32 %v2431, 1.0
        %v2435 = vrcp.pop %v2432
        %v2436 = vmul.f32 1.0, %v2435
        %v2437 = vrcp.pop %v2433
        %v2438 = vmul.f32 1.0, %v2437
        %v2439 = vrcp.pop %v2434
        %v2440 = vmul.f32 1.0, %v2439
        %v2441 = vtanh.pop %v2422
        %v2442 = vmul.f32 %v2438, %v2132
        %v2443 = vmul.f32 %v2436, %v2441
        %v2444 = vadd.f32 %v2442, %v2443
        %v2445 = vtanh.pop %v2444
        %v2446 = vmul.f32 %v2440, %v2445
        %v2447 = vpack.c.bf16 %v2446, %v2446
        %s2448 = scalar_lea.vmem %s248, 24
        %2449 = vst [vmem:[%s2448] sm:$0xf] %v2447
        %s2450 = scalar_lea.vmem %s225, 112
        %v2451 = vld [vmem:[%s2450] sm:$0xff]
        %v2452 = vld [vmem:[%s2450 + $0x8] sm:$0xff]
        %v2453 = vunpack.c.l.bf16 %v2451
        %v2454 = vunpack.c.h.bf16 %v2451
        %v2455 = vunpack.c.l.bf16 %v2452
        %v2456 = vunpack.c.h.bf16 %v2452
        %v2457 = vld [vmem:[%s235] sm:$0xff]
        %v2458 = vld [vmem:[%s235 + $0x8] sm:$0xff]
        %v2459 = vld [vmem:[%s235 + $0x10] sm:$0xff]
        %v2460 = vld [vmem:[%s235 + $0x18] sm:$0xff]
        %v2461 = vld [vmem:[%s235 + $0x20] sm:$0xff]
        %v2462 = vld [vmem:[%s235 + $0x28] sm:$0xff]
        %v2463 = vld [vmem:[%s235 + $0x30] sm:$0xff]
        %v2464 = vld [vmem:[%s235 + $0x38] sm:$0xff]
        %v2465 = vld [vmem:[%s235 + $0x40] sm:$0xff]
        %v2466 = vld [vmem:[%s235 + $0x48] sm:$0xff]
        %v2467 = vld [vmem:[%s235 + $0x50] sm:$0xff]
        %v2468 = vld [vmem:[%s235 + $0x58] sm:$0xff]
        %v2469 = vld [vmem:[%s235 + $0x60] sm:$0xff]
        %v2470 = vld [vmem:[%s235 + $0x68] sm:$0xff]
        %v2471 = vld [vmem:[%s235 + $0x70] sm:$0xff]
        %v2472 = vld [vmem:[%s235 + $0x78] sm:$0xff]
        %v2473 = vld [vmem:[%s235 + $0x80] sm:$0xff]
        %v2474 = vld [vmem:[%s235 + $0x88] sm:$0xff]
        %v2475 = vld [vmem:[%s235 + $0x90] sm:$0xff]
        %v2476 = vld [vmem:[%s235 + $0x98] sm:$0xff]
        %v2477 = vld [vmem:[%s235 + $0xa0] sm:$0xff]
        %v2478 = vld [vmem:[%s235 + $0xa8] sm:$0xff]
        %v2479 = vld [vmem:[%s235 + $0xb0] sm:$0xff]
        %v2480 = vld [vmem:[%s235 + $0xb8] sm:$0xff]
        %v2481 = vld [vmem:[%s235 + $0xc0] sm:$0xff]
        %v2482 = vld [vmem:[%s235 + $0xc8] sm:$0xff]
        %v2483 = vld [vmem:[%s235 + $0xd0] sm:$0xff]
        %v2484 = vld [vmem:[%s235 + $0xd8] sm:$0xff]
        %v2485 = vld [vmem:[%s235 + $0xe0] sm:$0xff]
        %v2486 = vld [vmem:[%s235 + $0xe8] sm:$0xff]
        %v2487 = vld [vmem:[%s235 + $0xf0] sm:$0xff]
        %v2488 = vld [vmem:[%s235 + $0xf8] sm:$0xff]
        %v2521 = vunpack.c.l.b16 %v2457
        %v2522 = vunpack.c.h.b16 %v2457
        %v2523 = vunpack.c.l.b16 %v2458
        %v2524 = vunpack.c.h.b16 %v2458
        %v2525 = vunpack.c.l.b16 %v2459
        %v2526 = vunpack.c.h.b16 %v2459
        %v2527 = vunpack.c.l.b16 %v2460
        %v2528 = vunpack.c.h.b16 %v2460
        %v2529 = vunpack.c.l.b16 %v2461
        %v2530 = vunpack.c.h.b16 %v2461
        %v2531 = vunpack.c.l.b16 %v2462
        %v2532 = vunpack.c.h.b16 %v2462
        %v2533 = vunpack.c.l.b16 %v2463
        %v2534 = vunpack.c.h.b16 %v2463
        %v2535 = vunpack.c.l.b16 %v2464
        %v2536 = vunpack.c.h.b16 %v2464
        %v2537 = vunpack.c.l.b16 %v2465
        %v2538 = vunpack.c.h.b16 %v2465
        %v2539 = vunpack.c.l.b16 %v2466
        %v2540 = vunpack.c.h.b16 %v2466
        %v2541 = vunpack.c.l.b16 %v2467
        %v2542 = vunpack.c.h.b16 %v2467
        %v2543 = vunpack.c.l.b16 %v2468
        %v2544 = vunpack.c.h.b16 %v2468
        %v2545 = vunpack.c.l.b16 %v2469
        %v2546 = vunpack.c.h.b16 %v2469
        %v2547 = vunpack.c.l.b16 %v2470
        %v2548 = vunpack.c.h.b16 %v2470
        %v2549 = vunpack.c.l.b16 %v2471
        %v2550 = vunpack.c.h.b16 %v2471
        %v2551 = vunpack.c.l.b16 %v2472
        %v2552 = vunpack.c.h.b16 %v2472
        %v2553 = vunpack.c.l.b16 %v2473
        %v2554 = vunpack.c.h.b16 %v2473
        %v2555 = vunpack.c.l.b16 %v2474
        %v2556 = vunpack.c.h.b16 %v2474
        %v2557 = vunpack.c.l.b16 %v2475
        %v2558 = vunpack.c.h.b16 %v2475
        %v2559 = vunpack.c.l.b16 %v2476
        %v2560 = vunpack.c.h.b16 %v2476
        %v2561 = vunpack.c.l.b16 %v2477
        %v2562 = vunpack.c.h.b16 %v2477
        %v2563 = vunpack.c.l.b16 %v2478
        %v2564 = vunpack.c.h.b16 %v2478
        %v2565 = vunpack.c.l.b16 %v2479
        %v2566 = vunpack.c.h.b16 %v2479
        %v2567 = vunpack.c.l.b16 %v2480
        %v2568 = vunpack.c.h.b16 %v2480
        %v2569 = vunpack.c.l.b16 %v2481
        %v2570 = vunpack.c.h.b16 %v2481
        %v2571 = vunpack.c.l.b16 %v2482
        %v2572 = vunpack.c.h.b16 %v2482
        %v2573 = vunpack.c.l.b16 %v2483
        %v2574 = vunpack.c.h.b16 %v2483
        %v2575 = vunpack.c.l.b16 %v2484
        %v2576 = vunpack.c.h.b16 %v2484
        %v2577 = vunpack.c.l.b16 %v2485
        %v2578 = vunpack.c.h.b16 %v2485
        %v2579 = vunpack.c.l.b16 %v2486
        %v2580 = vunpack.c.h.b16 %v2486
        %v2581 = vunpack.c.l.b16 %v2487
        %v2582 = vunpack.c.h.b16 %v2487
        %v2583 = vunpack.c.l.b16 %v2488
        %v2584 = vunpack.c.h.b16 %v2488
        %v2585 = vpack.c.b16 %v2525, %v2521
        %v2586 = vpack.c.b16 %v2526, %v2522
        %v2587 = vpack.c.b16 %v2527, %v2523
        %v2588 = vpack.c.b16 %v2528, %v2524
        %v2589 = vpack.c.b16 %v2533, %v2529
        %v2590 = vpack.c.b16 %v2534, %v2530
        %v2591 = vpack.c.b16 %v2535, %v2531
        %v2592 = vpack.c.b16 %v2536, %v2532
        %v2593 = vpack.c.b16 %v2541, %v2537
        %v2594 = vpack.c.b16 %v2542, %v2538
        %v2595 = vpack.c.b16 %v2543, %v2539
        %v2596 = vpack.c.b16 %v2544, %v2540
        %v2597 = vpack.c.b16 %v2549, %v2545
        %v2598 = vpack.c.b16 %v2550, %v2546
        %v2599 = vpack.c.b16 %v2551, %v2547
        %v2600 = vpack.c.b16 %v2552, %v2548
        %v2601 = vpack.c.b16 %v2557, %v2553
        %v2602 = vpack.c.b16 %v2558, %v2554
        %v2603 = vpack.c.b16 %v2559, %v2555
        %v2604 = vpack.c.b16 %v2560, %v2556
        %v2605 = vpack.c.b16 %v2565, %v2561
        %v2606 = vpack.c.b16 %v2566, %v2562
        %v2607 = vpack.c.b16 %v2567, %v2563
        %v2608 = vpack.c.b16 %v2568, %v2564
        %v2609 = vpack.c.b16 %v2573, %v2569
        %v2610 = vpack.c.b16 %v2574, %v2570
        %v2611 = vpack.c.b16 %v2575, %v2571
        %v2612 = vpack.c.b16 %v2576, %v2572
        %v2613 = vpack.c.b16 %v2581, %v2577
        %v2614 = vpack.c.b16 %v2582, %v2578
        %v2615 = vpack.c.b16 %v2583, %v2579
        %v2616 = vpack.c.b16 %v2584, %v2580
        %2649 = vmatprep.subr.bf16.mxu0 %v2586
        %2650 = vmatpush1.bf16.msra.mxu0 %v2585
        %2651 = vmatprep.subr.bf16.mxu0 %v2590
        %2652 = vmatpush1.bf16.msra.mxu0 %v2589
        %2653 = vmatprep.subr.bf16.mxu0 %v2594
        %2654 = vmatpush1.bf16.msra.mxu0 %v2593
        %2655 = vmatprep.subr.bf16.mxu0 %v2598
        %2656 = vmatpush1.bf16.msra.mxu0 %v2597
        %2657 = vmatprep.subr.bf16.mxu0 %v2602
        %2658 = vmatpush1.bf16.msra.mxu0 %v2601
        %2659 = vmatprep.subr.bf16.mxu0 %v2606
        %2660 = vmatpush1.bf16.msra.mxu0 %v2605
        %2661 = vmatprep.subr.bf16.mxu0 %v2610
        %2662 = vmatpush1.bf16.msra.mxu0 %v2609
        %2663 = vmatprep.subr.bf16.mxu0 %v2614
        %2664 = vmatpush1.bf16.msra.mxu0 %v2613
        %2665 = vmatprep.subr.bf16.mxu0 0
        %2666 = vmatpush1.bf16.msra.mxu0 0
        %2667 = vmatprep.subr.bf16.mxu0 0
        %2668 = vmatpush1.bf16.msra.mxu0 0
        %2669 = vmatprep.subr.bf16.mxu0 0
        %2670 = vmatpush1.bf16.msra.mxu0 0
        %2671 = vmatprep.subr.bf16.mxu0 0
        %2672 = vmatpush1.bf16.msra.mxu0 0
        %2673 = vmatprep.subr.bf16.mxu0 0
        %2674 = vmatpush1.bf16.msra.mxu0 0
        %2675 = vmatprep.subr.bf16.mxu0 0
        %2676 = vmatpush1.bf16.msra.mxu0 0
        %2677 = vmatprep.subr.bf16.mxu0 0
        %2678 = vmatpush1.bf16.msra.mxu0 0
        %2679 = vmatprep.subr.bf16.mxu0 0
        %2680 = vmatpush1.bf16.msra.mxu0 0
        %2681 = vmatprep.mubr.bf16.mxu0 0
        %2682 = vmatmul.mubr.bf16.gmra.mrb[0].mxu0 %v2447
        %v2683 = vpop.f32.mrb[0].mxu0
        %v2684 = vadd.f32 0.0, %v2683
        %v2685 = vpop.f32.mrb[0].mxu0
        %v2686 = vadd.f32 0.0, %v2685
        %v2687 = vpop.f32.mrb[0].mxu0
        %v2688 = vpop.f32.mrb[0].mxu0
        %2689 = vdwg.mxu0
        %2690 = vmatprep.subr.bf16.mxu0 %v2588
        %2691 = vmatpush1.bf16.msra.mxu0 %v2587
        %2692 = vmatprep.subr.bf16.mxu0 %v2592
        %2693 = vmatpush1.bf16.msra.mxu0 %v2591
        %2694 = vmatprep.subr.bf16.mxu0 %v2596
        %2695 = vmatpush1.bf16.msra.mxu0 %v2595
        %2696 = vmatprep.subr.bf16.mxu0 %v2600
        %2697 = vmatpush1.bf16.msra.mxu0 %v2599
        %2698 = vmatprep.subr.bf16.mxu0 %v2604
        %2699 = vmatpush1.bf16.msra.mxu0 %v2603
        %2700 = vmatprep.subr.bf16.mxu0 %v2608
        %2701 = vmatpush1.bf16.msra.mxu0 %v2607
        %2702 = vmatprep.subr.bf16.mxu0 %v2612
        %2703 = vmatpush1.bf16.msra.mxu0 %v2611
        %2704 = vmatprep.subr.bf16.mxu0 %v2616
        %2705 = vmatpush1.bf16.msra.mxu0 %v2615
        %2706 = vmatprep.subr.bf16.mxu0 0
        %2707 = vmatpush1.bf16.msra.mxu0 0
        %2708 = vmatprep.subr.bf16.mxu0 0
        %2709 = vmatpush1.bf16.msra.mxu0 0
        %2710 = vmatprep.subr.bf16.mxu0 0
        %2711 = vmatpush1.bf16.msra.mxu0 0
        %2712 = vmatprep.subr.bf16.mxu0 0
        %2713 = vmatpush1.bf16.msra.mxu0 0
        %2714 = vmatprep.subr.bf16.mxu0 0
        %2715 = vmatpush1.bf16.msra.mxu0 0
        %2716 = vmatprep.subr.bf16.mxu0 0
        %2717 = vmatpush1.bf16.msra.mxu0 0
        %2718 = vmatprep.subr.bf16.mxu0 0
        %2719 = vmatpush1.bf16.msra.mxu0 0
        %2720 = vmatprep.subr.bf16.mxu0 0
        %2721 = vmatpush1.bf16.msra.mxu0 0
        %2722 = vmatprep.mubr.bf16.mxu0 0
        %2723 = vmatmul.mubr.bf16.gmra.mrb[0].mxu0 %v2447
        %v2724 = vpop.f32.mrb[0].mxu0
        %v2725 = vadd.f32 0.0, %v2724
        %v2726 = vpop.f32.mrb[0].mxu0
        %v2727 = vadd.f32 0.0, %v2726
        %v2728 = vpop.f32.mrb[0].mxu0
        %v2729 = vpop.f32.mrb[0].mxu0
        %2730 = vdwg.mxu0
        %v2731 = vadd.f32 %v2453, %v2684
        %v2732 = vadd.f32 %v2454, %v2686
        %v2733 = vadd.f32 %v2455, %v2725
        %v2734 = vadd.f32 %v2456, %v2727
        %v2735 = vxor.u32 %v2731, 2147483648
        %v2736 = vxor.u32 %v2732, 2147483648
        %v2737 = vxor.u32 %v2733, 2147483648
        %v2738 = vmul.f32 %v2735, 1.442695
        %v2739 = vpow.pop %v2738
        %v2740 = vmul.f32 %v2736, 1.442695
        %v2741 = vpow.pop %v2740
        %v2742 = vmul.f32 %v2737, 1.442695
        %v2743 = vpow.pop %v2742
        %v2744 = vadd.f32 %v2739, 1.0
        %v2745 = vadd.f32 %v2741, 1.0
        %v2746 = vadd.f32 %v2743, 1.0
        %v2747 = vrcp.pop %v2744
        %v2748 = vmul.f32 1.0, %v2747
        %v2749 = vrcp.pop %v2745
        %v2750 = vmul.f32 1.0, %v2749
        %v2751 = vrcp.pop %v2746
        %v2752 = vmul.f32 1.0, %v2751
        %v2753 = vtanh.pop %v2734
        %v2754 = vmul.f32 %v2750, %v2444
        %v2755 = vmul.f32 %v2748, %v2753
        %v2756 = vadd.f32 %v2754, %v2755
        %v2757 = vtanh.pop %v2756
        %v2758 = vmul.f32 %v2752, %v2757
        %v2759 = vpack.c.bf16 %v2758, %v2758
        %s2760 = scalar_lea.vmem %s248, 28
        %2761 = vst [vmem:[%s2760] sm:$0xf] %v2759
        %2762 = vst [vmem:[#allocation2] sm:$0xff] %v2758
        %2763 = vst [vmem:[#allocation3] sm:$0xff] %v2756
      $region36: #{bilstm_forward.3} parent=27 // pred_fallthru
        _
      %p2764 = scmp.eq.s32.totalorder %s17, 1
      // Predicated region
      $region37: #{bilstm_forward.3} parent=27 // pred_check
        %p2765 = pneg %p2764
      $region38: #{bilstm_forward.3} parent=27 // pred_check_branch
        %2767 = sbr.rel (%p2765) target = $region40
      $region39: #{bilstm_forward.3} parent=27 // pred_region
        %v2768 = vld [vmem:[#allocation2] sm:$0xff]
        %v2769 = vld [vmem:[#allocation3] sm:$0xff]
        %s2770 = scalar_lea.vmem %s225, 112
        %v2771 = vld [vmem:[%s2770] sm:$0xff]
        %v2772 = vld [vmem:[%s2770 + $0x8] sm:$0xff]
        %v2773 = vunpack.c.l.bf16 %v2771
        %v2774 = vunpack.c.h.bf16 %v2771
        %v2775 = vunpack.c.l.bf16 %v2772
        %v2776 = vunpack.c.h.bf16 %v2772
        %v2777 = vpack.c.bf16 %v2768, %v2768
        %v2778 = vld [vmem:[%s235] sm:$0xff]
        %v2779 = vld [vmem:[%s235 + $0x8] sm:$0xff]
        %v2780 = vld [vmem:[%s235 + $0x10] sm:$0xff]
        %v2781 = vld [vmem:[%s235 + $0x18] sm:$0xff]
        %v2782 = vld [vmem:[%s235 + $0x20] sm:$0xff]
        %v2783 = vld [vmem:[%s235 + $0x28] sm:$0xff]
        %v2784 = vld [vmem:[%s235 + $0x30] sm:$0xff]
        %v2785 = vld [vmem:[%s235 + $0x38] sm:$0xff]
        %v2786 = vld [vmem:[%s235 + $0x40] sm:$0xff]
        %v2787 = vld [vmem:[%s235 + $0x48] sm:$0xff]
        %v2788 = vld [vmem:[%s235 + $0x50] sm:$0xff]
        %v2789 = vld [vmem:[%s235 + $0x58] sm:$0xff]
        %v2790 = vld [vmem:[%s235 + $0x60] sm:$0xff]
        %v2791 = vld [vmem:[%s235 + $0x68] sm:$0xff]
        %v2792 = vld [vmem:[%s235 + $0x70] sm:$0xff]
        %v2793 = vld [vmem:[%s235 + $0x78] sm:$0xff]
        %v2794 = vld [vmem:[%s235 + $0x80] sm:$0xff]
        %v2795 = vld [vmem:[%s235 + $0x88] sm:$0xff]
        %v2796 = vld [vmem:[%s235 + $0x90] sm:$0xff]
        %v2797 = vld [vmem:[%s235 + $0x98] sm:$0xff]
        %v2798 = vld [vmem:[%s235 + $0xa0] sm:$0xff]
        %v2799 = vld [vmem:[%s235 + $0xa8] sm:$0xff]
        %v2800 = vld [vmem:[%s235 + $0xb0] sm:$0xff]
        %v2801 = vld [vmem:[%s235 + $0xb8] sm:$0xff]
        %v2802 = vld [vmem:[%s235 + $0xc0] sm:$0xff]
        %v2803 = vld [vmem:[%s235 + $0xc8] sm:$0xff]
        %v2804 = vld [vmem:[%s235 + $0xd0] sm:$0xff]
        %v2805 = vld [vmem:[%s235 + $0xd8] sm:$0xff]
        %v2806 = vld [vmem:[%s235 + $0xe0] sm:$0xff]
        %v2807 = vld [vmem:[%s235 + $0xe8] sm:$0xff]
        %v2808 = vld [vmem:[%s235 + $0xf0] sm:$0xff]
        %v2809 = vld [vmem:[%s235 + $0xf8] sm:$0xff]
        %v2842 = vunpack.c.l.b16 %v2778
        %v2843 = vunpack.c.h.b16 %v2778
        %v2844 = vunpack.c.l.b16 %v2779
        %v2845 = vunpack.c.h.b16 %v2779
        %v2846 = vunpack.c.l.b16 %v2780
        %v2847 = vunpack.c.h.b16 %v2780
        %v2848 = vunpack.c.l.b16 %v2781
        %v2849 = vunpack.c.h.b16 %v2781
        %v2850 = vunpack.c.l.b16 %v2782
        %v2851 = vunpack.c.h.b16 %v2782
        %v2852 = vunpack.c.l.b16 %v2783
        %v2853 = vunpack.c.h.b16 %v2783
        %v2854 = vunpack.c.l.b16 %v2784
        %v2855 = vunpack.c.h.b16 %v2784
        %v2856 = vunpack.c.l.b16 %v2785
        %v2857 = vunpack.c.h.b16 %v2785
        %v2858 = vunpack.c.l.b16 %v2786
        %v2859 = vunpack.c.h.b16 %v2786
        %v2860 = vunpack.c.l.b16 %v2787
        %v2861 = vunpack.c.h.b16 %v2787
        %v2862 = vunpack.c.l.b16 %v2788
        %v2863 = vunpack.c.h.b16 %v2788
        %v2864 = vunpack.c.l.b16 %v2789
        %v2865 = vunpack.c.h.b16 %v2789
        %v2866 = vunpack.c.l.b16 %v2790
        %v2867 = vunpack.c.h.b16 %v2790
        %v2868 = vunpack.c.l.b16 %v2791
        %v2869 = vunpack.c.h.b16 %v2791
        %v2870 = vunpack.c.l.b16 %v2792
        %v2871 = vunpack.c.h.b16 %v2792
        %v2872 = vunpack.c.l.b16 %v2793
        %v2873 = vunpack.c.h.b16 %v2793
        %v2874 = vunpack.c.l.b16 %v2794
        %v2875 = vunpack.c.h.b16 %v2794
        %v2876 = vunpack.c.l.b16 %v2795
        %v2877 = vunpack.c.h.b16 %v2795
        %v2878 = vunpack.c.l.b16 %v2796
        %v2879 = vunpack.c.h.b16 %v2796
        %v2880 = vunpack.c.l.b16 %v2797
        %v2881 = vunpack.c.h.b16 %v2797
        %v2882 = vunpack.c.l.b16 %v2798
        %v2883 = vunpack.c.h.b16 %v2798
        %v2884 = vunpack.c.l.b16 %v2799
        %v2885 = vunpack.c.h.b16 %v2799
        %v2886 = vunpack.c.l.b16 %v2800
        %v2887 = vunpack.c.h.b16 %v2800
        %v2888 = vunpack.c.l.b16 %v2801
        %v2889 = vunpack.c.h.b16 %v2801
        %v2890 = vunpack.c.l.b16 %v2802
        %v2891 = vunpack.c.h.b16 %v2802
        %v2892 = vunpack.c.l.b16 %v2803
        %v2893 = vunpack.c.h.b16 %v2803
        %v2894 = vunpack.c.l.b16 %v2804
        %v2895 = vunpack.c.h.b16 %v2804
        %v2896 = vunpack.c.l.b16 %v2805
        %v2897 = vunpack.c.h.b16 %v2805
        %v2898 = vunpack.c.l.b16 %v2806
        %v2899 = vunpack.c.h.b16 %v2806
        %v2900 = vunpack.c.l.b16 %v2807
        %v2901 = vunpack.c.h.b16 %v2807
        %v2902 = vunpack.c.l.b16 %v2808
        %v2903 = vunpack.c.h.b16 %v2808
        %v2904 = vunpack.c.l.b16 %v2809
        %v2905 = vunpack.c.h.b16 %v2809
        %v2906 = vpack.c.b16 %v2846, %v2842
        %v2907 = vpack.c.b16 %v2847, %v2843
        %v2908 = vpack.c.b16 %v2848, %v2844
        %v2909 = vpack.c.b16 %v2849, %v2845
        %v2910 = vpack.c.b16 %v2854, %v2850
        %v2911 = vpack.c.b16 %v2855, %v2851
        %v2912 = vpack.c.b16 %v2856, %v2852
        %v2913 = vpack.c.b16 %v2857, %v2853
        %v2914 = vpack.c.b16 %v2862, %v2858
        %v2915 = vpack.c.b16 %v2863, %v2859
        %v2916 = vpack.c.b16 %v2864, %v2860
        %v2917 = vpack.c.b16 %v2865, %v2861
        %v2918 = vpack.c.b16 %v2870, %v2866
        %v2919 = vpack.c.b16 %v2871, %v2867
        %v2920 = vpack.c.b16 %v2872, %v2868
        %v2921 = vpack.c.b16 %v2873, %v2869
        %v2922 = vpack.c.b16 %v2878, %v2874
        %v2923 = vpack.c.b16 %v2879, %v2875
        %v2924 = vpack.c.b16 %v2880, %v2876
        %v2925 = vpack.c.b16 %v2881, %v2877
        %v2926 = vpack.c.b16 %v2886, %v2882
        %v2927 = vpack.c.b16 %v2887, %v2883
        %v2928 = vpack.c.b16 %v2888, %v2884
        %v2929 = vpack.c.b16 %v2889, %v2885
        %v2930 = vpack.c.b16 %v2894, %v2890
        %v2931 = vpack.c.b16 %v2895, %v2891
        %v2932 = vpack.c.b16 %v2896, %v2892
        %v2933 = vpack.c.b16 %v2897, %v2893
        %v2934 = vpack.c.b16 %v2902, %v2898
        %v2935 = vpack.c.b16 %v2903, %v2899
        %v2936 = vpack.c.b16 %v2904, %v2900
        %v2937 = vpack.c.b16 %v2905, %v2901
        %2970 = vmatprep.subr.bf16.mxu0 %v2907
        %2971 = vmatpush1.bf16.msra.mxu0 %v2906
        %2972 = vmatprep.subr.bf16.mxu0 %v2911
        %2973 = vmatpush1.bf16.msra.mxu0 %v2910
        %2974 = vmatprep.subr.bf16.mxu0 %v2915
        %2975 = vmatpush1.bf16.msra.mxu0 %v2914
        %2976 = vmatprep.subr.bf16.mxu0 %v2919
        %2977 = vmatpush1.bf16.msra.mxu0 %v2918
        %2978 = vmatprep.subr.bf16.mxu0 %v2923
        %2979 = vmatpush1.bf16.msra.mxu0 %v2922
        %2980 = vmatprep.subr.bf16.mxu0 %v2927
        %2981 = vmatpush1.bf16.msra.mxu0 %v2926
        %2982 = vmatprep.subr.bf16.mxu0 %v2931
        %2983 = vmatpush1.bf16.msra.mxu0 %v2930
        %2984 = vmatprep.subr.bf16.mxu0 %v2935
        %2985 = vmatpush1.bf16.msra.mxu0 %v2934
        %2986 = vmatprep.subr.bf16.mxu0 0
        %2987 = vmatpush1.bf16.msra.mxu0 0
        %2988 = vmatprep.subr.bf16.mxu0 0
        %2989 = vmatpush1.bf16.msra.mxu0 0
        %2990 = vmatprep.subr.bf16.mxu0 0
        %2991 = vmatpush1.bf16.msra.mxu0 0
        %2992 = vmatprep.subr.bf16.mxu0 0
        %2993 = vmatpush1.bf16.msra.mxu0 0
        %2994 = vmatprep.subr.bf16.mxu0 0
        %2995 = vmatpush1.bf16.msra.mxu0 0
        %2996 = vmatprep.subr.bf16.mxu0 0
        %2997 = vmatpush1.bf16.msra.mxu0 0
        %2998 = vmatprep.subr.bf16.mxu0 0
        %2999 = vmatpush1.bf16.msra.mxu0 0
        %3000 = vmatprep.subr.bf16.mxu0 0
        %3001 = vmatpush1.bf16.msra.mxu0 0
        %3002 = vmatprep.mubr.bf16.mxu0 0
        %3003 = vmatmul.mubr.bf16.gmra.mrb[0].mxu0 %v2777
        %v3004 = vpop.f32.mrb[0].mxu0
        %v3005 = vadd.f32 0.0, %v3004
        %v3006 = vpop.f32.mrb[0].mxu0
        %v3007 = vadd.f32 0.0, %v3006
        %v3008 = vpop.f32.mrb[0].mxu0
        %v3009 = vpop.f32.mrb[0].mxu0
        %3010 = vdwg.mxu0
        %3011 = vmatprep.subr.bf16.mxu0 %v2909
        %3012 = vmatpush1.bf16.msra.mxu0 %v2908
        %3013 = vmatprep.subr.bf16.mxu0 %v2913
        %3014 = vmatpush1.bf16.msra.mxu0 %v2912
        %3015 = vmatprep.subr.bf16.mxu0 %v2917
        %3016 = vmatpush1.bf16.msra.mxu0 %v2916
        %3017 = vmatprep.subr.bf16.mxu0 %v2921
        %3018 = vmatpush1.bf16.msra.mxu0 %v2920
        %3019 = vmatprep.subr.bf16.mxu0 %v2925
        %3020 = vmatpush1.bf16.msra.mxu0 %v2924
        %3021 = vmatprep.subr.bf16.mxu0 %v2929
        %3022 = vmatpush1.bf16.msra.mxu0 %v2928
        %3023 = vmatprep.subr.bf16.mxu0 %v2933
        %3024 = vmatpush1.bf16.msra.mxu0 %v2932
        %3025 = vmatprep.subr.bf16.mxu0 %v2937
        %3026 = vmatpush1.bf16.msra.mxu0 %v2936
        %3027 = vmatprep.subr.bf16.mxu0 0
        %3028 = vmatpush1.bf16.msra.mxu0 0
        %3029 = vmatprep.subr.bf16.mxu0 0
        %3030 = vmatpush1.bf16.msra.mxu0 0
        %3031 = vmatprep.subr.bf16.mxu0 0
        %3032 = vmatpush1.bf16.msra.mxu0 0
        %3033 = vmatprep.subr.bf16.mxu0 0
        %3034 = vmatpush1.bf16.msra.mxu0 0
        %3035 = vmatprep.subr.bf16.mxu0 0
        %3036 = vmatpush1.bf16.msra.mxu0 0
        %3037 = vmatprep.subr.bf16.mxu0 0
        %3038 = vmatpush1.bf16.msra.mxu0 0
        %3039 = vmatprep.subr.bf16.mxu0 0
        %3040 = vmatpush1.bf16.msra.mxu0 0
        %3041 = vmatprep.subr.bf16.mxu0 0
        %3042 = vmatpush1.bf16.msra.mxu0 0
        %3043 = vmatprep.mubr.bf16.mxu0 0
        %3044 = vmatmul.mubr.bf16.gmra.mrb[0].mxu0 %v2777
        %v3045 = vpop.f32.mrb[0].mxu0
        %v3046 = vadd.f32 0.0, %v3045
        %v3047 = vpop.f32.mrb[0].mxu0
        %v3048 = vadd.f32 0.0, %v3047
        %v3049 = vpop.f32.mrb[0].mxu0
        %v3050 = vpop.f32.mrb[0].mxu0
        %3051 = vdwg.mxu0
        %v3052 = vadd.f32 %v2773, %v3005
        %v3053 = vadd.f32 %v2774, %v3007
        %v3054 = vadd.f32 %v2775, %v3046
        %v3055 = vadd.f32 %v2776, %v3048
        %v3056 = vxor.u32 %v3052, 2147483648
        %v3057 = vxor.u32 %v3053, 2147483648
        %v3058 = vxor.u32 %v3054, 2147483648
        %v3059 = vmul.f32 %v3056, 1.442695
        %v3060 = vpow.pop %v3059
        %v3061 = vmul.f32 %v3057, 1.442695
        %v3062 = vpow.pop %v3061
        %v3063 = vmul.f32 %v3058, 1.442695
        %v3064 = vpow.pop %v3063
        %v3065 = vadd.f32 %v3060, 1.0
        %v3066 = vadd.f32 %v3062, 1.0
        %v3067 = vadd.f32 %v3064, 1.0
        %v3068 = vrcp.pop %v3065
        %v3069 = vmul.f32 1.0, %v3068
        %v3070 = vrcp.pop %v3066
        %v3071 = vmul.f32 1.0, %v3070
        %v3072 = vrcp.pop %v3067
        %v3073 = vmul.f32 1.0, %v3072
        %v3074 = vtanh.pop %v3055
        %v3075 = vmul.f32 %v3071, %v2769
        %v3076 = vmul.f32 %v3069, %v3074
        %v3077 = vadd.f32 %v3075, %v3076
        %v3078 = vtanh.pop %v3077
        %v3079 = vmul.f32 %v3073, %v3078
        %v3080 = vpack.c.bf16 %v3079, %v3079
        %s3081 = scalar_lea.vmem %s248, 28
        %3082 = vst [vmem:[%s3081] sm:$0xf] %v3080
        %s3083 = scalar_lea.vmem %s225, 96
        %v3084 = vld [vmem:[%s3083] sm:$0xff]
        %v3085 = vld [vmem:[%s3083 + $0x8] sm:$0xff]
        %v3086 = vunpack.c.l.bf16 %v3084
        %v3087 = vunpack.c.h.bf16 %v3084
        %v3088 = vunpack.c.l.bf16 %v3085
        %v3089 = vunpack.c.h.bf16 %v3085
        %v3090 = vld [vmem:[%s235] sm:$0xff]
        %v3091 = vld [vmem:[%s235 + $0x8] sm:$0xff]
        %v3092 = vld [vmem:[%s235 + $0x10] sm:$0xff]
        %v3093 = vld [vmem:[%s235 + $0x18] sm:$0xff]
        %v3094 = vld [vmem:[%s235 + $0x20] sm:$0xff]
        %v3095 = vld [vmem:[%s235 + $0x28] sm:$0xff]
        %v3096 = vld [vmem:[%s235 + $0x30] sm:$0xff]
        %v3097 = vld [vmem:[%s235 + $0x38] sm:$0xff]
        %v3098 = vld [vmem:[%s235 + $0x40] sm:$0xff]
        %v3099 = vld [vmem:[%s235 + $0x48] sm:$0xff]
        %v3100 = vld [vmem:[%s235 + $0x50] sm:$0xff]
        %v3101 = vld [vmem:[%s235 + $0x58] sm:$0xff]
        %v3102 = vld [vmem:[%s235 + $0x60] sm:$0xff]
        %v3103 = vld [vmem:[%s235 + $0x68] sm:$0xff]
        %v3104 = vld [vmem:[%s235 + $0x70] sm:$0xff]
        %v3105 = vld [vmem:[%s235 + $0x78] sm:$0xff]
        %v3106 = vld [vmem:[%s235 + $0x80] sm:$0xff]
        %v3107 = vld [vmem:[%s235 + $0x88] sm:$0xff]
        %v3108 = vld [vmem:[%s235 + $0x90] sm:$0xff]
        %v3109 = vld [vmem:[%s235 + $0x98] sm:$0xff]
        %v3110 = vld [vmem:[%s235 + $0xa0] sm:$0xff]
        %v3111 = vld [vmem:[%s235 + $0xa8] sm:$0xff]
        %v3112 = vld [vmem:[%s235 + $0xb0] sm:$0xff]
        %v3113 = vld [vmem:[%s235 + $0xb8] sm:$0xff]
        %v3114 = vld [vmem:[%s235 + $0xc0] sm:$0xff]
        %v3115 = vld [vmem:[%s235 + $0xc8] sm:$0xff]
        %v3116 = vld [vmem:[%s235 + $0xd0] sm:$0xff]
        %v3117 = vld [vmem:[%s235 + $0xd8] sm:$0xff]
        %v3118 = vld [vmem:[%s235 + $0xe0] sm:$0xff]
        %v3119 = vld [vmem:[%s235 + $0xe8] sm:$0xff]
        %v3120 = vld [vmem:[%s235 + $0xf0] sm:$0xff]
        %v3121 = vld [vmem:[%s235 + $0xf8] sm:$0xff]
        %v3154 = vunpack.c.l.b16 %v3090
        %v3155 = vunpack.c.h.b16 %v3090
        %v3156 = vunpack.c.l.b16 %v3091
        %v3157 = vunpack.c.h.b16 %v3091
        %v3158 = vunpack.c.l.b16 %v3092
        %v3159 = vunpack.c.h.b16 %v3092
        %v3160 = vunpack.c.l.b16 %v3093
        %v3161 = vunpack.c.h.b16 %v3093
        %v3162 = vunpack.c.l.b16 %v3094
        %v3163 = vunpack.c.h.b16 %v3094
        %v3164 = vunpack.c.l.b16 %v3095
        %v3165 = vunpack.c.h.b16 %v3095
        %v3166 = vunpack.c.l.b16 %v3096
        %v3167 = vunpack.c.h.b16 %v3096
        %v3168 = vunpack.c.l.b16 %v3097
        %v3169 = vunpack.c.h.b16 %v3097
        %v3170 = vunpack.c.l.b16 %v3098
        %v3171 = vunpack.c.h.b16 %v3098
        %v3172 = vunpack.c.l.b16 %v3099
        %v3173 = vunpack.c.h.b16 %v3099
        %v3174 = vunpack.c.l.b16 %v3100
        %v3175 = vunpack.c.h.b16 %v3100
        %v3176 = vunpack.c.l.b16 %v3101
        %v3177 = vunpack.c.h.b16 %v3101
        %v3178 = vunpack.c.l.b16 %v3102
        %v3179 = vunpack.c.h.b16 %v3102
        %v3180 = vunpack.c.l.b16 %v3103
        %v3181 = vunpack.c.h.b16 %v3103
        %v3182 = vunpack.c.l.b16 %v3104
        %v3183 = vunpack.c.h.b16 %v3104
        %v3184 = vunpack.c.l.b16 %v3105
        %v3185 = vunpack.c.h.b16 %v3105
        %v3186 = vunpack.c.l.b16 %v3106
        %v3187 = vunpack.c.h.b16 %v3106
        %v3188 = vunpack.c.l.b16 %v3107
        %v3189 = vunpack.c.h.b16 %v3107
        %v3190 = vunpack.c.l.b16 %v3108
        %v3191 = vunpack.c.h.b16 %v3108
        %v3192 = vunpack.c.l.b16 %v3109
        %v3193 = vunpack.c.h.b16 %v3109
        %v3194 = vunpack.c.l.b16 %v3110
        %v3195 = vunpack.c.h.b16 %v3110
        %v3196 = vunpack.c.l.b16 %v3111
        %v3197 = vunpack.c.h.b16 %v3111
        %v3198 = vunpack.c.l.b16 %v3112
        %v3199 = vunpack.c.h.b16 %v3112
        %v3200 = vunpack.c.l.b16 %v3113
        %v3201 = vunpack.c.h.b16 %v3113
        %v3202 = vunpack.c.l.b16 %v3114
        %v3203 = vunpack.c.h.b16 %v3114
        %v3204 = vunpack.c.l.b16 %v3115
        %v3205 = vunpack.c.h.b16 %v3115
        %v3206 = vunpack.c.l.b16 %v3116
        %v3207 = vunpack.c.h.b16 %v3116
        %v3208 = vunpack.c.l.b16 %v3117
        %v3209 = vunpack.c.h.b16 %v3117
        %v3210 = vunpack.c.l.b16 %v3118
        %v3211 = vunpack.c.h.b16 %v3118
        %v3212 = vunpack.c.l.b16 %v3119
        %v3213 = vunpack.c.h.b16 %v3119
        %v3214 = vunpack.c.l.b16 %v3120
        %v3215 = vunpack.c.h.b16 %v3120
        %v3216 = vunpack.c.l.b16 %v3121
        %v3217 = vunpack.c.h.b16 %v3121
        %v3218 = vpack.c.b16 %v3158, %v3154
        %v3219 = vpack.c.b16 %v3159, %v3155
        %v3220 = vpack.c.b16 %v3160, %v3156
        %v3221 = vpack.c.b16 %v3161, %v3157
        %v3222 = vpack.c.b16 %v3166, %v3162
        %v3223 = vpack.c.b16 %v3167, %v3163
        %v3224 = vpack.c.b16 %v3168, %v3164
        %v3225 = vpack.c.b16 %v3169, %v3165
        %v3226 = vpack.c.b16 %v3174, %v3170
        %v3227 = vpack.c.b16 %v3175, %v3171
        %v3228 = vpack.c.b16 %v3176, %v3172
        %v3229 = vpack.c.b16 %v3177, %v3173
        %v3230 = vpack.c.b16 %v3182, %v3178
        %v3231 = vpack.c.b16 %v3183, %v3179
        %v3232 = vpack.c.b16 %v3184, %v3180
        %v3233 = vpack.c.b16 %v3185, %v3181
        %v3234 = vpack.c.b16 %v3190, %v3186
        %v3235 = vpack.c.b16 %v3191, %v3187
        %v3236 = vpack.c.b16 %v3192, %v3188
        %v3237 = vpack.c.b16 %v3193, %v3189
        %v3238 = vpack.c.b16 %v3198, %v3194
        %v3239 = vpack.c.b16 %v3199, %v3195
        %v3240 = vpack.c.b16 %v3200, %v3196
        %v3241 = vpack.c.b16 %v3201, %v3197
        %v3242 = vpack.c.b16 %v3206, %v3202
        %v3243 = vpack.c.b16 %v3207, %v3203
        %v3244 = vpack.c.b16 %v3208, %v3204
        %v3245 = vpack.c.b16 %v3209, %v3205
        %v3246 = vpack.c.b16 %v3214, %v3210
        %v3247 = vpack.c.b16 %v3215, %v3211
        %v3248 = vpack.c.b16 %v3216, %v3212
        %v3249 = vpack.c.b16 %v3217, %v3213
        %3282 = vmatprep.subr.bf16.mxu0 %v3219
        %3283 = vmatpush1.bf16.msra.mxu0 %v3218
        %3284 = vmatprep.subr.bf16.mxu0 %v3223
        %3285 = vmatpush1.bf16.msra.mxu0 %v3222
        %3286 = vmatprep.subr.bf16.mxu0 %v3227
        %3287 = vmatpush1.bf16.msra.mxu0 %v3226
        %3288 = vmatprep.subr.bf16.mxu0 %v3231
        %3289 = vmatpush1.bf16.msra.mxu0 %v3230
        %3290 = vmatprep.subr.bf16.mxu0 %v3235
        %3291 = vmatpush1.bf16.msra.mxu0 %v3234
        %3292 = vmatprep.subr.bf16.mxu0 %v3239
        %3293 = vmatpush1.bf16.msra.mxu0 %v3238
        %3294 = vmatprep.subr.bf16.mxu0 %v3243
        %3295 = vmatpush1.bf16.msra.mxu0 %v3242
        %3296 = vmatprep.subr.bf16.mxu0 %v3247
        %3297 = vmatpush1.bf16.msra.mxu0 %v3246
        %3298 = vmatprep.subr.bf16.mxu0 0
        %3299 = vmatpush1.bf16.msra.mxu0 0
        %3300 = vmatprep.subr.bf16.mxu0 0
        %3301 = vmatpush1.bf16.msra.mxu0 0
        %3302 = vmatprep.subr.bf16.mxu0 0
        %3303 = vmatpush1.bf16.msra.mxu0 0
        %3304 = vmatprep.subr.bf16.mxu0 0
        %3305 = vmatpush1.bf16.msra.mxu0 0
        %3306 = vmatprep.subr.bf16.mxu0 0
        %3307 = vmatpush1.bf16.msra.mxu0 0
        %3308 = vmatprep.subr.bf16.mxu0 0
        %3309 = vmatpush1.bf16.msra.mxu0 0
        %3310 = vmatprep.subr.bf16.mxu0 0
        %3311 = vmatpush1.bf16.msra.mxu0 0
        %3312 = vmatprep.subr.bf16.mxu0 0
        %3313 = vmatpush1.bf16.msra.mxu0 0
        %3314 = vmatprep.mubr.bf16.mxu0 0
        %3315 = vmatmul.mubr.bf16.gmra.mrb[0].mxu0 %v3080
        %v3316 = vpop.f32.mrb[0].mxu0
        %v3317 = vadd.f32 0.0, %v3316
        %v3318 = vpop.f32.mrb[0].mxu0
        %v3319 = vadd.f32 0.0, %v3318
        %v3320 = vpop.f32.mrb[0].mxu0
        %v3321 = vpop.f32.mrb[0].mxu0
        %3322 = vdwg.mxu0
        %3323 = vmatprep.subr.bf16.mxu0 %v3221
        %3324 = vmatpush1.bf16.msra.mxu0 %v3220
        %3325 = vmatprep.subr.bf16.mxu0 %v3225
        %3326 = vmatpush1.bf16.msra.mxu0 %v3224
        %3327 = vmatprep.subr.bf16.mxu0 %v3229
        %3328 = vmatpush1.bf16.msra.mxu0 %v3228
        %3329 = vmatprep.subr.bf16.mxu0 %v3233
        %3330 = vmatpush1.bf16.msra.mxu0 %v3232
        %3331 = vmatprep.subr.bf16.mxu0 %v3237
        %3332 = vmatpush1.bf16.msra.mxu0 %v3236
        %3333 = vmatprep.subr.bf16.mxu0 %v3241
        %3334 = vmatpush1.bf16.msra.mxu0 %v3240
        %3335 = vmatprep.subr.bf16.mxu0 %v3245
        %3336 = vmatpush1.bf16.msra.mxu0 %v3244
        %3337 = vmatprep.subr.bf16.mxu0 %v3249
        %3338 = vmatpush1.bf16.msra.mxu0 %v3248
        %3339 = vmatprep.subr.bf16.mxu0 0
        %3340 = vmatpush1.bf16.msra.mxu0 0
        %3341 = vmatprep.subr.bf16.mxu0 0
        %3342 = vmatpush1.bf16.msra.mxu0 0
        %3343 = vmatprep.subr.bf16.mxu0 0
        %3344 = vmatpush1.bf16.msra.mxu0 0
        %3345 = vmatprep.subr.bf16.mxu0 0
        %3346 = vmatpush1.bf16.msra.mxu0 0
        %3347 = vmatprep.subr.bf16.mxu0 0
        %3348 = vmatpush1.bf16.msra.mxu0 0
        %3349 = vmatprep.subr.bf16.mxu0 0
        %3350 = vmatpush1.bf16.msra.mxu0 0
        %3351 = vmatprep.subr.bf16.mxu0 0
        %3352 = vmatpush1.bf16.msra.mxu0 0
        %3353 = vmatprep.subr.bf16.mxu0 0
        %3354 = vmatpush1.bf16.msra.mxu0 0
        %3355 = vmatprep.mubr.bf16.mxu0 0
        %3356 = vmatmul.mubr.bf16.gmra.mrb[0].mxu0 %v3080
        %v3357 = vpop.f32.mrb[0].mxu0
        %v3358 = vadd.f32 0.0, %v3357
        %v3359 = vpop.f32.mrb[0].mxu0
        %v3360 = vadd.f32 0.0, %v3359
        %v3361 = vpop.f32.mrb[0].mxu0
        %v3362 = vpop.f32.mrb[0].mxu0
        %3363 = vdwg.mxu0
        %v3364 = vadd.f32 %v3086, %v3317
        %v3365 = vadd.f32 %v3087, %v3319
        %v3366 = vadd.f32 %v3088, %v3358
        %v3367 = vadd.f32 %v3089, %v3360
        %v3368 = vxor.u32 %v3364, 2147483648
        %v3369 = vxor.u32 %v3365, 2147483648
        %v3370 = vxor.u32 %v3366, 2147483648
        %v3371 = vmul.f32 %v3368, 1.442695
        %v3372 = vpow.pop %v3371
        %v3373 = vmul.f32 %v3369, 1.442695
        %v3374 = vpow.pop %v3373
        %v3375 = vmul.f32 %v3370, 1.442695
        %v3376 = vpow.pop %v3375
        %v3377 = vadd.f32 %v3372, 1.0
        %v3378 = vadd.f32 %v3374, 1.0
        %v3379 = vadd.f32 %v3376, 1.0
        %v3380 = vrcp.pop %v3377
        %v3381 = vmul.f32 1.0, %v3380
        %v3382 = vrcp.pop %v3378
        %v3383 = vmul.f32 1.0, %v3382
        %v3384 = vrcp.pop %v3379
        %v3385 = vmul.f32 1.0, %v3384
        %v3386 = vtanh.pop %v3367
        %v3387 = vmul.f32 %v3383, %v3077
        %v3388 = vmul.f32 %v3381, %v3386
        %v3389 = vadd.f32 %v3387, %v3388
        %v3390 = vtanh.pop %v3389
        %v3391 = vmul.f32 %v3385, %v3390
        %v3392 = vpack.c.bf16 %v3391, %v3391
        %s3393 = scalar_lea.vmem %s248, 24
        %3394 = vst [vmem:[%s3393] sm:$0xf] %v3392
        %s3395 = scalar_lea.vmem %s225, 80
        %v3396 = vld [vmem:[%s3395] sm:$0xff]
        %v3397 = vld [vmem:[%s3395 + $0x8] sm:$0xff]
        %v3398 = vunpack.c.l.bf16 %v3396
        %v3399 = vunpack.c.h.bf16 %v3396
        %v3400 = vunpack.c.l.bf16 %v3397
        %v3401 = vunpack.c.h.bf16 %v3397
        %v3402 = vld [vmem:[%s235] sm:$0xff]
        %v3403 = vld [vmem:[%s235 + $0x8] sm:$0xff]
        %v3404 = vld [vmem:[%s235 + $0x10] sm:$0xff]
        %v3405 = vld [vmem:[%s235 + $0x18] sm:$0xff]
        %v3406 = vld [vmem:[%s235 + $0x20] sm:$0xff]
        %v3407 = vld [vmem:[%s235 + $0x28] sm:$0xff]
        %v3408 = vld [vmem:[%s235 + $0x30] sm:$0xff]
        %v3409 = vld [vmem:[%s235 + $0x38] sm:$0xff]
        %v3410 = vld [vmem:[%s235 + $0x40] sm:$0xff]
        %v3411 = vld [vmem:[%s235 + $0x48] sm:$0xff]
        %v3412 = vld [vmem:[%s235 + $0x50] sm:$0xff]
        %v3413 = vld [vmem:[%s235 + $0x58] sm:$0xff]
        %v3414 = vld [vmem:[%s235 + $0x60] sm:$0xff]
        %v3415 = vld [vmem:[%s235 + $0x68] sm:$0xff]
        %v3416 = vld [vmem:[%s235 + $0x70] sm:$0xff]
        %v3417 = vld [vmem:[%s235 + $0x78] sm:$0xff]
        %v3418 = vld [vmem:[%s235 + $0x80] sm:$0xff]
        %v3419 = vld [vmem:[%s235 + $0x88] sm:$0xff]
        %v3420 = vld [vmem:[%s235 + $0x90] sm:$0xff]
        %v3421 = vld [vmem:[%s235 + $0x98] sm:$0xff]
        %v3422 = vld [vmem:[%s235 + $0xa0] sm:$0xff]
        %v3423 = vld [vmem:[%s235 + $0xa8] sm:$0xff]
        %v3424 = vld [vmem:[%s235 + $0xb0] sm:$0xff]
        %v3425 = vld [vmem:[%s235 + $0xb8] sm:$0xff]
        %v3426 = vld [vmem:[%s235 + $0xc0] sm:$0xff]
        %v3427 = vld [vmem:[%s235 + $0xc8] sm:$0xff]
        %v3428 = vld [vmem:[%s235 + $0xd0] sm:$0xff]
        %v3429 = vld [vmem:[%s235 + $0xd8] sm:$0xff]
        %v3430 = vld [vmem:[%s235 + $0xe0] sm:$0xff]
        %v3431 = vld [vmem:[%s235 + $0xe8] sm:$0xff]
        %v3432 = vld [vmem:[%s235 + $0xf0] sm:$0xff]
        %v3433 = vld [vmem:[%s235 + $0xf8] sm:$0xff]
        %v3466 = vunpack.c.l.b16 %v3402
        %v3467 = vunpack.c.h.b16 %v3402
        %v3468 = vunpack.c.l.b16 %v3403
        %v3469 = vunpack.c.h.b16 %v3403
        %v3470 = vunpack.c.l.b16 %v3404
        %v3471 = vunpack.c.h.b16 %v3404
        %v3472 = vunpack.c.l.b16 %v3405
        %v3473 = vunpack.c.h.b16 %v3405
        %v3474 = vunpack.c.l.b16 %v3406
        %v3475 = vunpack.c.h.b16 %v3406
        %v3476 = vunpack.c.l.b16 %v3407
        %v3477 = vunpack.c.h.b16 %v3407
        %v3478 = vunpack.c.l.b16 %v3408
        %v3479 = vunpack.c.h.b16 %v3408
        %v3480 = vunpack.c.l.b16 %v3409
        %v3481 = vunpack.c.h.b16 %v3409
        %v3482 = vunpack.c.l.b16 %v3410
        %v3483 = vunpack.c.h.b16 %v3410
        %v3484 = vunpack.c.l.b16 %v3411
        %v3485 = vunpack.c.h.b16 %v3411
        %v3486 = vunpack.c.l.b16 %v3412
        %v3487 = vunpack.c.h.b16 %v3412
        %v3488 = vunpack.c.l.b16 %v3413
        %v3489 = vunpack.c.h.b16 %v3413
        %v3490 = vunpack.c.l.b16 %v3414
        %v3491 = vunpack.c.h.b16 %v3414
        %v3492 = vunpack.c.l.b16 %v3415
        %v3493 = vunpack.c.h.b16 %v3415
        %v3494 = vunpack.c.l.b16 %v3416
        %v3495 = vunpack.c.h.b16 %v3416
        %v3496 = vunpack.c.l.b16 %v3417
        %v3497 = vunpack.c.h.b16 %v3417
        %v3498 = vunpack.c.l.b16 %v3418
        %v3499 = vunpack.c.h.b16 %v3418
        %v3500 = vunpack.c.l.b16 %v3419
        %v3501 = vunpack.c.h.b16 %v3419
        %v3502 = vunpack.c.l.b16 %v3420
        %v3503 = vunpack.c.h.b16 %v3420
        %v3504 = vunpack.c.l.b16 %v3421
        %v3505 = vunpack.c.h.b16 %v3421
        %v3506 = vunpack.c.l.b16 %v3422
        %v3507 = vunpack.c.h.b16 %v3422
        %v3508 = vunpack.c.l.b16 %v3423
        %v3509 = vunpack.c.h.b16 %v3423
        %v3510 = vunpack.c.l.b16 %v3424
        %v3511 = vunpack.c.h.b16 %v3424
        %v3512 = vunpack.c.l.b16 %v3425
        %v3513 = vunpack.c.h.b16 %v3425
        %v3514 = vunpack.c.l.b16 %v3426
        %v3515 = vunpack.c.h.b16 %v3426
        %v3516 = vunpack.c.l.b16 %v3427
        %v3517 = vunpack.c.h.b16 %v3427
        %v3518 = vunpack.c.l.b16 %v3428
        %v3519 = vunpack.c.h.b16 %v3428
        %v3520 = vunpack.c.l.b16 %v3429
        %v3521 = vunpack.c.h.b16 %v3429
        %v3522 = vunpack.c.l.b16 %v3430
        %v3523 = vunpack.c.h.b16 %v3430
        %v3524 = vunpack.c.l.b16 %v3431
        %v3525 = vunpack.c.h.b16 %v3431
        %v3526 = vunpack.c.l.b16 %v3432
        %v3527 = vunpack.c.h.b16 %v3432
        %v3528 = vunpack.c.l.b16 %v3433
        %v3529 = vunpack.c.h.b16 %v3433
        %v3530 = vpack.c.b16 %v3470, %v3466
        %v3531 = vpack.c.b16 %v3471, %v3467
        %v3532 = vpack.c.b16 %v3472, %v3468
        %v3533 = vpack.c.b16 %v3473, %v3469
        %v3534 = vpack.c.b16 %v3478, %v3474
        %v3535 = vpack.c.b16 %v3479, %v3475
        %v3536 = vpack.c.b16 %v3480, %v3476
        %v3537 = vpack.c.b16 %v3481, %v3477
        %v3538 = vpack.c.b16 %v3486, %v3482
        %v3539 = vpack.c.b16 %v3487, %v3483
        %v3540 = vpack.c.b16 %v3488, %v3484
        %v3541 = vpack.c.b16 %v3489, %v3485
        %v3542 = vpack.c.b16 %v3494, %v3490
        %v3543 = vpack.c.b16 %v3495, %v3491
        %v3544 = vpack.c.b16 %v3496, %v3492
        %v3545 = vpack.c.b16 %v3497, %v3493
        %v3546 = vpack.c.b16 %v3502, %v3498
        %v3547 = vpack.c.b16 %v3503, %v3499
        %v3548 = vpack.c.b16 %v3504, %v3500
        %v3549 = vpack.c.b16 %v3505, %v3501
        %v3550 = vpack.c.b16 %v3510, %v3506
        %v3551 = vpack.c.b16 %v3511, %v3507
        %v3552 = vpack.c.b16 %v3512, %v3508
        %v3553 = vpack.c.b16 %v3513, %v3509
        %v3554 = vpack.c.b16 %v3518, %v3514
        %v3555 = vpack.c.b16 %v3519, %v3515
        %v3556 = vpack.c.b16 %v3520, %v3516
        %v3557 = vpack.c.b16 %v3521, %v3517
        %v3558 = vpack.c.b16 %v3526, %v3522
        %v3559 = vpack.c.b16 %v3527, %v3523
        %v3560 = vpack.c.b16 %v3528, %v3524
        %v3561 = vpack.c.b16 %v3529, %v3525
        %3594 = vmatprep.subr.bf16.mxu0 %v3531
        %3595 = vmatpush1.bf16.msra.mxu0 %v3530
        %3596 = vmatprep.subr.bf16.mxu0 %v3535
        %3597 = vmatpush1.bf16.msra.mxu0 %v3534
        %3598 = vmatprep.subr.bf16.mxu0 %v3539
        %3599 = vmatpush1.bf16.msra.mxu0 %v3538
        %3600 = vmatprep.subr.bf16.mxu0 %v3543
        %3601 = vmatpush1.bf16.msra.mxu0 %v3542
        %3602 = vmatprep.subr.bf16.mxu0 %v3547
        %3603 = vmatpush1.bf16.msra.mxu0 %v3546
        %3604 = vmatprep.subr.bf16.mxu0 %v3551
        %3605 = vmatpush1.bf16.msra.mxu0 %v3550
        %3606 = vmatprep.subr.bf16.mxu0 %v3555
        %3607 = vmatpush1.bf16.msra.mxu0 %v3554
        %3608 = vmatprep.subr.bf16.mxu0 %v3559
        %3609 = vmatpush1.bf16.msra.mxu0 %v3558
        %3610 = vmatprep.subr.bf16.mxu0 0
        %3611 = vmatpush1.bf16.msra.mxu0 0
        %3612 = vmatprep.subr.bf16.mxu0 0
        %3613 = vmatpush1.bf16.msra.mxu0 0
        %3614 = vmatprep.subr.bf16.mxu0 0
        %3615 = vmatpush1.bf16.msra.mxu0 0
        %3616 = vmatprep.subr.bf16.mxu0 0
        %3617 = vmatpush1.bf16.msra.mxu0 0
        %3618 = vmatprep.subr.bf16.mxu0 0
        %3619 = vmatpush1.bf16.msra.mxu0 0
        %3620 = vmatprep.subr.bf16.mxu0 0
        %3621 = vmatpush1.bf16.msra.mxu0 0
        %3622 = vmatprep.subr.bf16.mxu0 0
        %3623 = vmatpush1.bf16.msra.mxu0 0
        %3624 = vmatprep.subr.bf16.mxu0 0
        %3625 = vmatpush1.bf16.msra.mxu0 0
        %3626 = vmatprep.mubr.bf16.mxu0 0
        %3627 = vmatmul.mubr.bf16.gmra.mrb[0].mxu0 %v3392
        %v3628 = vpop.f32.mrb[0].mxu0
        %v3629 = vadd.f32 0.0, %v3628
        %v3630 = vpop.f32.mrb[0].mxu0
        %v3631 = vadd.f32 0.0, %v3630
        %v3632 = vpop.f32.mrb[0].mxu0
        %v3633 = vpop.f32.mrb[0].mxu0
        %3634 = vdwg.mxu0
        %3635 = vmatprep.subr.bf16.mxu0 %v3533
        %3636 = vmatpush1.bf16.msra.mxu0 %v3532
        %3637 = vmatprep.subr.bf16.mxu0 %v3537
        %3638 = vmatpush1.bf16.msra.mxu0 %v3536
        %3639 = vmatprep.subr.bf16.mxu0 %v3541
        %3640 = vmatpush1.bf16.msra.mxu0 %v3540
        %3641 = vmatprep.subr.bf16.mxu0 %v3545
        %3642 = vmatpush1.bf16.msra.mxu0 %v3544
        %3643 = vmatprep.subr.bf16.mxu0 %v3549
        %3644 = vmatpush1.bf16.msra.mxu0 %v3548
        %3645 = vmatprep.subr.bf16.mxu0 %v3553
        %3646 = vmatpush1.bf16.msra.mxu0 %v3552
        %3647 = vmatprep.subr.bf16.mxu0 %v3557
        %3648 = vmatpush1.bf16.msra.mxu0 %v3556
        %3649 = vmatprep.subr.bf16.mxu0 %v3561
        %3650 = vmatpush1.bf16.msra.mxu0 %v3560
        %3651 = vmatprep.subr.bf16.mxu0 0
        %3652 = vmatpush1.bf16.msra.mxu0 0
        %3653 = vmatprep.subr.bf16.mxu0 0
        %3654 = vmatpush1.bf16.msra.mxu0 0
        %3655 = vmatprep.subr.bf16.mxu0 0
        %3656 = vmatpush1.bf16.msra.mxu0 0
        %3657 = vmatprep.subr.bf16.mxu0 0
        %3658 = vmatpush1.bf16.msra.mxu0 0
        %3659 = vmatprep.subr.bf16.mxu0 0
        %3660 = vmatpush1.bf16.msra.mxu0 0
        %3661 = vmatprep.subr.bf16.mxu0 0
        %3662 = vmatpush1.bf16.msra.mxu0 0
        %3663 = vmatprep.subr.bf16.mxu0 0
        %3664 = vmatpush1.bf16.msra.mxu0 0
        %3665 = vmatprep.subr.bf16.mxu0 0
        %3666 = vmatpush1.bf16.msra.mxu0 0
        %3667 = vmatprep.mubr.bf16.mxu0 0
        %3668 = vmatmul.mubr.bf16.gmra.mrb[0].mxu0 %v3392
        %v3669 = vpop.f32.mrb[0].mxu0
        %v3670 = vadd.f32 0.0, %v3669
        %v3671 = vpop.f32.mrb[0].mxu0
        %v3672 = vadd.f32 0.0, %v3671
        %v3673 = vpop.f32.mrb[0].mxu0
        %v3674 = vpop.f32.mrb[0].mxu0
        %3675 = vdwg.mxu0
        %v3676 = vadd.f32 %v3398, %v3629
        %v3677 = vadd.f32 %v3399, %v3631
        %v3678 = vadd.f32 %v3400, %v3670
        %v3679 = vadd.f32 %v3401, %v3672
        %v3680 = vxor.u32 %v3676, 2147483648
        %v3681 = vxor.u32 %v3677, 2147483648
        %v3682 = vxor.u32 %v3678, 2147483648
        %v3683 = vmul.f32 %v3680, 1.442695
        %v3684 = vpow.pop %v3683
        %v3685 = vmul.f32 %v3681, 1.442695
        %v3686 = vpow.pop %v3685
        %v3687 = vmul.f32 %v3682, 1.442695
        %v3688 = vpow.pop %v3687
        %v3689 = vadd.f32 %v3684, 1.0
        %v3690 = vadd.f32 %v3686, 1.0
        %v3691 = vadd.f32 %v3688, 1.0
        %v3692 = vrcp.pop %v3689
        %v3693 = vmul.f32 1.0, %v3692
        %v3694 = vrcp.pop %v3690
        %v3695 = vmul.f32 1.0, %v3694
        %v3696 = vrcp.pop %v3691
        %v3697 = vmul.f32 1.0, %v3696
        %v3698 = vtanh.pop %v3679
        %v3699 = vmul.f32 %v3695, %v3389
        %v3700 = vmul.f32 %v3693, %v3698
        %v3701 = vadd.f32 %v3699, %v3700
        %v3702 = vtanh.pop %v3701
        %v3703 = vmul.f32 %v3697, %v3702
        %v3704 = vpack.c.bf16 %v3703, %v3703
        %s3705 = scalar_lea.vmem %s248, 20
        %3706 = vst [vmem:[%s3705] sm:$0xf] %v3704
        %s3707 = scalar_lea.vmem %s225, 64
        %v3708 = vld [vmem:[%s3707] sm:$0xff]
        %v3709 = vld [vmem:[%s3707 + $0x8] sm:$0xff]
        %v3710 = vunpack.c.l.bf16 %v3708
        %v3711 = vunpack.c.h.bf16 %v3708
        %v3712 = vunpack.c.l.bf16 %v3709
        %v3713 = vunpack.c.h.bf16 %v3709
        %v3714 = vld [vmem:[%s235] sm:$0xff]
        %v3715 = vld [vmem:[%s235 + $0x8] sm:$0xff]
        %v3716 = vld [vmem:[%s235 + $0x10] sm:$0xff]
        %v3717 = vld [vmem:[%s235 + $0x18] sm:$0xff]
        %v3718 = vld [vmem:[%s235 + $0x20] sm:$0xff]
        %v3719 = vld [vmem:[%s235 + $0x28] sm:$0xff]
        %v3720 = vld [vmem:[%s235 + $0x30] sm:$0xff]
        %v3721 = vld [vmem:[%s235 + $0x38] sm:$0xff]
        %v3722 = vld [vmem:[%s235 + $0x40] sm:$0xff]
        %v3723 = vld [vmem:[%s235 + $0x48] sm:$0xff]
        %v3724 = vld [vmem:[%s235 + $0x50] sm:$0xff]
        %v3725 = vld [vmem:[%s235 + $0x58] sm:$0xff]
        %v3726 = vld [vmem:[%s235 + $0x60] sm:$0xff]
        %v3727 = vld [vmem:[%s235 + $0x68] sm:$0xff]
        %v3728 = vld [vmem:[%s235 + $0x70] sm:$0xff]
        %v3729 = vld [vmem:[%s235 + $0x78] sm:$0xff]
        %v3730 = vld [vmem:[%s235 + $0x80] sm:$0xff]
        %v3731 = vld [vmem:[%s235 + $0x88] sm:$0xff]
        %v3732 = vld [vmem:[%s235 + $0x90] sm:$0xff]
        %v3733 = vld [vmem:[%s235 + $0x98] sm:$0xff]
        %v3734 = vld [vmem:[%s235 + $0xa0] sm:$0xff]
        %v3735 = vld [vmem:[%s235 + $0xa8] sm:$0xff]
        %v3736 = vld [vmem:[%s235 + $0xb0] sm:$0xff]
        %v3737 = vld [vmem:[%s235 + $0xb8] sm:$0xff]
        %v3738 = vld [vmem:[%s235 + $0xc0] sm:$0xff]
        %v3739 = vld [vmem:[%s235 + $0xc8] sm:$0xff]
        %v3740 = vld [vmem:[%s235 + $0xd0] sm:$0xff]
        %v3741 = vld [vmem:[%s235 + $0xd8] sm:$0xff]
        %v3742 = vld [vmem:[%s235 + $0xe0] sm:$0xff]
        %v3743 = vld [vmem:[%s235 + $0xe8] sm:$0xff]
        %v3744 = vld [vmem:[%s235 + $0xf0] sm:$0xff]
        %v3745 = vld [vmem:[%s235 + $0xf8] sm:$0xff]
        %v3778 = vunpack.c.l.b16 %v3714
        %v3779 = vunpack.c.h.b16 %v3714
        %v3780 = vunpack.c.l.b16 %v3715
        %v3781 = vunpack.c.h.b16 %v3715
        %v3782 = vunpack.c.l.b16 %v3716
        %v3783 = vunpack.c.h.b16 %v3716
        %v3784 = vunpack.c.l.b16 %v3717
        %v3785 = vunpack.c.h.b16 %v3717
        %v3786 = vunpack.c.l.b16 %v3718
        %v3787 = vunpack.c.h.b16 %v3718
        %v3788 = vunpack.c.l.b16 %v3719
        %v3789 = vunpack.c.h.b16 %v3719
        %v3790 = vunpack.c.l.b16 %v3720
        %v3791 = vunpack.c.h.b16 %v3720
        %v3792 = vunpack.c.l.b16 %v3721
        %v3793 = vunpack.c.h.b16 %v3721
        %v3794 = vunpack.c.l.b16 %v3722
        %v3795 = vunpack.c.h.b16 %v3722
        %v3796 = vunpack.c.l.b16 %v3723
        %v3797 = vunpack.c.h.b16 %v3723
        %v3798 = vunpack.c.l.b16 %v3724
        %v3799 = vunpack.c.h.b16 %v3724
        %v3800 = vunpack.c.l.b16 %v3725
        %v3801 = vunpack.c.h.b16 %v3725
        %v3802 = vunpack.c.l.b16 %v3726
        %v3803 = vunpack.c.h.b16 %v3726
        %v3804 = vunpack.c.l.b16 %v3727
        %v3805 = vunpack.c.h.b16 %v3727
        %v3806 = vunpack.c.l.b16 %v3728
        %v3807 = vunpack.c.h.b16 %v3728
        %v3808 = vunpack.c.l.b16 %v3729
        %v3809 = vunpack.c.h.b16 %v3729
        %v3810 = vunpack.c.l.b16 %v3730
        %v3811 = vunpack.c.h.b16 %v3730
        %v3812 = vunpack.c.l.b16 %v3731
        %v3813 = vunpack.c.h.b16 %v3731
        %v3814 = vunpack.c.l.b16 %v3732
        %v3815 = vunpack.c.h.b16 %v3732
        %v3816 = vunpack.c.l.b16 %v3733
        %v3817 = vunpack.c.h.b16 %v3733
        %v3818 = vunpack.c.l.b16 %v3734
        %v3819 = vunpack.c.h.b16 %v3734
        %v3820 = vunpack.c.l.b16 %v3735
        %v3821 = vunpack.c.h.b16 %v3735
        %v3822 = vunpack.c.l.b16 %v3736
        %v3823 = vunpack.c.h.b16 %v3736
        %v3824 = vunpack.c.l.b16 %v3737
        %v3825 = vunpack.c.h.b16 %v3737
        %v3826 = vunpack.c.l.b16 %v3738
        %v3827 = vunpack.c.h.b16 %v3738
        %v3828 = vunpack.c.l.b16 %v3739
        %v3829 = vunpack.c.h.b16 %v3739
        %v3830 = vunpack.c.l.b16 %v3740
        %v3831 = vunpack.c.h.b16 %v3740
        %v3832 = vunpack.c.l.b16 %v3741
        %v3833 = vunpack.c.h.b16 %v3741
        %v3834 = vunpack.c.l.b16 %v3742
        %v3835 = vunpack.c.h.b16 %v3742
        %v3836 = vunpack.c.l.b16 %v3743
        %v3837 = vunpack.c.h.b16 %v3743
        %v3838 = vunpack.c.l.b16 %v3744
        %v3839 = vunpack.c.h.b16 %v3744
        %v3840 = vunpack.c.l.b16 %v3745
        %v3841 = vunpack.c.h.b16 %v3745
        %v3842 = vpack.c.b16 %v3782, %v3778
        %v3843 = vpack.c.b16 %v3783, %v3779
        %v3844 = vpack.c.b16 %v3784, %v3780
        %v3845 = vpack.c.b16 %v3785, %v3781
        %v3846 = vpack.c.b16 %v3790, %v3786
        %v3847 = vpack.c.b16 %v3791, %v3787
        %v3848 = vpack.c.b16 %v3792, %v3788
        %v3849 = vpack.c.b16 %v3793, %v3789
        %v3850 = vpack.c.b16 %v3798, %v3794
        %v3851 = vpack.c.b16 %v3799, %v3795
        %v3852 = vpack.c.b16 %v3800, %v3796
        %v3853 = vpack.c.b16 %v3801, %v3797
        %v3854 = vpack.c.b16 %v3806, %v3802
        %v3855 = vpack.c.b16 %v3807, %v3803
        %v3856 = vpack.c.b16 %v3808, %v3804
        %v3857 = vpack.c.b16 %v3809, %v3805
        %v3858 = vpack.c.b16 %v3814, %v3810
        %v3859 = vpack.c.b16 %v3815, %v3811
        %v3860 = vpack.c.b16 %v3816, %v3812
        %v3861 = vpack.c.b16 %v3817, %v3813
        %v3862 = vpack.c.b16 %v3822, %v3818
        %v3863 = vpack.c.b16 %v3823, %v3819
        %v3864 = vpack.c.b16 %v3824, %v3820
        %v3865 = vpack.c.b16 %v3825, %v3821
        %v3866 = vpack.c.b16 %v3830, %v3826
        %v3867 = vpack.c.b16 %v3831, %v3827
        %v3868 = vpack.c.b16 %v3832, %v3828
        %v3869 = vpack.c.b16 %v3833, %v3829
        %v3870 = vpack.c.b16 %v3838, %v3834
        %v3871 = vpack.c.b16 %v3839, %v3835
        %v3872 = vpack.c.b16 %v3840, %v3836
        %v3873 = vpack.c.b16 %v3841, %v3837
        %3906 = vmatprep.subr.bf16.mxu0 %v3843
        %3907 = vmatpush1.bf16.msra.mxu0 %v3842
        %3908 = vmatprep.subr.bf16.mxu0 %v3847
        %3909 = vmatpush1.bf16.msra.mxu0 %v3846
        %3910 = vmatprep.subr.bf16.mxu0 %v3851
        %3911 = vmatpush1.bf16.msra.mxu0 %v3850
        %3912 = vmatprep.subr.bf16.mxu0 %v3855
        %3913 = vmatpush1.bf16.msra.mxu0 %v3854
        %3914 = vmatprep.subr.bf16.mxu0 %v3859
        %3915 = vmatpush1.bf16.msra.mxu0 %v3858
        %3916 = vmatprep.subr.bf16.mxu0 %v3863
        %3917 = vmatpush1.bf16.msra.mxu0 %v3862
        %3918 = vmatprep.subr.bf16.mxu0 %v3867
        %3919 = vmatpush1.bf16.msra.mxu0 %v3866
        %3920 = vmatprep.subr.bf16.mxu0 %v3871
        %3921 = vmatpush1.bf16.msra.mxu0 %v3870
        %3922 = vmatprep.subr.bf16.mxu0 0
        %3923 = vmatpush1.bf16.msra.mxu0 0
        %3924 = vmatprep.subr.bf16.mxu0 0
        %3925 = vmatpush1.bf16.msra.mxu0 0
        %3926 = vmatprep.subr.bf16.mxu0 0
        %3927 = vmatpush1.bf16.msra.mxu0 0
        %3928 = vmatprep.subr.bf16.mxu0 0
        %3929 = vmatpush1.bf16.msra.mxu0 0
        %3930 = vmatprep.subr.bf16.mxu0 0
        %3931 = vmatpush1.bf16.msra.mxu0 0
        %3932 = vmatprep.subr.bf16.mxu0 0
        %3933 = vmatpush1.bf16.msra.mxu0 0
        %3934 = vmatprep.subr.bf16.mxu0 0
        %3935 = vmatpush1.bf16.msra.mxu0 0
        %3936 = vmatprep.subr.bf16.mxu0 0
        %3937 = vmatpush1.bf16.msra.mxu0 0
        %3938 = vmatprep.mubr.bf16.mxu0 0
        %3939 = vmatmul.mubr.bf16.gmra.mrb[0].mxu0 %v3704
        %v3940 = vpop.f32.mrb[0].mxu0
        %v3941 = vadd.f32 0.0, %v3940
        %v3942 = vpop.f32.mrb[0].mxu0
        %v3943 = vadd.f32 0.0, %v3942
        %v3944 = vpop.f32.mrb[0].mxu0
        %v3945 = vpop.f32.mrb[0].mxu0
        %3946 = vdwg.mxu0
        %3947 = vmatprep.subr.bf16.mxu0 %v3845
        %3948 = vmatpush1.bf16.msra.mxu0 %v3844
        %3949 = vmatprep.subr.bf16.mxu0 %v3849
        %3950 = vmatpush1.bf16.msra.mxu0 %v3848
        %3951 = vmatprep.subr.bf16.mxu0 %v3853
        %3952 = vmatpush1.bf16.msra.mxu0 %v3852
        %3953 = vmatprep.subr.bf16.mxu0 %v3857
        %3954 = vmatpush1.bf16.msra.mxu0 %v3856
        %3955 = vmatprep.subr.bf16.mxu0 %v3861
        %3956 = vmatpush1.bf16.msra.mxu0 %v3860
        %3957 = vmatprep.subr.bf16.mxu0 %v3865
        %3958 = vmatpush1.bf16.msra.mxu0 %v3864
        %3959 = vmatprep.subr.bf16.mxu0 %v3869
        %3960 = vmatpush1.bf16.msra.mxu0 %v3868
        %3961 = vmatprep.subr.bf16.mxu0 %v3873
        %3962 = vmatpush1.bf16.msra.mxu0 %v3872
        %3963 = vmatprep.subr.bf16.mxu0 0
        %3964 = vmatpush1.bf16.msra.mxu0 0
        %3965 = vmatprep.subr.bf16.mxu0 0
        %3966 = vmatpush1.bf16.msra.mxu0 0
        %3967 = vmatprep.subr.bf16.mxu0 0
        %3968 = vmatpush1.bf16.msra.mxu0 0
        %3969 = vmatprep.subr.bf16.mxu0 0
        %3970 = vmatpush1.bf16.msra.mxu0 0
        %3971 = vmatprep.subr.bf16.mxu0 0
        %3972 = vmatpush1.bf16.msra.mxu0 0
        %3973 = vmatprep.subr.bf16.mxu0 0
        %3974 = vmatpush1.bf16.msra.mxu0 0
        %3975 = vmatprep.subr.bf16.mxu0 0
        %3976 = vmatpush1.bf16.msra.mxu0 0
        %3977 = vmatprep.subr.bf16.mxu0 0
        %3978 = vmatpush1.bf16.msra.mxu0 0
        %3979 = vmatprep.mubr.bf16.mxu0 0
        %3980 = vmatmul.mubr.bf16.gmra.mrb[0].mxu0 %v3704
        %v3981 = vpop.f32.mrb[0].mxu0
        %v3982 = vadd.f32 0.0, %v3981
        %v3983 = vpop.f32.mrb[0].mxu0
        %v3984 = vadd.f32 0.0, %v3983
        %v3985 = vpop.f32.mrb[0].mxu0
        %v3986 = vpop.f32.mrb[0].mxu0
        %3987 = vdwg.mxu0
        %v3988 = vadd.f32 %v3710, %v3941
        %v3989 = vadd.f32 %v3711, %v3943
        %v3990 = vadd.f32 %v3712, %v3982
        %v3991 = vadd.f32 %v3713, %v3984
        %v3992 = vxor.u32 %v3988, 2147483648
        %v3993 = vxor.u32 %v3989, 2147483648
        %v3994 = vxor.u32 %v3990, 2147483648
        %v3995 = vmul.f32 %v3992, 1.442695
        %v3996 = vpow.pop %v3995
        %v3997 = vmul.f32 %v3993, 1.442695
        %v3998 = vpow.pop %v3997
        %v3999 = vmul.f32 %v3994, 1.442695
        %v4000 = vpow.pop %v3999
        %v4001 = vadd.f32 %v3996, 1.0
        %v4002 = vadd.f32 %v3998, 1.0
        %v4003 = vadd.f32 %v4000, 1.0
        %v4004 = vrcp.pop %v4001
        %v4005 = vmul.f32 1.0, %v4004
        %v4006 = vrcp.pop %v4002
        %v4007 = vmul.f32 1.0, %v4006
        %v4008 = vrcp.pop %v4003
        %v4009 = vmul.f32 1.0, %v4008
        %v4010 = vtanh.pop %v3991
        %v4011 = vmul.f32 %v4007, %v3701
        %v4012 = vmul.f32 %v4005, %v4010
        %v4013 = vadd.f32 %v4011, %v4012
        %v4014 = vtanh.pop %v4013
        %v4015 = vmul.f32 %v4009, %v4014
        %v4016 = vpack.c.bf16 %v4015, %v4015
        %s4017 = scalar_lea.vmem %s248, 16
        %4018 = vst [vmem:[%s4017] sm:$0xf] %v4016
        %s4019 = scalar_lea.vmem %s225, 48
        %v4020 = vld [vmem:[%s4019] sm:$0xff]
        %v4021 = vld [vmem:[%s4019 + $0x8] sm:$0xff]
        %v4022 = vunpack.c.l.bf16 %v4020
        %v4023 = vunpack.c.h.bf16 %v4020
        %v4024 = vunpack.c.l.bf16 %v4021
        %v4025 = vunpack.c.h.bf16 %v4021
        %v4026 = vld [vmem:[%s235] sm:$0xff]
        %v4027 = vld [vmem:[%s235 + $0x8] sm:$0xff]
        %v4028 = vld [vmem:[%s235 + $0x10] sm:$0xff]
        %v4029 = vld [vmem:[%s235 + $0x18] sm:$0xff]
        %v4030 = vld [vmem:[%s235 + $0x20] sm:$0xff]
        %v4031 = vld [vmem:[%s235 + $0x28] sm:$0xff]
        %v4032 = vld [vmem:[%s235 + $0x30] sm:$0xff]
        %v4033 = vld [vmem:[%s235 + $0x38] sm:$0xff]
        %v4034 = vld [vmem:[%s235 + $0x40] sm:$0xff]
        %v4035 = vld [vmem:[%s235 + $0x48] sm:$0xff]
        %v4036 = vld [vmem:[%s235 + $0x50] sm:$0xff]
        %v4037 = vld [vmem:[%s235 + $0x58] sm:$0xff]
        %v4038 = vld [vmem:[%s235 + $0x60] sm:$0xff]
        %v4039 = vld [vmem:[%s235 + $0x68] sm:$0xff]
        %v4040 = vld [vmem:[%s235 + $0x70] sm:$0xff]
        %v4041 = vld [vmem:[%s235 + $0x78] sm:$0xff]
        %v4042 = vld [vmem:[%s235 + $0x80] sm:$0xff]
        %v4043 = vld [vmem:[%s235 + $0x88] sm:$0xff]
        %v4044 = vld [vmem:[%s235 + $0x90] sm:$0xff]
        %v4045 = vld [vmem:[%s235 + $0x98] sm:$0xff]
        %v4046 = vld [vmem:[%s235 + $0xa0] sm:$0xff]
        %v4047 = vld [vmem:[%s235 + $0xa8] sm:$0xff]
        %v4048 = vld [vmem:[%s235 + $0xb0] sm:$0xff]
        %v4049 = vld [vmem:[%s235 + $0xb8] sm:$0xff]
        %v4050 = vld [vmem:[%s235 + $0xc0] sm:$0xff]
        %v4051 = vld [vmem:[%s235 + $0xc8] sm:$0xff]
        %v4052 = vld [vmem:[%s235 + $0xd0] sm:$0xff]
        %v4053 = vld [vmem:[%s235 + $0xd8] sm:$0xff]
        %v4054 = vld [vmem:[%s235 + $0xe0] sm:$0xff]
        %v4055 = vld [vmem:[%s235 + $0xe8] sm:$0xff]
        %v4056 = vld [vmem:[%s235 + $0xf0] sm:$0xff]
        %v4057 = vld [vmem:[%s235 + $0xf8] sm:$0xff]
        %v4090 = vunpack.c.l.b16 %v4026
        %v4091 = vunpack.c.h.b16 %v4026
        %v4092 = vunpack.c.l.b16 %v4027
        %v4093 = vunpack.c.h.b16 %v4027
        %v4094 = vunpack.c.l.b16 %v4028
        %v4095 = vunpack.c.h.b16 %v4028
        %v4096 = vunpack.c.l.b16 %v4029
        %v4097 = vunpack.c.h.b16 %v4029
        %v4098 = vunpack.c.l.b16 %v4030
        %v4099 = vunpack.c.h.b16 %v4030
        %v4100 = vunpack.c.l.b16 %v4031
        %v4101 = vunpack.c.h.b16 %v4031
        %v4102 = vunpack.c.l.b16 %v4032
        %v4103 = vunpack.c.h.b16 %v4032
        %v4104 = vunpack.c.l.b16 %v4033
        %v4105 = vunpack.c.h.b16 %v4033
        %v4106 = vunpack.c.l.b16 %v4034
        %v4107 = vunpack.c.h.b16 %v4034
        %v4108 = vunpack.c.l.b16 %v4035
        %v4109 = vunpack.c.h.b16 %v4035
        %v4110 = vunpack.c.l.b16 %v4036
        %v4111 = vunpack.c.h.b16 %v4036
        %v4112 = vunpack.c.l.b16 %v4037
        %v4113 = vunpack.c.h.b16 %v4037
        %v4114 = vunpack.c.l.b16 %v4038
        %v4115 = vunpack.c.h.b16 %v4038
        %v4116 = vunpack.c.l.b16 %v4039
        %v4117 = vunpack.c.h.b16 %v4039
        %v4118 = vunpack.c.l.b16 %v4040
        %v4119 = vunpack.c.h.b16 %v4040
        %v4120 = vunpack.c.l.b16 %v4041
        %v4121 = vunpack.c.h.b16 %v4041
        %v4122 = vunpack.c.l.b16 %v4042
        %v4123 = vunpack.c.h.b16 %v4042
        %v4124 = vunpack.c.l.b16 %v4043
        %v4125 = vunpack.c.h.b16 %v4043
        %v4126 = vunpack.c.l.b16 %v4044
        %v4127 = vunpack.c.h.b16 %v4044
        %v4128 = vunpack.c.l.b16 %v4045
        %v4129 = vunpack.c.h.b16 %v4045
        %v4130 = vunpack.c.l.b16 %v4046
        %v4131 = vunpack.c.h.b16 %v4046
        %v4132 = vunpack.c.l.b16 %v4047
        %v4133 = vunpack.c.h.b16 %v4047
        %v4134 = vunpack.c.l.b16 %v4048
        %v4135 = vunpack.c.h.b16 %v4048
        %v4136 = vunpack.c.l.b16 %v4049
        %v4137 = vunpack.c.h.b16 %v4049
        %v4138 = vunpack.c.l.b16 %v4050
        %v4139 = vunpack.c.h.b16 %v4050
        %v4140 = vunpack.c.l.b16 %v4051
        %v4141 = vunpack.c.h.b16 %v4051
        %v4142 = vunpack.c.l.b16 %v4052
        %v4143 = vunpack.c.h.b16 %v4052
        %v4144 = vunpack.c.l.b16 %v4053
        %v4145 = vunpack.c.h.b16 %v4053
        %v4146 = vunpack.c.l.b16 %v4054
        %v4147 = vunpack.c.h.b16 %v4054
        %v4148 = vunpack.c.l.b16 %v4055
        %v4149 = vunpack.c.h.b16 %v4055
        %v4150 = vunpack.c.l.b16 %v4056
        %v4151 = vunpack.c.h.b16 %v4056
        %v4152 = vunpack.c.l.b16 %v4057
        %v4153 = vunpack.c.h.b16 %v4057
        %v4154 = vpack.c.b16 %v4094, %v4090
        %v4155 = vpack.c.b16 %v4095, %v4091
        %v4156 = vpack.c.b16 %v4096, %v4092
        %v4157 = vpack.c.b16 %v4097, %v4093
        %v4158 = vpack.c.b16 %v4102, %v4098
        %v4159 = vpack.c.b16 %v4103, %v4099
        %v4160 = vpack.c.b16 %v4104, %v4100
        %v4161 = vpack.c.b16 %v4105, %v4101
        %v4162 = vpack.c.b16 %v4110, %v4106
        %v4163 = vpack.c.b16 %v4111, %v4107
        %v4164 = vpack.c.b16 %v4112, %v4108
        %v4165 = vpack.c.b16 %v4113, %v4109
        %v4166 = vpack.c.b16 %v4118, %v4114
        %v4167 = vpack.c.b16 %v4119, %v4115
        %v4168 = vpack.c.b16 %v4120, %v4116
        %v4169 = vpack.c.b16 %v4121, %v4117
        %v4170 = vpack.c.b16 %v4126, %v4122
        %v4171 = vpack.c.b16 %v4127, %v4123
        %v4172 = vpack.c.b16 %v4128, %v4124
        %v4173 = vpack.c.b16 %v4129, %v4125
        %v4174 = vpack.c.b16 %v4134, %v4130
        %v4175 = vpack.c.b16 %v4135, %v4131
        %v4176 = vpack.c.b16 %v4136, %v4132
        %v4177 = vpack.c.b16 %v4137, %v4133
        %v4178 = vpack.c.b16 %v4142, %v4138
        %v4179 = vpack.c.b16 %v4143, %v4139
        %v4180 = vpack.c.b16 %v4144, %v4140
        %v4181 = vpack.c.b16 %v4145, %v4141
        %v4182 = vpack.c.b16 %v4150, %v4146
        %v4183 = vpack.c.b16 %v4151, %v4147
        %v4184 = vpack.c.b16 %v4152, %v4148
        %v4185 = vpack.c.b16 %v4153, %v4149
        %4218 = vmatprep.subr.bf16.mxu0 %v4155
        %4219 = vmatpush1.bf16.msra.mxu0 %v4154
        %4220 = vmatprep.subr.bf16.mxu0 %v4159
        %4221 = vmatpush1.bf16.msra.mxu0 %v4158
        %4222 = vmatprep.subr.bf16.mxu0 %v4163
        %4223 = vmatpush1.bf16.msra.mxu0 %v4162
        %4224 = vmatprep.subr.bf16.mxu0 %v4167
        %4225 = vmatpush1.bf16.msra.mxu0 %v4166
        %4226 = vmatprep.subr.bf16.mxu0 %v4171
        %4227 = vmatpush1.bf16.msra.mxu0 %v4170
        %4228 = vmatprep.subr.bf16.mxu0 %v4175
        %4229 = vmatpush1.bf16.msra.mxu0 %v4174
        %4230 = vmatprep.subr.bf16.mxu0 %v4179
        %4231 = vmatpush1.bf16.msra.mxu0 %v4178
        %4232 = vmatprep.subr.bf16.mxu0 %v4183
        %4233 = vmatpush1.bf16.msra.mxu0 %v4182
        %4234 = vmatprep.subr.bf16.mxu0 0
        %4235 = vmatpush1.bf16.msra.mxu0 0
        %4236 = vmatprep.subr.bf16.mxu0 0
        %4237 = vmatpush1.bf16.msra.mxu0 0
        %4238 = vmatprep.subr.bf16.mxu0 0
        %4239 = vmatpush1.bf16.msra.mxu0 0
        %4240 = vmatprep.subr.bf16.mxu0 0
        %4241 = vmatpush1.bf16.msra.mxu0 0
        %4242 = vmatprep.subr.bf16.mxu0 0
        %4243 = vmatpush1.bf16.msra.mxu0 0
        %4244 = vmatprep.subr.bf16.mxu0 0
        %4245 = vmatpush1.bf16.msra.mxu0 0
        %4246 = vmatprep.subr.bf16.mxu0 0
        %4247 = vmatpush1.bf16.msra.mxu0 0
        %4248 = vmatprep.subr.bf16.mxu0 0
        %4249 = vmatpush1.bf16.msra.mxu0 0
        %4250 = vmatprep.mubr.bf16.mxu0 0
        %4251 = vmatmul.mubr.bf16.gmra.mrb[0].mxu0 %v4016
        %v4252 = vpop.f32.mrb[0].mxu0
        %v4253 = vadd.f32 0.0, %v4252
        %v4254 = vpop.f32.mrb[0].mxu0
        %v4255 = vadd.f32 0.0, %v4254
        %v4256 = vpop.f32.mrb[0].mxu0
        %v4257 = vpop.f32.mrb[0].mxu0
        %4258 = vdwg.mxu0
        %4259 = vmatprep.subr.bf16.mxu0 %v4157
        %4260 = vmatpush1.bf16.msra.mxu0 %v4156
        %4261 = vmatprep.subr.bf16.mxu0 %v4161
        %4262 = vmatpush1.bf16.msra.mxu0 %v4160
        %4263 = vmatprep.subr.bf16.mxu0 %v4165
        %4264 = vmatpush1.bf16.msra.mxu0 %v4164
        %4265 = vmatprep.subr.bf16.mxu0 %v4169
        %4266 = vmatpush1.bf16.msra.mxu0 %v4168
        %4267 = vmatprep.subr.bf16.mxu0 %v4173
        %4268 = vmatpush1.bf16.msra.mxu0 %v4172
        %4269 = vmatprep.subr.bf16.mxu0 %v4177
        %4270 = vmatpush1.bf16.msra.mxu0 %v4176
        %4271 = vmatprep.subr.bf16.mxu0 %v4181
        %4272 = vmatpush1.bf16.msra.mxu0 %v4180
        %4273 = vmatprep.subr.bf16.mxu0 %v4185
        %4274 = vmatpush1.bf16.msra.mxu0 %v4184
        %4275 = vmatprep.subr.bf16.mxu0 0
        %4276 = vmatpush1.bf16.msra.mxu0 0
        %4277 = vmatprep.subr.bf16.mxu0 0
        %4278 = vmatpush1.bf16.msra.mxu0 0
        %4279 = vmatprep.subr.bf16.mxu0 0
        %4280 = vmatpush1.bf16.msra.mxu0 0
        %4281 = vmatprep.subr.bf16.mxu0 0
        %4282 = vmatpush1.bf16.msra.mxu0 0
        %4283 = vmatprep.subr.bf16.mxu0 0
        %4284 = vmatpush1.bf16.msra.mxu0 0
        %4285 = vmatprep.subr.bf16.mxu0 0
        %4286 = vmatpush1.bf16.msra.mxu0 0
        %4287 = vmatprep.subr.bf16.mxu0 0
        %4288 = vmatpush1.bf16.msra.mxu0 0
        %4289 = vmatprep.subr.bf16.mxu0 0
        %4290 = vmatpush1.bf16.msra.mxu0 0
        %4291 = vmatprep.mubr.bf16.mxu0 0
        %4292 = vmatmul.mubr.bf16.gmra.mrb[0].mxu0 %v4016
        %v4293 = vpop.f32.mrb[0].mxu0
        %v4294 = vadd.f32 0.0, %v4293
        %v4295 = vpop.f32.mrb[0].mxu0
        %v4296 = vadd.f32 0.0, %v4295
        %v4297 = vpop.f32.mrb[0].mxu0
        %v4298 = vpop.f32.mrb[0].mxu0
        %4299 = vdwg.mxu0
        %v4300 = vadd.f32 %v4022, %v4253
        %v4301 = vadd.f32 %v4023, %v4255
        %v4302 = vadd.f32 %v4024, %v4294
        %v4303 = vadd.f32 %v4025, %v4296
        %v4304 = vxor.u32 %v4300, 2147483648
        %v4305 = vxor.u32 %v4301, 2147483648
        %v4306 = vxor.u32 %v4302, 2147483648
        %v4307 = vmul.f32 %v4304, 1.442695
        %v4308 = vpow.pop %v4307
        %v4309 = vmul.f32 %v4305, 1.442695
        %v4310 = vpow.pop %v4309
        %v4311 = vmul.f32 %v4306, 1.442695
        %v4312 = vpow.pop %v4311
        %v4313 = vadd.f32 %v4308, 1.0
        %v4314 = vadd.f32 %v4310, 1.0
        %v4315 = vadd.f32 %v4312, 1.0
        %v4316 = vrcp.pop %v4313
        %v4317 = vmul.f32 1.0, %v4316
        %v4318 = vrcp.pop %v4314
        %v4319 = vmul.f32 1.0, %v4318
        %v4320 = vrcp.pop %v4315
        %v4321 = vmul.f32 1.0, %v4320
        %v4322 = vtanh.pop %v4303
        %v4323 = vmul.f32 %v4319, %v4013
        %v4324 = vmul.f32 %v4317, %v4322
        %v4325 = vadd.f32 %v4323, %v4324
        %v4326 = vtanh.pop %v4325
        %v4327 = vmul.f32 %v4321, %v4326
        %v4328 = vpack.c.bf16 %v4327, %v4327
        %s4329 = scalar_lea.vmem %s248, 12
        %4330 = vst [vmem:[%s4329] sm:$0xf] %v4328
        %s4331 = scalar_lea.vmem %s225, 32
        %v4332 = vld [vmem:[%s4331] sm:$0xff]
        %v4333 = vld [vmem:[%s4331 + $0x8] sm:$0xff]
        %v4334 = vunpack.c.l.bf16 %v4332
        %v4335 = vunpack.c.h.bf16 %v4332
        %v4336 = vunpack.c.l.bf16 %v4333
        %v4337 = vunpack.c.h.bf16 %v4333
        %v4338 = vld [vmem:[%s235] sm:$0xff]
        %v4339 = vld [vmem:[%s235 + $0x8] sm:$0xff]
        %v4340 = vld [vmem:[%s235 + $0x10] sm:$0xff]
        %v4341 = vld [vmem:[%s235 + $0x18] sm:$0xff]
        %v4342 = vld [vmem:[%s235 + $0x20] sm:$0xff]
        %v4343 = vld [vmem:[%s235 + $0x28] sm:$0xff]
        %v4344 = vld [vmem:[%s235 + $0x30] sm:$0xff]
        %v4345 = vld [vmem:[%s235 + $0x38] sm:$0xff]
        %v4346 = vld [vmem:[%s235 + $0x40] sm:$0xff]
        %v4347 = vld [vmem:[%s235 + $0x48] sm:$0xff]
        %v4348 = vld [vmem:[%s235 + $0x50] sm:$0xff]
        %v4349 = vld [vmem:[%s235 + $0x58] sm:$0xff]
        %v4350 = vld [vmem:[%s235 + $0x60] sm:$0xff]
        %v4351 = vld [vmem:[%s235 + $0x68] sm:$0xff]
        %v4352 = vld [vmem:[%s235 + $0x70] sm:$0xff]
        %v4353 = vld [vmem:[%s235 + $0x78] sm:$0xff]
        %v4354 = vld [vmem:[%s235 + $0x80] sm:$0xff]
        %v4355 = vld [vmem:[%s235 + $0x88] sm:$0xff]
        %v4356 = vld [vmem:[%s235 + $0x90] sm:$0xff]
        %v4357 = vld [vmem:[%s235 + $0x98] sm:$0xff]
        %v4358 = vld [vmem:[%s235 + $0xa0] sm:$0xff]
        %v4359 = vld [vmem:[%s235 + $0xa8] sm:$0xff]
        %v4360 = vld [vmem:[%s235 + $0xb0] sm:$0xff]
        %v4361 = vld [vmem:[%s235 + $0xb8] sm:$0xff]
        %v4362 = vld [vmem:[%s235 + $0xc0] sm:$0xff]
        %v4363 = vld [vmem:[%s235 + $0xc8] sm:$0xff]
        %v4364 = vld [vmem:[%s235 + $0xd0] sm:$0xff]
        %v4365 = vld [vmem:[%s235 + $0xd8] sm:$0xff]
        %v4366 = vld [vmem:[%s235 + $0xe0] sm:$0xff]
        %v4367 = vld [vmem:[%s235 + $0xe8] sm:$0xff]
        %v4368 = vld [vmem:[%s235 + $0xf0] sm:$0xff]
        %v4369 = vld [vmem:[%s235 + $0xf8] sm:$0xff]
        %v4402 = vunpack.c.l.b16 %v4338
        %v4403 = vunpack.c.h.b16 %v4338
        %v4404 = vunpack.c.l.b16 %v4339
        %v4405 = vunpack.c.h.b16 %v4339
        %v4406 = vunpack.c.l.b16 %v4340
        %v4407 = vunpack.c.h.b16 %v4340
        %v4408 = vunpack.c.l.b16 %v4341
        %v4409 = vunpack.c.h.b16 %v4341
        %v4410 = vunpack.c.l.b16 %v4342
        %v4411 = vunpack.c.h.b16 %v4342
        %v4412 = vunpack.c.l.b16 %v4343
        %v4413 = vunpack.c.h.b16 %v4343
        %v4414 = vunpack.c.l.b16 %v4344
        %v4415 = vunpack.c.h.b16 %v4344
        %v4416 = vunpack.c.l.b16 %v4345
        %v4417 = vunpack.c.h.b16 %v4345
        %v4418 = vunpack.c.l.b16 %v4346
        %v4419 = vunpack.c.h.b16 %v4346
        %v4420 = vunpack.c.l.b16 %v4347
        %v4421 = vunpack.c.h.b16 %v4347
        %v4422 = vunpack.c.l.b16 %v4348
        %v4423 = vunpack.c.h.b16 %v4348
        %v4424 = vunpack.c.l.b16 %v4349
        %v4425 = vunpack.c.h.b16 %v4349
        %v4426 = vunpack.c.l.b16 %v4350
        %v4427 = vunpack.c.h.b16 %v4350
        %v4428 = vunpack.c.l.b16 %v4351
        %v4429 = vunpack.c.h.b16 %v4351
        %v4430 = vunpack.c.l.b16 %v4352
        %v4431 = vunpack.c.h.b16 %v4352
        %v4432 = vunpack.c.l.b16 %v4353
        %v4433 = vunpack.c.h.b16 %v4353
        %v4434 = vunpack.c.l.b16 %v4354
        %v4435 = vunpack.c.h.b16 %v4354
        %v4436 = vunpack.c.l.b16 %v4355
        %v4437 = vunpack.c.h.b16 %v4355
        %v4438 = vunpack.c.l.b16 %v4356
        %v4439 = vunpack.c.h.b16 %v4356
        %v4440 = vunpack.c.l.b16 %v4357
        %v4441 = vunpack.c.h.b16 %v4357
        %v4442 = vunpack.c.l.b16 %v4358
        %v4443 = vunpack.c.h.b16 %v4358
        %v4444 = vunpack.c.l.b16 %v4359
        %v4445 = vunpack.c.h.b16 %v4359
        %v4446 = vunpack.c.l.b16 %v4360
        %v4447 = vunpack.c.h.b16 %v4360
        %v4448 = vunpack.c.l.b16 %v4361
        %v4449 = vunpack.c.h.b16 %v4361
        %v4450 = vunpack.c.l.b16 %v4362
        %v4451 = vunpack.c.h.b16 %v4362
        %v4452 = vunpack.c.l.b16 %v4363
        %v4453 = vunpack.c.h.b16 %v4363
        %v4454 = vunpack.c.l.b16 %v4364
        %v4455 = vunpack.c.h.b16 %v4364
        %v4456 = vunpack.c.l.b16 %v4365
        %v4457 = vunpack.c.h.b16 %v4365
        %v4458 = vunpack.c.l.b16 %v4366
        %v4459 = vunpack.c.h.b16 %v4366
        %v4460 = vunpack.c.l.b16 %v4367
        %v4461 = vunpack.c.h.b16 %v4367
        %v4462 = vunpack.c.l.b16 %v4368
        %v4463 = vunpack.c.h.b16 %v4368
        %v4464 = vunpack.c.l.b16 %v4369
        %v4465 = vunpack.c.h.b16 %v4369
        %v4466 = vpack.c.b16 %v4406, %v4402
        %v4467 = vpack.c.b16 %v4407, %v4403
        %v4468 = vpack.c.b16 %v4408, %v4404
        %v4469 = vpack.c.b16 %v4409, %v4405
        %v4470 = vpack.c.b16 %v4414, %v4410
        %v4471 = vpack.c.b16 %v4415, %v4411
        %v4472 = vpack.c.b16 %v4416, %v4412
        %v4473 = vpack.c.b16 %v4417, %v4413
        %v4474 = vpack.c.b16 %v4422, %v4418
        %v4475 = vpack.c.b16 %v4423, %v4419
        %v4476 = vpack.c.b16 %v4424, %v4420
        %v4477 = vpack.c.b16 %v4425, %v4421
        %v4478 = vpack.c.b16 %v4430, %v4426
        %v4479 = vpack.c.b16 %v4431, %v4427
        %v4480 = vpack.c.b16 %v4432, %v4428
        %v4481 = vpack.c.b16 %v4433, %v4429
        %v4482 = vpack.c.b16 %v4438, %v4434
        %v4483 = vpack.c.b16 %v4439, %v4435
        %v4484 = vpack.c.b16 %v4440, %v4436
        %v4485 = vpack.c.b16 %v4441, %v4437
        %v4486 = vpack.c.b16 %v4446, %v4442
        %v4487 = vpack.c.b16 %v4447, %v4443
        %v4488 = vpack.c.b16 %v4448, %v4444
        %v4489 = vpack.c.b16 %v4449, %v4445
        %v4490 = vpack.c.b16 %v4454, %v4450
        %v4491 = vpack.c.b16 %v4455, %v4451
        %v4492 = vpack.c.b16 %v4456, %v4452
        %v4493 = vpack.c.b16 %v4457, %v4453
        %v4494 = vpack.c.b16 %v4462, %v4458
        %v4495 = vpack.c.b16 %v4463, %v4459
        %v4496 = vpack.c.b16 %v4464, %v4460
        %v4497 = vpack.c.b16 %v4465, %v4461
        %4530 = vmatprep.subr.bf16.mxu0 %v4467
        %4531 = vmatpush1.bf16.msra.mxu0 %v4466
        %4532 = vmatprep.subr.bf16.mxu0 %v4471
        %4533 = vmatpush1.bf16.msra.mxu0 %v4470
        %4534 = vmatprep.subr.bf16.mxu0 %v4475
        %4535 = vmatpush1.bf16.msra.mxu0 %v4474
        %4536 = vmatprep.subr.bf16.mxu0 %v4479
        %4537 = vmatpush1.bf16.msra.mxu0 %v4478
        %4538 = vmatprep.subr.bf16.mxu0 %v4483
        %4539 = vmatpush1.bf16.msra.mxu0 %v4482
        %4540 = vmatprep.subr.bf16.mxu0 %v4487
        %4541 = vmatpush1.bf16.msra.mxu0 %v4486
        %4542 = vmatprep.subr.bf16.mxu0 %v4491
        %4543 = vmatpush1.bf16.msra.mxu0 %v4490
        %4544 = vmatprep.subr.bf16.mxu0 %v4495
        %4545 = vmatpush1.bf16.msra.mxu0 %v4494
        %4546 = vmatprep.subr.bf16.mxu0 0
        %4547 = vmatpush1.bf16.msra.mxu0 0
        %4548 = vmatprep.subr.bf16.mxu0 0
        %4549 = vmatpush1.bf16.msra.mxu0 0
        %4550 = vmatprep.subr.bf16.mxu0 0
        %4551 = vmatpush1.bf16.msra.mxu0 0
        %4552 = vmatprep.subr.bf16.mxu0 0
        %4553 = vmatpush1.bf16.msra.mxu0 0
        %4554 = vmatprep.subr.bf16.mxu0 0
        %4555 = vmatpush1.bf16.msra.mxu0 0
        %4556 = vmatprep.subr.bf16.mxu0 0
        %4557 = vmatpush1.bf16.msra.mxu0 0
        %4558 = vmatprep.subr.bf16.mxu0 0
        %4559 = vmatpush1.bf16.msra.mxu0 0
        %4560 = vmatprep.subr.bf16.mxu0 0
        %4561 = vmatpush1.bf16.msra.mxu0 0
        %4562 = vmatprep.mubr.bf16.mxu0 0
        %4563 = vmatmul.mubr.bf16.gmra.mrb[0].mxu0 %v4328
        %v4564 = vpop.f32.mrb[0].mxu0
        %v4565 = vadd.f32 0.0, %v4564
        %v4566 = vpop.f32.mrb[0].mxu0
        %v4567 = vadd.f32 0.0, %v4566
        %v4568 = vpop.f32.mrb[0].mxu0
        %v4569 = vpop.f32.mrb[0].mxu0
        %4570 = vdwg.mxu0
        %4571 = vmatprep.subr.bf16.mxu0 %v4469
        %4572 = vmatpush1.bf16.msra.mxu0 %v4468
        %4573 = vmatprep.subr.bf16.mxu0 %v4473
        %4574 = vmatpush1.bf16.msra.mxu0 %v4472
        %4575 = vmatprep.subr.bf16.mxu0 %v4477
        %4576 = vmatpush1.bf16.msra.mxu0 %v4476
        %4577 = vmatprep.subr.bf16.mxu0 %v4481
        %4578 = vmatpush1.bf16.msra.mxu0 %v4480
        %4579 = vmatprep.subr.bf16.mxu0 %v4485
        %4580 = vmatpush1.bf16.msra.mxu0 %v4484
        %4581 = vmatprep.subr.bf16.mxu0 %v4489
        %4582 = vmatpush1.bf16.msra.mxu0 %v4488
        %4583 = vmatprep.subr.bf16.mxu0 %v4493
        %4584 = vmatpush1.bf16.msra.mxu0 %v4492
        %4585 = vmatprep.subr.bf16.mxu0 %v4497
        %4586 = vmatpush1.bf16.msra.mxu0 %v4496
        %4587 = vmatprep.subr.bf16.mxu0 0
        %4588 = vmatpush1.bf16.msra.mxu0 0
        %4589 = vmatprep.subr.bf16.mxu0 0
        %4590 = vmatpush1.bf16.msra.mxu0 0
        %4591 = vmatprep.subr.bf16.mxu0 0
        %4592 = vmatpush1.bf16.msra.mxu0 0
        %4593 = vmatprep.subr.bf16.mxu0 0
        %4594 = vmatpush1.bf16.msra.mxu0 0
        %4595 = vmatprep.subr.bf16.mxu0 0
        %4596 = vmatpush1.bf16.msra.mxu0 0
        %4597 = vmatprep.subr.bf16.mxu0 0
        %4598 = vmatpush1.bf16.msra.mxu0 0
        %4599 = vmatprep.subr.bf16.mxu0 0
        %4600 = vmatpush1.bf16.msra.mxu0 0
        %4601 = vmatprep.subr.bf16.mxu0 0
        %4602 = vmatpush1.bf16.msra.mxu0 0
        %4603 = vmatprep.mubr.bf16.mxu0 0
        %4604 = vmatmul.mubr.bf16.gmra.mrb[0].mxu0 %v4328
        %v4605 = vpop.f32.mrb[0].mxu0
        %v4606 = vadd.f32 0.0, %v4605
        %v4607 = vpop.f32.mrb[0].mxu0
        %v4608 = vadd.f32 0.0, %v4607
        %v4609 = vpop.f32.mrb[0].mxu0
        %v4610 = vpop.f32.mrb[0].mxu0
        %4611 = vdwg.mxu0
        %v4612 = vadd.f32 %v4334, %v4565
        %v4613 = vadd.f32 %v4335, %v4567
        %v4614 = vadd.f32 %v4336, %v4606
        %v4615 = vadd.f32 %v4337, %v4608
        %v4616 = vxor.u32 %v4612, 2147483648
        %v4617 = vxor.u32 %v4613, 2147483648
        %v4618 = vxor.u32 %v4614, 2147483648
        %v4619 = vmul.f32 %v4616, 1.442695
        %v4620 = vpow.pop %v4619
        %v4621 = vmul.f32 %v4617, 1.442695
        %v4622 = vpow.pop %v4621
        %v4623 = vmul.f32 %v4618, 1.442695
        %v4624 = vpow.pop %v4623
        %v4625 = vadd.f32 %v4620, 1.0
        %v4626 = vadd.f32 %v4622, 1.0
        %v4627 = vadd.f32 %v4624, 1.0
        %v4628 = vrcp.pop %v4625
        %v4629 = vmul.f32 1.0, %v4628
        %v4630 = vrcp.pop %v4626
        %v4631 = vmul.f32 1.0, %v4630
        %v4632 = vrcp.pop %v4627
        %v4633 = vmul.f32 1.0, %v4632
        %v4634 = vtanh.pop %v4615
        %v4635 = vmul.f32 %v4631, %v4325
        %v4636 = vmul.f32 %v4629, %v4634
        %v4637 = vadd.f32 %v4635, %v4636
        %v4638 = vtanh.pop %v4637
        %v4639 = vmul.f32 %v4633, %v4638
        %v4640 = vpack.c.bf16 %v4639, %v4639
        %s4641 = scalar_lea.vmem %s248, 8
        %4642 = vst [vmem:[%s4641] sm:$0xf] %v4640
        %s4643 = scalar_lea.vmem %s225, 16
        %v4644 = vld [vmem:[%s4643] sm:$0xff]
        %v4645 = vld [vmem:[%s4643 + $0x8] sm:$0xff]
        %v4646 = vunpack.c.l.bf16 %v4644
        %v4647 = vunpack.c.h.bf16 %v4644
        %v4648 = vunpack.c.l.bf16 %v4645
        %v4649 = vunpack.c.h.bf16 %v4645
        %v4650 = vld [vmem:[%s235] sm:$0xff]
        %v4651 = vld [vmem:[%s235 + $0x8] sm:$0xff]
        %v4652 = vld [vmem:[%s235 + $0x10] sm:$0xff]
        %v4653 = vld [vmem:[%s235 + $0x18] sm:$0xff]
        %v4654 = vld [vmem:[%s235 + $0x20] sm:$0xff]
        %v4655 = vld [vmem:[%s235 + $0x28] sm:$0xff]
        %v4656 = vld [vmem:[%s235 + $0x30] sm:$0xff]
        %v4657 = vld [vmem:[%s235 + $0x38] sm:$0xff]
        %v4658 = vld [vmem:[%s235 + $0x40] sm:$0xff]
        %v4659 = vld [vmem:[%s235 + $0x48] sm:$0xff]
        %v4660 = vld [vmem:[%s235 + $0x50] sm:$0xff]
        %v4661 = vld [vmem:[%s235 + $0x58] sm:$0xff]
        %v4662 = vld [vmem:[%s235 + $0x60] sm:$0xff]
        %v4663 = vld [vmem:[%s235 + $0x68] sm:$0xff]
        %v4664 = vld [vmem:[%s235 + $0x70] sm:$0xff]
        %v4665 = vld [vmem:[%s235 + $0x78] sm:$0xff]
        %v4666 = vld [vmem:[%s235 + $0x80] sm:$0xff]
        %v4667 = vld [vmem:[%s235 + $0x88] sm:$0xff]
        %v4668 = vld [vmem:[%s235 + $0x90] sm:$0xff]
        %v4669 = vld [vmem:[%s235 + $0x98] sm:$0xff]
        %v4670 = vld [vmem:[%s235 + $0xa0] sm:$0xff]
        %v4671 = vld [vmem:[%s235 + $0xa8] sm:$0xff]
        %v4672 = vld [vmem:[%s235 + $0xb0] sm:$0xff]
        %v4673 = vld [vmem:[%s235 + $0xb8] sm:$0xff]
        %v4674 = vld [vmem:[%s235 + $0xc0] sm:$0xff]
        %v4675 = vld [vmem:[%s235 + $0xc8] sm:$0xff]
        %v4676 = vld [vmem:[%s235 + $0xd0] sm:$0xff]
        %v4677 = vld [vmem:[%s235 + $0xd8] sm:$0xff]
        %v4678 = vld [vmem:[%s235 + $0xe0] sm:$0xff]
        %v4679 = vld [vmem:[%s235 + $0xe8] sm:$0xff]
        %v4680 = vld [vmem:[%s235 + $0xf0] sm:$0xff]
        %v4681 = vld [vmem:[%s235 + $0xf8] sm:$0xff]
        %v4714 = vunpack.c.l.b16 %v4650
        %v4715 = vunpack.c.h.b16 %v4650
        %v4716 = vunpack.c.l.b16 %v4651
        %v4717 = vunpack.c.h.b16 %v4651
        %v4718 = vunpack.c.l.b16 %v4652
        %v4719 = vunpack.c.h.b16 %v4652
        %v4720 = vunpack.c.l.b16 %v4653
        %v4721 = vunpack.c.h.b16 %v4653
        %v4722 = vunpack.c.l.b16 %v4654
        %v4723 = vunpack.c.h.b16 %v4654
        %v4724 = vunpack.c.l.b16 %v4655
        %v4725 = vunpack.c.h.b16 %v4655
        %v4726 = vunpack.c.l.b16 %v4656
        %v4727 = vunpack.c.h.b16 %v4656
        %v4728 = vunpack.c.l.b16 %v4657
        %v4729 = vunpack.c.h.b16 %v4657
        %v4730 = vunpack.c.l.b16 %v4658
        %v4731 = vunpack.c.h.b16 %v4658
        %v4732 = vunpack.c.l.b16 %v4659
        %v4733 = vunpack.c.h.b16 %v4659
        %v4734 = vunpack.c.l.b16 %v4660
        %v4735 = vunpack.c.h.b16 %v4660
        %v4736 = vunpack.c.l.b16 %v4661
        %v4737 = vunpack.c.h.b16 %v4661
        %v4738 = vunpack.c.l.b16 %v4662
        %v4739 = vunpack.c.h.b16 %v4662
        %v4740 = vunpack.c.l.b16 %v4663
        %v4741 = vunpack.c.h.b16 %v4663
        %v4742 = vunpack.c.l.b16 %v4664
        %v4743 = vunpack.c.h.b16 %v4664
        %v4744 = vunpack.c.l.b16 %v4665
        %v4745 = vunpack.c.h.b16 %v4665
        %v4746 = vunpack.c.l.b16 %v4666
        %v4747 = vunpack.c.h.b16 %v4666
        %v4748 = vunpack.c.l.b16 %v4667
        %v4749 = vunpack.c.h.b16 %v4667
        %v4750 = vunpack.c.l.b16 %v4668
        %v4751 = vunpack.c.h.b16 %v4668
        %v4752 = vunpack.c.l.b16 %v4669
        %v4753 = vunpack.c.h.b16 %v4669
        %v4754 = vunpack.c.l.b16 %v4670
        %v4755 = vunpack.c.h.b16 %v4670
        %v4756 = vunpack.c.l.b16 %v4671
        %v4757 = vunpack.c.h.b16 %v4671
        %v4758 = vunpack.c.l.b16 %v4672
        %v4759 = vunpack.c.h.b16 %v4672
        %v4760 = vunpack.c.l.b16 %v4673
        %v4761 = vunpack.c.h.b16 %v4673
        %v4762 = vunpack.c.l.b16 %v4674
        %v4763 = vunpack.c.h.b16 %v4674
        %v4764 = vunpack.c.l.b16 %v4675
        %v4765 = vunpack.c.h.b16 %v4675
        %v4766 = vunpack.c.l.b16 %v4676
        %v4767 = vunpack.c.h.b16 %v4676
        %v4768 = vunpack.c.l.b16 %v4677
        %v4769 = vunpack.c.h.b16 %v4677
        %v4770 = vunpack.c.l.b16 %v4678
        %v4771 = vunpack.c.h.b16 %v4678
        %v4772 = vunpack.c.l.b16 %v4679
        %v4773 = vunpack.c.h.b16 %v4679
        %v4774 = vunpack.c.l.b16 %v4680
        %v4775 = vunpack.c.h.b16 %v4680
        %v4776 = vunpack.c.l.b16 %v4681
        %v4777 = vunpack.c.h.b16 %v4681
        %v4778 = vpack.c.b16 %v4718, %v4714
        %v4779 = vpack.c.b16 %v4719, %v4715
        %v4780 = vpack.c.b16 %v4720, %v4716
        %v4781 = vpack.c.b16 %v4721, %v4717
        %v4782 = vpack.c.b16 %v4726, %v4722
        %v4783 = vpack.c.b16 %v4727, %v4723
        %v4784 = vpack.c.b16 %v4728, %v4724
        %v4785 = vpack.c.b16 %v4729, %v4725
        %v4786 = vpack.c.b16 %v4734, %v4730
        %v4787 = vpack.c.b16 %v4735, %v4731
        %v4788 = vpack.c.b16 %v4736, %v4732
        %v4789 = vpack.c.b16 %v4737, %v4733
        %v4790 = vpack.c.b16 %v4742, %v4738
        %v4791 = vpack.c.b16 %v4743, %v4739
        %v4792 = vpack.c.b16 %v4744, %v4740
        %v4793 = vpack.c.b16 %v4745, %v4741
        %v4794 = vpack.c.b16 %v4750, %v4746
        %v4795 = vpack.c.b16 %v4751, %v4747
        %v4796 = vpack.c.b16 %v4752, %v4748
        %v4797 = vpack.c.b16 %v4753, %v4749
        %v4798 = vpack.c.b16 %v4758, %v4754
        %v4799 = vpack.c.b16 %v4759, %v4755
        %v4800 = vpack.c.b16 %v4760, %v4756
        %v4801 = vpack.c.b16 %v4761, %v4757
        %v4802 = vpack.c.b16 %v4766, %v4762
        %v4803 = vpack.c.b16 %v4767, %v4763
        %v4804 = vpack.c.b16 %v4768, %v4764
        %v4805 = vpack.c.b16 %v4769, %v4765
        %v4806 = vpack.c.b16 %v4774, %v4770
        %v4807 = vpack.c.b16 %v4775, %v4771
        %v4808 = vpack.c.b16 %v4776, %v4772
        %v4809 = vpack.c.b16 %v4777, %v4773
        %4842 = vmatprep.subr.bf16.mxu0 %v4779
        %4843 = vmatpush1.bf16.msra.mxu0 %v4778
        %4844 = vmatprep.subr.bf16.mxu0 %v4783
        %4845 = vmatpush1.bf16.msra.mxu0 %v4782
        %4846 = vmatprep.subr.bf16.mxu0 %v4787
        %4847 = vmatpush1.bf16.msra.mxu0 %v4786
        %4848 = vmatprep.subr.bf16.mxu0 %v4791
        %4849 = vmatpush1.bf16.msra.mxu0 %v4790
        %4850 = vmatprep.subr.bf16.mxu0 %v4795
        %4851 = vmatpush1.bf16.msra.mxu0 %v4794
        %4852 = vmatprep.subr.bf16.mxu0 %v4799
        %4853 = vmatpush1.bf16.msra.mxu0 %v4798
        %4854 = vmatprep.subr.bf16.mxu0 %v4803
        %4855 = vmatpush1.bf16.msra.mxu0 %v4802
        %4856 = vmatprep.subr.bf16.mxu0 %v4807
        %4857 = vmatpush1.bf16.msra.mxu0 %v4806
        %4858 = vmatprep.subr.bf16.mxu0 0
        %4859 = vmatpush1.bf16.msra.mxu0 0
        %4860 = vmatprep.subr.bf16.mxu0 0
        %4861 = vmatpush1.bf16.msra.mxu0 0
        %4862 = vmatprep.subr.bf16.mxu0 0
        %4863 = vmatpush1.bf16.msra.mxu0 0
        %4864 = vmatprep.subr.bf16.mxu0 0
        %4865 = vmatpush1.bf16.msra.mxu0 0
        %4866 = vmatprep.subr.bf16.mxu0 0
        %4867 = vmatpush1.bf16.msra.mxu0 0
        %4868 = vmatprep.subr.bf16.mxu0 0
        %4869 = vmatpush1.bf16.msra.mxu0 0
        %4870 = vmatprep.subr.bf16.mxu0 0
        %4871 = vmatpush1.bf16.msra.mxu0 0
        %4872 = vmatprep.subr.bf16.mxu0 0
        %4873 = vmatpush1.bf16.msra.mxu0 0
        %4874 = vmatprep.mubr.bf16.mxu0 0
        %4875 = vmatmul.mubr.bf16.gmra.mrb[0].mxu0 %v4640
        %v4876 = vpop.f32.mrb[0].mxu0
        %v4877 = vadd.f32 0.0, %v4876
        %v4878 = vpop.f32.mrb[0].mxu0
        %v4879 = vadd.f32 0.0, %v4878
        %v4880 = vpop.f32.mrb[0].mxu0
        %v4881 = vpop.f32.mrb[0].mxu0
        %4882 = vdwg.mxu0
        %4883 = vmatprep.subr.bf16.mxu0 %v4781
        %4884 = vmatpush1.bf16.msra.mxu0 %v4780
        %4885 = vmatprep.subr.bf16.mxu0 %v4785
        %4886 = vmatpush1.bf16.msra.mxu0 %v4784
        %4887 = vmatprep.subr.bf16.mxu0 %v4789
        %4888 = vmatpush1.bf16.msra.mxu0 %v4788
        %4889 = vmatprep.subr.bf16.mxu0 %v4793
        %4890 = vmatpush1.bf16.msra.mxu0 %v4792
        %4891 = vmatprep.subr.bf16.mxu0 %v4797
        %4892 = vmatpush1.bf16.msra.mxu0 %v4796
        %4893 = vmatprep.subr.bf16.mxu0 %v4801
        %4894 = vmatpush1.bf16.msra.mxu0 %v4800
        %4895 = vmatprep.subr.bf16.mxu0 %v4805
        %4896 = vmatpush1.bf16.msra.mxu0 %v4804
        %4897 = vmatprep.subr.bf16.mxu0 %v4809
        %4898 = vmatpush1.bf16.msra.mxu0 %v4808
        %4899 = vmatprep.subr.bf16.mxu0 0
        %4900 = vmatpush1.bf16.msra.mxu0 0
        %4901 = vmatprep.subr.bf16.mxu0 0
        %4902 = vmatpush1.bf16.msra.mxu0 0
        %4903 = vmatprep.subr.bf16.mxu0 0
        %4904 = vmatpush1.bf16.msra.mxu0 0
        %4905 = vmatprep.subr.bf16.mxu0 0
        %4906 = vmatpush1.bf16.msra.mxu0 0
        %4907 = vmatprep.subr.bf16.mxu0 0
        %4908 = vmatpush1.bf16.msra.mxu0 0
        %4909 = vmatprep.subr.bf16.mxu0 0
        %4910 = vmatpush1.bf16.msra.mxu0 0
        %4911 = vmatprep.subr.bf16.mxu0 0
        %4912 = vmatpush1.bf16.msra.mxu0 0
        %4913 = vmatprep.subr.bf16.mxu0 0
        %4914 = vmatpush1.bf16.msra.mxu0 0
        %4915 = vmatprep.mubr.bf16.mxu0 0
        %4916 = vmatmul.mubr.bf16.gmra.mrb[0].mxu0 %v4640
        %v4917 = vpop.f32.mrb[0].mxu0
        %v4918 = vadd.f32 0.0, %v4917
        %v4919 = vpop.f32.mrb[0].mxu0
        %v4920 = vadd.f32 0.0, %v4919
        %v4921 = vpop.f32.mrb[0].mxu0
        %v4922 = vpop.f32.mrb[0].mxu0
        %4923 = vdwg.mxu0
        %v4924 = vadd.f32 %v4646, %v4877
        %v4925 = vadd.f32 %v4647, %v4879
        %v4926 = vadd.f32 %v4648, %v4918
        %v4927 = vadd.f32 %v4649, %v4920
        %v4928 = vxor.u32 %v4924, 2147483648
        %v4929 = vxor.u32 %v4925, 2147483648
        %v4930 = vxor.u32 %v4926, 2147483648
        %v4931 = vmul.f32 %v4928, 1.442695
        %v4932 = vpow.pop %v4931
        %v4933 = vmul.f32 %v4929, 1.442695
        %v4934 = vpow.pop %v4933
        %v4935 = vmul.f32 %v4930, 1.442695
        %v4936 = vpow.pop %v4935
        %v4937 = vadd.f32 %v4932, 1.0
        %v4938 = vadd.f32 %v4934, 1.0
        %v4939 = vadd.f32 %v4936, 1.0
        %v4940 = vrcp.pop %v4937
        %v4941 = vmul.f32 1.0, %v4940
        %v4942 = vrcp.pop %v4938
        %v4943 = vmul.f32 1.0, %v4942
        %v4944 = vrcp.pop %v4939
        %v4945 = vmul.f32 1.0, %v4944
        %v4946 = vtanh.pop %v4927
        %v4947 = vmul.f32 %v4943, %v4637
        %v4948 = vmul.f32 %v4941, %v4946
        %v4949 = vadd.f32 %v4947, %v4948
        %v4950 = vtanh.pop %v4949
        %v4951 = vmul.f32 %v4945, %v4950
        %v4952 = vpack.c.bf16 %v4951, %v4951
        %s4953 = scalar_lea.vmem %s248, 4
        %4954 = vst [vmem:[%s4953] sm:$0xf] %v4952
        %v4955 = vld [vmem:[%s225] sm:$0xff]
        %v4956 = vld [vmem:[%s225 + $0x8] sm:$0xff]
        %v4957 = vunpack.c.l.bf16 %v4955
        %v4958 = vunpack.c.h.bf16 %v4955
        %v4959 = vunpack.c.l.bf16 %v4956
        %v4960 = vunpack.c.h.bf16 %v4956
        %v4961 = vld [vmem:[%s235] sm:$0xff]
        %v4962 = vld [vmem:[%s235 + $0x8] sm:$0xff]
        %v4963 = vld [vmem:[%s235 + $0x10] sm:$0xff]
        %v4964 = vld [vmem:[%s235 + $0x18] sm:$0xff]
        %v4965 = vld [vmem:[%s235 + $0x20] sm:$0xff]
        %v4966 = vld [vmem:[%s235 + $0x28] sm:$0xff]
        %v4967 = vld [vmem:[%s235 + $0x30] sm:$0xff]
        %v4968 = vld [vmem:[%s235 + $0x38] sm:$0xff]
        %v4969 = vld [vmem:[%s235 + $0x40] sm:$0xff]
        %v4970 = vld [vmem:[%s235 + $0x48] sm:$0xff]
        %v4971 = vld [vmem:[%s235 + $0x50] sm:$0xff]
        %v4972 = vld [vmem:[%s235 + $0x58] sm:$0xff]
        %v4973 = vld [vmem:[%s235 + $0x60] sm:$0xff]
        %v4974 = vld [vmem:[%s235 + $0x68] sm:$0xff]
        %v4975 = vld [vmem:[%s235 + $0x70] sm:$0xff]
        %v4976 = vld [vmem:[%s235 + $0x78] sm:$0xff]
        %v4977 = vld [vmem:[%s235 + $0x80] sm:$0xff]
        %v4978 = vld [vmem:[%s235 + $0x88] sm:$0xff]
        %v4979 = vld [vmem:[%s235 + $0x90] sm:$0xff]
        %v4980 = vld [vmem:[%s235 + $0x98] sm:$0xff]
        %v4981 = vld [vmem:[%s235 + $0xa0] sm:$0xff]
        %v4982 = vld [vmem:[%s235 + $0xa8] sm:$0xff]
        %v4983 = vld [vmem:[%s235 + $0xb0] sm:$0xff]
        %v4984 = vld [vmem:[%s235 + $0xb8] sm:$0xff]
        %v4985 = vld [vmem:[%s235 + $0xc0] sm:$0xff]
        %v4986 = vld [vmem:[%s235 + $0xc8] sm:$0xff]
        %v4987 = vld [vmem:[%s235 + $0xd0] sm:$0xff]
        %v4988 = vld [vmem:[%s235 + $0xd8] sm:$0xff]
        %v4989 = vld [vmem:[%s235 + $0xe0] sm:$0xff]
        %v4990 = vld [vmem:[%s235 + $0xe8] sm:$0xff]
        %v4991 = vld [vmem:[%s235 + $0xf0] sm:$0xff]
        %v4992 = vld [vmem:[%s235 + $0xf8] sm:$0xff]
        %v5025 = vunpack.c.l.b16 %v4961
        %v5026 = vunpack.c.h.b16 %v4961
        %v5027 = vunpack.c.l.b16 %v4962
        %v5028 = vunpack.c.h.b16 %v4962
        %v5029 = vunpack.c.l.b16 %v4963
        %v5030 = vunpack.c.h.b16 %v4963
        %v5031 = vunpack.c.l.b16 %v4964
        %v5032 = vunpack.c.h.b16 %v4964
        %v5033 = vunpack.c.l.b16 %v4965
        %v5034 = vunpack.c.h.b16 %v4965
        %v5035 = vunpack.c.l.b16 %v4966
        %v5036 = vunpack.c.h.b16 %v4966
        %v5037 = vunpack.c.l.b16 %v4967
        %v5038 = vunpack.c.h.b16 %v4967
        %v5039 = vunpack.c.l.b16 %v4968
        %v5040 = vunpack.c.h.b16 %v4968
        %v5041 = vunpack.c.l.b16 %v4969
        %v5042 = vunpack.c.h.b16 %v4969
        %v5043 = vunpack.c.l.b16 %v4970
        %v5044 = vunpack.c.h.b16 %v4970
        %v5045 = vunpack.c.l.b16 %v4971
        %v5046 = vunpack.c.h.b16 %v4971
        %v5047 = vunpack.c.l.b16 %v4972
        %v5048 = vunpack.c.h.b16 %v4972
        %v5049 = vunpack.c.l.b16 %v4973
        %v5050 = vunpack.c.h.b16 %v4973
        %v5051 = vunpack.c.l.b16 %v4974
        %v5052 = vunpack.c.h.b16 %v4974
        %v5053 = vunpack.c.l.b16 %v4975
        %v5054 = vunpack.c.h.b16 %v4975
        %v5055 = vunpack.c.l.b16 %v4976
        %v5056 = vunpack.c.h.b16 %v4976
        %v5057 = vunpack.c.l.b16 %v4977
        %v5058 = vunpack.c.h.b16 %v4977
        %v5059 = vunpack.c.l.b16 %v4978
        %v5060 = vunpack.c.h.b16 %v4978
        %v5061 = vunpack.c.l.b16 %v4979
        %v5062 = vunpack.c.h.b16 %v4979
        %v5063 = vunpack.c.l.b16 %v4980
        %v5064 = vunpack.c.h.b16 %v4980
        %v5065 = vunpack.c.l.b16 %v4981
        %v5066 = vunpack.c.h.b16 %v4981
        %v5067 = vunpack.c.l.b16 %v4982
        %v5068 = vunpack.c.h.b16 %v4982
        %v5069 = vunpack.c.l.b16 %v4983
        %v5070 = vunpack.c.h.b16 %v4983
        %v5071 = vunpack.c.l.b16 %v4984
        %v5072 = vunpack.c.h.b16 %v4984
        %v5073 = vunpack.c.l.b16 %v4985
        %v5074 = vunpack.c.h.b16 %v4985
        %v5075 = vunpack.c.l.b16 %v4986
        %v5076 = vunpack.c.h.b16 %v4986
        %v5077 = vunpack.c.l.b16 %v4987
        %v5078 = vunpack.c.h.b16 %v4987
        %v5079 = vunpack.c.l.b16 %v4988
        %v5080 = vunpack.c.h.b16 %v4988
        %v5081 = vunpack.c.l.b16 %v4989
        %v5082 = vunpack.c.h.b16 %v4989
        %v5083 = vunpack.c.l.b16 %v4990
        %v5084 = vunpack.c.h.b16 %v4990
        %v5085 = vunpack.c.l.b16 %v4991
        %v5086 = vunpack.c.h.b16 %v4991
        %v5087 = vunpack.c.l.b16 %v4992
        %v5088 = vunpack.c.h.b16 %v4992
        %v5089 = vpack.c.b16 %v5029, %v5025
        %v5090 = vpack.c.b16 %v5030, %v5026
        %v5091 = vpack.c.b16 %v5031, %v5027
        %v5092 = vpack.c.b16 %v5032, %v5028
        %v5093 = vpack.c.b16 %v5037, %v5033
        %v5094 = vpack.c.b16 %v5038, %v5034
        %v5095 = vpack.c.b16 %v5039, %v5035
        %v5096 = vpack.c.b16 %v5040, %v5036
        %v5097 = vpack.c.b16 %v5045, %v5041
        %v5098 = vpack.c.b16 %v5046, %v5042
        %v5099 = vpack.c.b16 %v5047, %v5043
        %v5100 = vpack.c.b16 %v5048, %v5044
        %v5101 = vpack.c.b16 %v5053, %v5049
        %v5102 = vpack.c.b16 %v5054, %v5050
        %v5103 = vpack.c.b16 %v5055, %v5051
        %v5104 = vpack.c.b16 %v5056, %v5052
        %v5105 = vpack.c.b16 %v5061, %v5057
        %v5106 = vpack.c.b16 %v5062, %v5058
        %v5107 = vpack.c.b16 %v5063, %v5059
        %v5108 = vpack.c.b16 %v5064, %v5060
        %v5109 = vpack.c.b16 %v5069, %v5065
        %v5110 = vpack.c.b16 %v5070, %v5066
        %v5111 = vpack.c.b16 %v5071, %v5067
        %v5112 = vpack.c.b16 %v5072, %v5068
        %v5113 = vpack.c.b16 %v5077, %v5073
        %v5114 = vpack.c.b16 %v5078, %v5074
        %v5115 = vpack.c.b16 %v5079, %v5075
        %v5116 = vpack.c.b16 %v5080, %v5076
        %v5117 = vpack.c.b16 %v5085, %v5081
        %v5118 = vpack.c.b16 %v5086, %v5082
        %v5119 = vpack.c.b16 %v5087, %v5083
        %v5120 = vpack.c.b16 %v5088, %v5084
        %5153 = vmatprep.subr.bf16.mxu0 %v5090
        %5154 = vmatpush1.bf16.msra.mxu0 %v5089
        %5155 = vmatprep.subr.bf16.mxu0 %v5094
        %5156 = vmatpush1.bf16.msra.mxu0 %v5093
        %5157 = vmatprep.subr.bf16.mxu0 %v5098
        %5158 = vmatpush1.bf16.msra.mxu0 %v5097
        %5159 = vmatprep.subr.bf16.mxu0 %v5102
        %5160 = vmatpush1.bf16.msra.mxu0 %v5101
        %5161 = vmatprep.subr.bf16.mxu0 %v5106
        %5162 = vmatpush1.bf16.msra.mxu0 %v5105
        %5163 = vmatprep.subr.bf16.mxu0 %v5110
        %5164 = vmatpush1.bf16.msra.mxu0 %v5109
        %5165 = vmatprep.subr.bf16.mxu0 %v5114
        %5166 = vmatpush1.bf16.msra.mxu0 %v5113
        %5167 = vmatprep.subr.bf16.mxu0 %v5118
        %5168 = vmatpush1.bf16.msra.mxu0 %v5117
        %5169 = vmatprep.subr.bf16.mxu0 0
        %5170 = vmatpush1.bf16.msra.mxu0 0
        %5171 = vmatprep.subr.bf16.mxu0 0
        %5172 = vmatpush1.bf16.msra.mxu0 0
        %5173 = vmatprep.subr.bf16.mxu0 0
        %5174 = vmatpush1.bf16.msra.mxu0 0
        %5175 = vmatprep.subr.bf16.mxu0 0
        %5176 = vmatpush1.bf16.msra.mxu0 0
        %5177 = vmatprep.subr.bf16.mxu0 0
        %5178 = vmatpush1.bf16.msra.mxu0 0
        %5179 = vmatprep.subr.bf16.mxu0 0
        %5180 = vmatpush1.bf16.msra.mxu0 0
        %5181 = vmatprep.subr.bf16.mxu0 0
        %5182 = vmatpush1.bf16.msra.mxu0 0
        %5183 = vmatprep.subr.bf16.mxu0 0
        %5184 = vmatpush1.bf16.msra.mxu0 0
        %5185 = vmatprep.mubr.bf16.mxu0 0
        %5186 = vmatmul.mubr.bf16.gmra.mrb[0].mxu0 %v4952
        %v5187 = vpop.f32.mrb[0].mxu0
        %v5188 = vadd.f32 0.0, %v5187
        %v5189 = vpop.f32.mrb[0].mxu0
        %v5190 = vadd.f32 0.0, %v5189
        %v5191 = vpop.f32.mrb[0].mxu0
        %v5192 = vpop.f32.mrb[0].mxu0
        %5193 = vdwg.mxu0
        %5194 = vmatprep.subr.bf16.mxu0 %v5092
        %5195 = vmatpush1.bf16.msra.mxu0 %v5091
        %5196 = vmatprep.subr.bf16.mxu0 %v5096
        %5197 = vmatpush1.bf16.msra.mxu0 %v5095
        %5198 = vmatprep.subr.bf16.mxu0 %v5100
        %5199 = vmatpush1.bf16.msra.mxu0 %v5099
        %5200 = vmatprep.subr.bf16.mxu0 %v5104
        %5201 = vmatpush1.bf16.msra.mxu0 %v5103
        %5202 = vmatprep.subr.bf16.mxu0 %v5108
        %5203 = vmatpush1.bf16.msra.mxu0 %v5107
        %5204 = vmatprep.subr.bf16.mxu0 %v5112
        %5205 = vmatpush1.bf16.msra.mxu0 %v5111
        %5206 = vmatprep.subr.bf16.mxu0 %v5116
        %5207 = vmatpush1.bf16.msra.mxu0 %v5115
        %5208 = vmatprep.subr.bf16.mxu0 %v5120
        %5209 = vmatpush1.bf16.msra.mxu0 %v5119
        %5210 = vmatprep.subr.bf16.mxu0 0
        %5211 = vmatpush1.bf16.msra.mxu0 0
        %5212 = vmatprep.subr.bf16.mxu0 0
        %5213 = vmatpush1.bf16.msra.mxu0 0
        %5214 = vmatprep.subr.bf16.mxu0 0
        %5215 = vmatpush1.bf16.msra.mxu0 0
        %5216 = vmatprep.subr.bf16.mxu0 0
        %5217 = vmatpush1.bf16.msra.mxu0 0
        %5218 = vmatprep.subr.bf16.mxu0 0
        %5219 = vmatpush1.bf16.msra.mxu0 0
        %5220 = vmatprep.subr.bf16.mxu0 0
        %5221 = vmatpush1.bf16.msra.mxu0 0
        %5222 = vmatprep.subr.bf16.mxu0 0
        %5223 = vmatpush1.bf16.msra.mxu0 0
        %5224 = vmatprep.subr.bf16.mxu0 0
        %5225 = vmatpush1.bf16.msra.mxu0 0
        %5226 = vmatprep.mubr.bf16.mxu0 0
        %5227 = vmatmul.mubr.bf16.gmra.mrb[0].mxu0 %v4952
        %v5228 = vpop.f32.mrb[0].mxu0
        %v5229 = vadd.f32 0.0, %v5228
        %v5230 = vpop.f32.mrb[0].mxu0
        %v5231 = vadd.f32 0.0, %v5230
        %v5232 = vpop.f32.mrb[0].mxu0
        %v5233 = vpop.f32.mrb[0].mxu0
        %5234 = vdwg.mxu0
        %v5235 = vadd.f32 %v4957, %v5188
        %v5236 = vadd.f32 %v4958, %v5190
        %v5237 = vadd.f32 %v4959, %v5229
        %v5238 = vadd.f32 %v4960, %v5231
        %v5239 = vxor.u32 %v5235, 2147483648
        %v5240 = vxor.u32 %v5236, 2147483648
        %v5241 = vxor.u32 %v5237, 2147483648
        %v5242 = vmul.f32 %v5239, 1.442695
        %v5243 = vpow.pop %v5242
        %v5244 = vmul.f32 %v5240, 1.442695
        %v5245 = vpow.pop %v5244
        %v5246 = vmul.f32 %v5241, 1.442695
        %v5247 = vpow.pop %v5246
        %v5248 = vadd.f32 %v5243, 1.0
        %v5249 = vadd.f32 %v5245, 1.0
        %v5250 = vadd.f32 %v5247, 1.0
        %v5251 = vrcp.pop %v5248
        %v5252 = vmul.f32 1.0, %v5251
        %v5253 = vrcp.pop %v5249
        %v5254 = vmul.f32 1.0, %v5253
        %v5255 = vrcp.pop %v5250
        %v5256 = vmul.f32 1.0, %v5255
        %v5257 = vtanh.pop %v5238
        %v5258 = vmul.f32 %v5254, %v4949
        %v5259 = vmul.f32 %v5252, %v5257
        %v5260 = vadd.f32 %v5258, %v5259
        %v5261 = vtanh.pop %v5260
        %v5262 = vmul.f32 %v5256, %v5261
        %v5263 = vpack.c.bf16 %v5262, %v5262
        %5264 = vst [vmem:[%s248] sm:$0xf] %v5263
        %5265 = vst [vmem:[#allocation2] sm:$0xff] %v5262
        %5266 = vst [vmem:[#allocation3] sm:$0xff] %v5260
      $region40: #{bilstm_forward.3} parent=27 // pred_fallthru
        _
      %s5267 = smul.u32 %s18, 2
      %s5268 = ssub.s32 0, %s5267
      %s5269 = smul.u32 %s17, %s5268
      %s5270 = sadd.s32 %s18, %s5269
      %s5271 = smul.u32 8, %s5270
      %p5272 = scmp.lt.s32.totalorder %s17, 1
      %s5273 = scalar_select %p5272, %s17, 1
      %p5274 = scmp.lt.s32.totalorder %s5271, 7
      %s5275 = scalar_select %p5274, %s5271, 7
      %s5276 = smul.addr %s5273, 8
      %s5277 = sadd.s32 %s5275, %s5276
      %s5278 = smul.addr %s5277, 4
      %s5279 = scalar_lea.vmem %s2, %s5278
      // Predicated region
      $region41: #{bilstm_forward.3} parent=27 // pred_check
        %p5280 = pneg %p115
      $region42: #{bilstm_forward.3} parent=27 // pred_check_branch
        %5282 = sbr.rel (%p5280) target = $region44
      $region43: #{bilstm_forward.3} parent=27 // pred_region
        %s5283 = smul.u32 %s18, 2
        %s5284 = ssub.s32 0, %s5283
        %s5285 = smul.u32 %s17, %s5284
        %s5286 = sadd.s32 %s18, %s5285
        %s5287 = smul.u32 8, %s5286
      $region44: #{bilstm_forward.3} parent=27 // pred_fallthru
        _
    $region28: #{bilstm_forward.3} parent=5 // pred_fallthru
      _
    %p5288 = scmp.le.s32.totalorder 2, %s8
    // Predicated region
    $region45: #{bilstm_forward.3} parent=5 // pred_check
      %p5289 = pneg %p5288
    $region46: #{bilstm_forward.3} parent=5 // pred_check_branch
      %5291 = sbr.rel (%p5289) target = $region48
    $region47: #{bilstm_forward.3} parent=5 // pred_region
      %s5292 = ssub.s32 %s8, 2
      // Predicated region
      $region49: #{bilstm_forward.3} parent=47 // pred_check
        %p5293 = pneg %p121
      $region50: #{bilstm_forward.3} parent=47 // pred_check_branch
        %5295 = sbr.rel (%p5293) target = $region52
      $region51: #{bilstm_forward.3} parent=47 // pred_region
        %s5296 = smul.u32 %s20, 2
        %s5297 = ssub.s32 0, %s5296
        %s5298 = smul.u32 %s19, %s5297
        %s5299 = sadd.s32 %s20, %s5298
        %s5300 = smul.u32 8, %s5299
        %p5301 = scmp.lt.s32.totalorder %s19, 1
        %s5302 = scalar_select %p5301, %s19, 1
        %p5303 = scmp.lt.s32.totalorder %s5300, 7
        %s5304 = scalar_select %p5303, %s5300, 7
        %s5305 = smul.addr %s5302, 8
        %s5306 = sadd.s32 %s5304, %s5305
        %s5307 = smul.addr %s5306, 4
        %s5308 = scalar_lea.vmem %s2, %s5307
      $region52: #{bilstm_forward.3} parent=47 // pred_fallthru
        _
    $region48: #{bilstm_forward.3} parent=5 // pred_fallthru
      _
  $region6: #{bilstm_forward.3} parent=0 // loop_footer
    %s12 = sadd.s32 1, %s8
  $region7: #{bilstm_forward.3} parent=0 // loop_footer_branch
    %7 = sbr.rel target = $region3
  $region8: #{bilstm_forward.3} parent=0 // loop_exit
    _

</llo_original>
